<compile_context>
chip_gen: v6e
topology: v6e:2x2x1
jax: 0.10.0
libtpu: 0.0.40
codegen_flags: <defaults>
</compile_context>

<pallas_src>
import functools

import jax
import jax.numpy as jnp
from jax.experimental import pallas as pl
from jax.experimental.pallas import tpu as pltpu

LANE = 128                       # lane (last-dim) tile
SUB = 16                         # bf16 sublane packing
VMEM_LIMIT = 64 * 1024 * 1024


def _round_up(x, m):
    return (x + m - 1) // m * m


# ----------------------------- Pallas kernels ------------------------------

def _mm_bias_prelu_kernel(x_ref, w_ref, b_ref, a_ref, o_ref):
    """(tm, K) @ (K, Np) + bias -> PReLU -> bf16.  Np is 128-padded."""
    y = jnp.dot(x_ref[...], w_ref[...], preferred_element_type=jnp.float32)
    y = y + b_ref[...]
    y = jnp.where(y > 0.0, y, a_ref[...] * y)
    o_ref[...] = y.astype(o_ref.dtype)


def _conv3x3_folded_kernel(x_ref, w_ref, b_ref, a_ref, o_ref, lhs_ref, *,
                           wp, rows_out):
    """3x3 stride-1 conv on a flattened, halo-padded (rows, Ci) tile.

    The 9 taps (and, via the weight layout, the sub-pixel phases) are folded
    into the matmul contraction: the (rows_out, 9*Ci) LHS is assembled once
    from 9 shifted row-slices of the resident input tile (lane-aligned stores
    into VMEM scratch), then ONE MXU matmul against the folded (9*Ci, No)
    weight produces the output.  Bias + PReLU fused in f32, bf16 store.
    """
    ci = x_ref.shape[-1]
    t = 0
    for th in range(3):
        for tw in range(3):
            lhs_ref[:, t * ci:(t + 1) * ci] = (
                x_ref[pl.ds(th * wp + tw, rows_out), :])
            t += 1
    y = jnp.dot(lhs_ref[...], w_ref[...], preferred_element_type=jnp.float32)
    y = y + b_ref[...]
    y = jnp.where(y > 0.0, y, a_ref[...] * y)
    o_ref[...] = y.astype(o_ref.dtype)


# ------------------------------- wrappers -----------------------------------

def _bias_alpha_lanes(b, alpha, cout, n_lanes, groups=1, group_stride=None):
    """(1, n_lanes) f32 bias / PReLU-alpha rows; optionally tiled per phase."""
    if group_stride is None:
        group_stride = cout
    b = jnp.asarray(b, jnp.float32).reshape(-1)
    a = jnp.broadcast_to(jnp.asarray(alpha, jnp.float32).reshape(-1), (cout,))
    bm = jnp.zeros((1, n_lanes), jnp.float32)
    am = jnp.zeros((1, n_lanes), jnp.float32)
    for g in range(groups):
        s = g * group_stride
        bm = bm.at[0, s:s + cout].set(b)
        am = am.at[0, s:s + cout].set(a)
    return bm, am


def conv1x1_prelu(x, w, b, alpha):
    """torch Conv2d(Cin, Cout, 1) + PReLU.  x NHWC; returns (B,H,W,Np) bf16
    with channels zero-padded to a lane multiple (kept padded downstream)."""
    B, H, W, Cin = x.shape
    Cout = w.shape[0]
    Np = _round_up(Cout, LANE)
    M = B * H * W
    tm = min(512, _round_up(M, SUB))
    Mp = _round_up(M, tm)

    xf = x.reshape(M, Cin).astype(jnp.bfloat16)
    if Mp != M:
        xf = jnp.pad(xf, ((0, Mp - M), (0, 0)))
    wm = jnp.pad(jnp.asarray(w, jnp.float32).reshape(Cout, Cin).T,
                 ((0, 0), (0, Np - Cout))).astype(jnp.bfloat16)
    bm, am = _bias_alpha_lanes(b, alpha, Cout, Np)

    cost = pl.CostEstimate(
        flops=2 * Mp * Cin * Np + 3 * Mp * Np,
        transcendentals=0,
        bytes_accessed=2 * (Mp * Cin + Cin * Np + Mp * Np))

    out = pl.pallas_call(
        _mm_bias_prelu_kernel,
        out_shape=jax.ShapeDtypeStruct((Mp, Np), jnp.bfloat16),
        grid=(Mp // tm,),
        in_specs=[
            pl.BlockSpec((tm, Cin), lambda i: (i, 0)),
            pl.BlockSpec((Cin, Np), lambda i: (0, 0)),
            pl.BlockSpec((1, Np), lambda i: (0, 0)),
            pl.BlockSpec((1, Np), lambda i: (0, 0)),
        ],
        out_specs=pl.BlockSpec((tm, Np), lambda i: (i, 0)),
        compiler_params=pltpu.CompilerParams(
            dimension_semantics=("parallel",),
            vmem_limit_bytes=VMEM_LIMIT),
        cost_estimate=cost,
    )(xf, wm, bm, am)
    return out[:M].reshape(B, H, W, Np)


def _pad_and_flatten(x, wp):
    """Pad H by (1,2), W by (1, wp-W-1) and flatten spatial dims to rows of
    stride wp (the 2nd bottom row only absorbs the tap-offset overrun)."""
    B, H, W, C = x.shape
    xp = jnp.pad(x, ((0, 0), (1, 2), (1, wp - W - 1), (0, 0)))
    return xp.reshape(B, (H + 3) * wp, C)


def _run_conv3x3(x, w_mat, bm, am):
    """Shared driver for the tap/phase-folded 3x3 convs.

    x: (B,H,W,Ci) bf16, Ci a multiple of 128.  Returns (B, H, wp, No) bf16;
    columns [W, wp) and lanes beyond the real output channels are don't-care
    (sliced by the caller)."""
    B, H, W, Ci = x.shape
    No = w_mat.shape[1]
    wp = _round_up(W + 2, SUB)
    rows_in = (H + 3) * wp
    rows_out = H * wp
    xf = _pad_and_flatten(x.astype(jnp.bfloat16), wp)

    cost = pl.CostEstimate(
        flops=2 * B * rows_out * 9 * Ci * No + 3 * B * rows_out * No,
        transcendentals=0,
        bytes_accessed=2 * (B * rows_in * Ci + 9 * Ci * No + B * rows_out * No))

    out = pl.pallas_call(
        functools.partial(_conv3x3_folded_kernel, wp=wp, rows_out=rows_out),
        out_shape=jax.ShapeDtypeStruct((B, rows_out, No), jnp.bfloat16),
        grid=(B,),
        in_specs=[
            pl.BlockSpec((None, rows_in, Ci), lambda b: (b, 0, 0)),
            pl.BlockSpec((9 * Ci, No), lambda b: (0, 0)),
            pl.BlockSpec((1, No), lambda b: (0, 0)),
            pl.BlockSpec((1, No), lambda b: (0, 0)),
        ],
        out_specs=pl.BlockSpec((None, rows_out, No), lambda b: (b, 0, 0)),
        scratch_shapes=[pltpu.VMEM((rows_out, 9 * Ci), jnp.bfloat16)],
        compiler_params=pltpu.CompilerParams(
            dimension_semantics=("parallel",),
            vmem_limit_bytes=VMEM_LIMIT),
        cost_estimate=cost,
    )(xf, w_mat, bm, am)
    return out.reshape(B, H, wp, No)


def _tconv_weight_folded(w, ci_pad, ntc):
    """ConvTranspose2d weight (Cin,Cout,6,6) -> (9*ci_pad, ntc): taps folded
    into K, 4 sub-pixel phases concatenated along N at stride Cout."""
    Cin, Cout = w.shape[0], w.shape[1]
    po = jnp.arange(2)
    t = jnp.arange(3)
    kh = po[:, None] + 2 * (2 - t)[None, :]                    # (phase, tap)
    g = w[:, :, kh[:, None, :, None], kh[None, :, None, :]]    # (Ci,Co,ph,pw,th,tw)
    g = g.transpose(4, 5, 0, 2, 3, 1)                          # (th,tw,Ci,ph,pw,Co)
    g = g.reshape(9, Cin, 4 * Cout)
    g = jnp.pad(g, ((0, 0), (0, ci_pad - Cin), (0, ntc - 4 * Cout)))
    return g.reshape(9 * ci_pad, ntc).astype(jnp.bfloat16)


def _sconv_weight_folded(w, cg, cg4, no):
    """Conv2d weight (Cout,Cin,6,6) -> (9*cg4, no): taps AND the 4 sub-pixel
    input phases folded into K (input is phase-in-lanes, group stride cg)."""
    Cout, Cin = w.shape[0], w.shape[1]
    ph = jnp.arange(2)
    t = jnp.arange(3)
    kh = ph[:, None] + 2 * t[None, :]
    g = w[:, :, kh[:, None, :, None], kh[None, :, None, :]]    # (Co,Ci,ph,pw,th,tw)
    g = g.transpose(4, 5, 2, 3, 1, 0)                          # (th,tw,ph,pw,Ci,Co)
    g = g.reshape(9, 4, Cin, Cout)
    gz = jnp.zeros((9, 4, cg, no), jnp.float32)
    gz = gz.at[:, :, :Cin, :Cout].set(g)
    gz = gz.reshape(9, 4 * cg, no)
    gz = jnp.pad(gz, ((0, 0), (0, cg4 - 4 * cg), (0, 0)))
    return gz.reshape(9 * cg4, no).astype(jnp.bfloat16)


def tconv2x_prelu(x, w, b, alpha):
    """torch ConvTranspose2d(k=6,s=2,p=2) + PReLU.  x (B,H,W,Ci) bf16 with
    the real input channels (= w.shape[0]) in the leading lanes.  Returns
    (B,H,wp,Ntc) bf16 phase-in-lanes: out[..., p*Cout+c] = full[2i+ph,2j+pw,c]."""
    Ci = x.shape[-1]
    Cip = _round_up(Ci, LANE)
    if Cip != Ci:
        x = jnp.pad(x, ((0, 0), (0, 0), (0, 0), (0, Cip - Ci)))
    Cout = w.shape[1]
    Ntc = _round_up(4 * Cout, LANE)
    w_mat = _tconv_weight_folded(jnp.asarray(w, jnp.float32), Cip, Ntc)
    bm, am = _bias_alpha_lanes(b, alpha, Cout, Ntc, groups=4, group_stride=Cout)
    return _run_conv3x3(x, w_mat, bm, am)


def sconv2x_prelu(x_ph, w, b, alpha, cg):
    """torch Conv2d(k=6,s=2,p=2) + PReLU on a phase-in-lanes input
    (B,H,W,>=4*cg) with phase group stride cg.  Returns (B,H,wp,No) bf16."""
    Ci = x_ph.shape[-1]
    Cip = _round_up(Ci, LANE)
    if Cip != Ci:
        x_ph = jnp.pad(x_ph, ((0, 0), (0, 0), (0, 0), (0, Cip - Ci)))
    Cout = w.shape[0]
    No = _round_up(Cout, LANE)
    w_mat = _sconv_weight_folded(jnp.asarray(w, jnp.float32), cg, Cip, No)
    bm, am = _bias_alpha_lanes(b, alpha, Cout, No)
    return _run_conv3x3(x_ph, w_mat, bm, am)


def _phases_to_full(x_ph, W, C):
    """(B,H,>=W,>=4C) phase-in-lanes (stride C) -> (B,2H,2W,C)."""
    B, H = x_ph.shape[0], x_ph.shape[1]
    x = x_ph[:, :, :W, :4 * C].reshape(B, H, W, 2, 2, C)
    x = x.transpose(0, 1, 3, 2, 4, 5)
    return x.reshape(B, 2 * H, 2 * W, C)


def _full_to_phases(x):
    """(B,2H,2W,C) -> (B,H,W,4C) phase-in-lanes, group stride C."""
    B, H2, W2, C = x.shape
    H, W = H2 // 2, W2 // 2
    x = x.reshape(B, H, 2, W, 2, C).transpose(0, 1, 3, 2, 4, 5)
    return x.reshape(B, H, W, 4 * C)


# --------------------------- DenseProjection --------------------------------

def dense_projection(params, x, *, up, bottleneck):
    """DenseProjection forward (scale=2).  x is NHWC float32."""
    nr = params["b1"].shape[0]
    inter = params["b2"].shape[0]

    if bottleneck:
        xb = conv1x1_prelu(x, params["wb"], params["bb"], params["ab"])
    else:
        C = x.shape[-1]
        xb = jnp.pad(x.astype(jnp.bfloat16),
                     ((0, 0), (0, 0), (0, 0), (0, _round_up(C, LANE) - C)))

    if up:
        B, H, W, _ = xb.shape
        a0 = tconv2x_prelu(xb, params["w1"], params["b1"], params["a1"])
        # a0 phase-in-lanes feeds the strided conv directly (phases -> K).
        b0 = sconv2x_prelu(a0[:, :, :W, :], params["w2"], params["b2"],
                           params["a2"], cg=nr)
        e = b0[:, :, :W, :] - xb
        a1 = tconv2x_prelu(e, params["w3"], params["b3"], params["a3"])
        return _phases_to_full(a0 + a1, W, nr).astype(jnp.float32)
    else:
        B, H2, W2, _ = xb.shape
        H, W = H2 // 2, W2 // 2
        x_ph = _full_to_phases(xb[..., :inter])
        a0 = sconv2x_prelu(x_ph, params["w1"], params["b1"], params["a1"],
                           cg=inter)
        b0 = tconv2x_prelu(a0[:, :, :W, :], params["w2"], params["b2"],
                           params["a2"])
        e_ph = b0[:, :, :W, :4 * inter] - x_ph
        a1 = sconv2x_prelu(e_ph, params["w3"], params["b3"], params["a3"],
                           cg=inter)
        return (a0[:, :, :W, :nr] + a1[:, :, :W, :nr]).astype(jnp.float32)


def init_dense_projection_params(key, in_channels, nr, *, up=True,
                                 bottleneck=True):
    """Weights in native torch layouts: Conv2d (Cout,Cin,k,k),
    ConvTranspose2d (Cin,Cout,k,k)."""
    k = 6
    inter = nr if bottleneck else in_channels

    def nrm(kk, shape):
        return 0.1 * jax.random.normal(kk, shape, jnp.float32)

    keys = iter(jax.random.split(key, 16))
    p = {}
    if bottleneck:
        p["wb"] = nrm(next(keys), (nr, in_channels, 1, 1))
        p["bb"] = nrm(next(keys), (nr,))
        p["ab"] = jnp.full((nr,), 0.25, jnp.float32)
    if up:
        w1s = w3s = (inter, nr, k, k)   # ConvTranspose2d(inter -> nr)
        w2s = (inter, nr, k, k)         # Conv2d(nr -> inter)
    else:
        w1s = w3s = (nr, inter, k, k)   # Conv2d(inter -> nr)
        w2s = (nr, inter, k, k)         # ConvTranspose2d(nr -> inter)
    p["w1"] = nrm(next(keys), w1s); p["b1"] = nrm(next(keys), (nr,))
    p["a1"] = jnp.full((nr,), 0.25, jnp.float32)
    p["w2"] = nrm(next(keys), w2s); p["b2"] = nrm(next(keys), (inter,))
    p["a2"] = jnp.full((inter,), 0.25, jnp.float32)
    p["w3"] = nrm(next(keys), w3s); p["b3"] = nrm(next(keys), (nr,))
    p["a3"] = jnp.full((nr,), 0.25, jnp.float32)
    return p


# ----------------------- pure-JAX reference (checking) ----------------------

def _prelu_ref(y, a):
    a = jnp.asarray(a, jnp.float32).reshape((1,) * (y.ndim - 1) + (-1,))
    return jnp.where(y > 0.0, y, a * y)


def _ref_conv1x1(x, w, b, a):
    return _prelu_ref(jnp.einsum("bhwc,oc->bhwo", x, w[:, :, 0, 0]) + b, a)


def _ref_conv(x, w, b, a):
    y = jax.lax.conv_general_dilated(
        x, w.transpose(2, 3, 1, 0), window_strides=(2, 2),
        padding=[(2, 2), (2, 2)], dimension_numbers=("NHWC", "HWIO", "NHWC"))
    return _prelu_ref(y + b, a)


def _ref_tconv(x, w, b, a):
    wf = jnp.flip(w, (2, 3)).transpose(2, 3, 0, 1)
    y = jax.lax.conv_general_dilated(
        x, wf, window_strides=(1, 1), padding=[(3, 3), (3, 3)],
        lhs_dilation=(2, 2), dimension_numbers=("NHWC", "HWIO", "NHWC"))
    return _prelu_ref(y + b, a)


def dense_projection_ref(p, x, *, up, bottleneck):
    if bottleneck:
        x = _ref_conv1x1(x, p["wb"], p["bb"], p["ab"])
    c1 = _ref_tconv if up else _ref_conv
    c2 = _ref_conv if up else _ref_tconv
    a0 = c1(x, p["w1"], p["b1"], p["a1"])
    b0 = c2(a0, p["w2"], p["b2"], p["a2"])
    e = b0 - x
    a1 = c1(e, p["w3"], p["b3"], p["a3"])
    return a0 + a1


# --------------------------------- main --------------------------------------

if __name__ == "__main__":
    B, Cin, nr, H, W = 2, 8, 8, 8, 8
    key = jax.random.PRNGKey(0)
    k1, k2, k3, k4 = jax.random.split(key, 4)

    # up-projection: DenseProjection(Cin, nr, scale=2, up=True, bottleneck=True)
    params_up = init_dense_projection_params(k1, Cin, nr, up=True, bottleneck=True)
    x_up = jax.random.normal(k2, (B, H, W, Cin), jnp.float32)          # NHWC
    fwd_up = jax.jit(functools.partial(dense_projection, up=True, bottleneck=True))
    out_up = jax.block_until_ready(fwd_up(params_up, x_up))
    assert out_up.shape == (B, 2 * H, 2 * W, nr), out_up.shape
    assert bool(jnp.all(jnp.isfinite(out_up)))
    ref_up = dense_projection_ref(params_up, x_up, up=True, bottleneck=True)
    assert bool(jnp.allclose(out_up, ref_up, atol=5e-2, rtol=5e-2)), \
        float(jnp.max(jnp.abs(out_up - ref_up)))

    # down-projection: DenseProjection(Cin, nr, scale=2, up=False, bottleneck=True)
    params_dn = init_dense_projection_params(k3, Cin, nr, up=False, bottleneck=True)
    x_dn = jax.random.normal(k4, (B, 2 * H, 2 * W, Cin), jnp.float32)  # NHWC
    fwd_dn = jax.jit(functools.partial(dense_projection, up=False, bottleneck=True))
    out_dn = jax.block_until_ready(fwd_dn(params_dn, x_dn))
    assert out_dn.shape == (B, H, W, nr), out_dn.shape
    assert bool(jnp.all(jnp.isfinite(out_dn)))
    ref_dn = dense_projection_ref(params_dn, x_dn, up=False, bottleneck=True)
    assert bool(jnp.allclose(out_dn, ref_dn, atol=5e-2, rtol=5e-2)), \
        float(jnp.max(jnp.abs(out_dn - ref_dn)))

    print("KERNEL_OK")
</pallas_src>

<mosaic_0001>
module attributes {stable_mosaic.version = 11 : i64} {
  func.func @_mm_bias_prelu_kernel(%arg0: i32, %arg1: memref<128x8xbf16, #tpu.memory_space<vmem>>, %arg2: memref<8x128xbf16, #tpu.memory_space<vmem>>, %arg3: memref<1x128xf32, #tpu.memory_space<vmem>>, %arg4: memref<1x128xf32, #tpu.memory_space<vmem>>, %arg5: memref<128x128xbf16, #tpu.memory_space<vmem>>) attributes {dimension_semantics = [#tpu.dimension_semantics<parallel>], iteration_bounds = array<i64: 1>, scalar_prefetch = 0 : i64, scratch_operands = 0 : i64, tpu.core_type = #tpu.core_type<tc>, window_params = [{transform_indices = @transform_0, window_bounds = array<i64: 128, 8>}, {pipeline_mode = #tpu.pipeline_mode<synchronous>, transform_indices = @transform_1, window_bounds = array<i64: 8, 128>}, {pipeline_mode = #tpu.pipeline_mode<synchronous>, transform_indices = @transform_2, window_bounds = array<i64: 1, 128>}, {pipeline_mode = #tpu.pipeline_mode<synchronous>, transform_indices = @transform_3, window_bounds = array<i64: 1, 128>}, {transform_indices = @transform_4, window_bounds = array<i64: 128, 128>}]} {
    %c0 = arith.constant 0 : index
    %c0_0 = arith.constant 0 : index
    %0 = vector.load %arg1[%c0, %c0_0] : memref<128x8xbf16, #tpu.memory_space<vmem>>, vector<128x8xbf16>
    %c0_1 = arith.constant 0 : index
    %c0_2 = arith.constant 0 : index
    %1 = vector.load %arg2[%c0_1, %c0_2] : memref<8x128xbf16, #tpu.memory_space<vmem>>, vector<8x128xbf16>
    %cst = arith.constant dense<0.000000e+00> : vector<128x128xf32>
    %2 = tpu.matmul %0, %1, %cst {dimension_numbers = #tpu.dot_dimension_numbers<[1], [0], [0], [1], [0, 0, 1, 1], [], []>} : vector<128x8xbf16>, vector<8x128xbf16>, vector<128x128xf32> -> vector<128x128xf32>
    %c0_3 = arith.constant 0 : index
    %c0_4 = arith.constant 0 : index
    %3 = vector.load %arg3[%c0_3, %c0_4] : memref<1x128xf32, #tpu.memory_space<vmem>>, vector<1x128xf32>
    %4 = vector.broadcast %3 : vector<1x128xf32> to vector<128x128xf32>
    %5 = arith.addf %2, %4 : vector<128x128xf32>
    %cst_5 = arith.constant 0.000000e+00 : f32
    %6 = vector.broadcast %cst_5 : f32 to vector<128x128xf32>
    %7 = arith.cmpf ogt, %5, %6 : vector<128x128xf32>
    %c0_6 = arith.constant 0 : index
    %c0_7 = arith.constant 0 : index
    %8 = vector.load %arg4[%c0_6, %c0_7] : memref<1x128xf32, #tpu.memory_space<vmem>>, vector<1x128xf32>
    %9 = vector.broadcast %8 : vector<1x128xf32> to vector<128x128xf32>
    %10 = arith.mulf %9, %5 : vector<128x128xf32>
    %11 = arith.select %7, %5, %10 : vector<128x128xi1>, vector<128x128xf32>
    %12 = arith.truncf %11 : vector<128x128xf32> to vector<128x128xbf16>
    %c0_8 = arith.constant 0 : index
    %c0_9 = arith.constant 0 : index
    %13 = vector.load %arg5[%c0_8, %c0_9] : memref<128x128xbf16, #tpu.memory_space<vmem>>, vector<128x128xbf16>
    tpu.vector_store %arg5[%c0_8, %c0_9], %12 {strides = array<i32>} : memref<128x128xbf16, #tpu.memory_space<vmem>>, vector<128x128xbf16>,
    return
  }
  func.func @transform_0(%arg0: i32) -> (i32, i32) {
    %c0_i32 = arith.constant 0 : i32
    %c0_i32_0 = arith.constant 0 : i32
    return %arg0, %c0_i32 : i32, i32
  }
  func.func @transform_1(%arg0: i32) -> (i32, i32) {
    %c0_i32 = arith.constant 0 : i32
    %c0_i32_0 = arith.constant 0 : i32
    %c0_i32_1 = arith.constant 0 : i32
    return %c0_i32, %c0_i32_0 : i32, i32
  }
  func.func @transform_2(%arg0: i32) -> (i32, i32) {
    %c0_i32 = arith.constant 0 : i32
    %c0_i32_0 = arith.constant 0 : i32
    %c0_i32_1 = arith.constant 0 : i32
    return %c0_i32, %c0_i32_0 : i32, i32
  }
  func.func @transform_3(%arg0: i32) -> (i32, i32) {
    %c0_i32 = arith.constant 0 : i32
    %c0_i32_0 = arith.constant 0 : i32
    %c0_i32_1 = arith.constant 0 : i32
    return %c0_i32, %c0_i32_0 : i32, i32
  }
  func.func @transform_4(%arg0: i32) -> (i32, i32) {
    %c0_i32 = arith.constant 0 : i32
    %c0_i32_0 = arith.constant 0 : i32
    return %arg0, %c0_i32 : i32, i32
  }
}

module attributes {stable_mosaic.version = 11 : i64} {
  func.func @_conv3x3_folded_kernel(%arg0: i32, %arg1: memref<1x176x128xbf16, #tpu.memory_space<vmem>>, %arg2: memref<1152x128xbf16, #tpu.memory_space<vmem>>, %arg3: memref<1x128xf32, #tpu.memory_space<vmem>>, %arg4: memref<1x128xf32, #tpu.memory_space<vmem>>, %arg5: memref<1x128x128xbf16, #tpu.memory_space<vmem>>, %arg6: memref<128x1152xbf16, #tpu.memory_space<vmem>>) attributes {dimension_semantics = [#tpu.dimension_semantics<parallel>], iteration_bounds = array<i64: 2>, scalar_prefetch = 0 : i64, scratch_operands = 1 : i64, tpu.core_type = #tpu.core_type<tc>, window_params = [{transform_indices = @transform_0, window_bounds = array<i64: 1, 176, 128>}, {pipeline_mode = #tpu.pipeline_mode<synchronous>, transform_indices = @transform_1, window_bounds = array<i64: 1152, 128>}, {pipeline_mode = #tpu.pipeline_mode<synchronous>, transform_indices = @transform_2, window_bounds = array<i64: 1, 128>}, {pipeline_mode = #tpu.pipeline_mode<synchronous>, transform_indices = @transform_3, window_bounds = array<i64: 1, 128>}, {transform_indices = @transform_4, window_bounds = array<i64: 1, 128, 128>}]} {
    %c0 = arith.constant 0 : index
    %c0_0 = arith.constant 0 : index
    %c0_1 = arith.constant 0 : index
    %0 = vector.load %arg1[%c0, %c0_0, %c0_1] : memref<1x176x128xbf16, #tpu.memory_space<vmem>>, vector<1x128x128xbf16>
    %1 = vector.shape_cast %0 : vector<1x128x128xbf16> to vector<128x128xbf16>
    %c0_2 = arith.constant 0 : index
    %c0_3 = arith.constant 0 : index
    %2 = vector.load %arg6[%c0_2, %c0_3] : memref<128x1152xbf16, #tpu.memory_space<vmem>>, vector<128x128xbf16>
    tpu.vector_store %arg6[%c0_2, %c0_3], %1 {strides = array<i32>} : memref<128x1152xbf16, #tpu.memory_space<vmem>>, vector<128x128xbf16>,
    %c0_4 = arith.constant 0 : index
    %c1 = arith.constant 1 : index
    %c0_5 = arith.constant 0 : index
    %3 = vector.load %arg1[%c0_4, %c1, %c0_5] : memref<1x176x128xbf16, #tpu.memory_space<vmem>>, vector<1x128x128xbf16>
    %4 = vector.shape_cast %3 : vector<1x128x128xbf16> to vector<128x128xbf16>
    %c0_6 = arith.constant 0 : index
    %c128 = arith.constant 128 : index
    %5 = vector.load %arg6[%c0_6, %c128] : memref<128x1152xbf16, #tpu.memory_space<vmem>>, vector<128x128xbf16>
    tpu.vector_store %arg6[%c0_6, %c128], %4 {strides = array<i32>} : memref<128x1152xbf16, #tpu.memory_space<vmem>>, vector<128x128xbf16>,
    %c0_7 = arith.constant 0 : index
    %c2 = arith.constant 2 : index
    %c0_8 = arith.constant 0 : index
    %6 = vector.load %arg1[%c0_7, %c2, %c0_8] : memref<1x176x128xbf16, #tpu.memory_space<vmem>>, vector<1x128x128xbf16>
    %7 = vector.shape_cast %6 : vector<1x128x128xbf16> to vector<128x128xbf16>
    %c0_9 = arith.constant 0 : index
    %c256 = arith.constant 256 : index
    %8 = vector.load %arg6[%c0_9, %c256] : memref<128x1152xbf16, #tpu.memory_space<vmem>>, vector<128x128xbf16>
    tpu.vector_store %arg6[%c0_9, %c256], %7 {strides = array<i32>} : memref<128x1152xbf16, #tpu.memory_space<vmem>>, vector<128x128xbf16>,
    %c0_10 = arith.constant 0 : index
    %c16 = arith.constant 16 : index
    %c0_11 = arith.constant 0 : index
    %9 = vector.load %arg1[%c0_10, %c16, %c0_11] : memref<1x176x128xbf16, #tpu.memory_space<vmem>>, vector<1x128x128xbf16>
    %10 = vector.shape_cast %9 : vector<1x128x128xbf16> to vector<128x128xbf16>
    %c0_12 = arith.constant 0 : index
    %c384 = arith.constant 384 : index
    %11 = vector.load %arg6[%c0_12, %c384] : memref<128x1152xbf16, #tpu.memory_space<vmem>>, vector<128x128xbf16>
    tpu.vector_store %arg6[%c0_12, %c384], %10 {strides = array<i32>} : memref<128x1152xbf16, #tpu.memory_space<vmem>>, vector<128x128xbf16>,
    %c0_13 = arith.constant 0 : index
    %c17 = arith.constant 17 : index
    %c0_14 = arith.constant 0 : index
    %12 = vector.load %arg1[%c0_13, %c17, %c0_14] : memref<1x176x128xbf16, #tpu.memory_space<vmem>>, vector<1x128x128xbf16>
    %13 = vector.shape_cast %12 : vector<1x128x128xbf16> to vector<128x128xbf16>
    %c0_15 = arith.constant 0 : index
    %c512 = arith.constant 512 : index
    %14 = vector.load %arg6[%c0_15, %c512] : memref<128x1152xbf16, #tpu.memory_space<vmem>>, vector<128x128xbf16>
    tpu.vector_store %arg6[%c0_15, %c512], %13 {strides = array<i32>} : memref<128x1152xbf16, #tpu.memory_space<vmem>>, vector<128x128xbf16>,
    %c0_16 = arith.constant 0 : index
    %c18 = arith.constant 18 : index
    %c0_17 = arith.constant 0 : index
    %15 = vector.load %arg1[%c0_16, %c18, %c0_17] : memref<1x176x128xbf16, #tpu.memory_space<vmem>>, vector<1x128x128xbf16>
    %16 = vector.shape_cast %15 : vector<1x128x128xbf16> to vector<128x128xbf16>
    %c0_18 = arith.constant 0 : index
    %c640 = arith.constant 640 : index
    %17 = vector.load %arg6[%c0_18, %c640] : memref<128x1152xbf16, #tpu.memory_space<vmem>>, vector<128x128xbf16>
    tpu.vector_store %arg6[%c0_18, %c640], %16 {strides = array<i32>} : memref<128x1152xbf16, #tpu.memory_space<vmem>>, vector<128x128xbf16>,
    %c0_19 = arith.constant 0 : index
    %c32 = arith.constant 32 : index
    %c0_20 = arith.constant 0 : index
    %18 = vector.load %arg1[%c0_19, %c32, %c0_20] : memref<1x176x128xbf16, #tpu.memory_space<vmem>>, vector<1x128x128xbf16>
    %19 = vector.shape_cast %18 : vector<1x128x128xbf16> to vector<128x128xbf16>
    %c0_21 = arith.constant 0 : index
    %c768 = arith.constant 768 : index
    %20 = vector.load %arg6[%c0_21, %c768] : memref<128x1152xbf16, #tpu.memory_space<vmem>>, vector<128x128xbf16>
    tpu.vector_store %arg6[%c0_21, %c768], %19 {strides = array<i32>} : memref<128x1152xbf16, #tpu.memory_space<vmem>>, vector<128x128xbf16>,
    %c0_22 = arith.constant 0 : index
    %c33 = arith.constant 33 : index
    %c0_23 = arith.constant 0 : index
    %21 = vector.load %arg1[%c0_22, %c33, %c0_23] : memref<1x176x128xbf16, #tpu.memory_space<vmem>>, vector<1x128x128xbf16>
    %22 = vector.shape_cast %21 : vector<1x128x128xbf16> to vector<128x128xbf16>
    %c0_24 = arith.constant 0 : index
    %c896 = arith.constant 896 : index
    %23 = vector.load %arg6[%c0_24, %c896] : memref<128x1152xbf16, #tpu.memory_space<vmem>>, vector<128x128xbf16>
    tpu.vector_store %arg6[%c0_24, %c896], %22 {strides = array<i32>} : memref<128x1152xbf16, #tpu.memory_space<vmem>>, vector<128x128xbf16>,
    %c0_25 = arith.constant 0 : index
    %c34 = arith.constant 34 : index
    %c0_26 = arith.constant 0 : index
    %24 = vector.load %arg1[%c0_25, %c34, %c0_26] : memref<1x176x128xbf16, #tpu.memory_space<vmem>>, vector<1x128x128xbf16>
    %25 = vector.shape_cast %24 : vector<1x128x128xbf16> to vector<128x128xbf16>
    %c0_27 = arith.constant 0 : index
    %c1024 = arith.constant 1024 : index
    %26 = vector.load %arg6[%c0_27, %c1024] : memref<128x1152xbf16, #tpu.memory_space<vmem>>, vector<128x128xbf16>
    tpu.vector_store %arg6[%c0_27, %c1024], %25 {strides = array<i32>} : memref<128x1152xbf16, #tpu.memory_space<vmem>>, vector<128x128xbf16>,
    %c0_28 = arith.constant 0 : index
    %c0_29 = arith.constant 0 : index
    %27 = vector.load %arg6[%c0_28, %c0_29] : memref<128x1152xbf16, #tpu.memory_space<vmem>>, vector<128x1152xbf16>
    %c0_30 = arith.constant 0 : index
    %c0_31 = arith.constant 0 : index
    %28 = vector.load %arg2[%c0_30, %c0_31] : memref<1152x128xbf16, #tpu.memory_space<vmem>>, vector<1152x128xbf16>
    %cst = arith.constant dense<0.000000e+00> : vector<128x128xf32>
    %29 = tpu.matmul %27, %28, %cst {dimension_numbers = #tpu.dot_dimension_numbers<[1], [0], [0], [1], [0, 0, 1, 1], [], []>} : vector<128x1152xbf16>, vector<1152x128xbf16>, vector<128x128xf32> -> vector<128x128xf32>
    %c0_32 = arith.constant 0 : index
    %c0_33 = arith.constant 0 : index
    %30 = vector.load %arg3[%c0_32, %c0_33] : memref<1x128xf32, #tpu.memory_space<vmem>>, vector<1x128xf32>
    %31 = vector.broadcast %30 : vector<1x128xf32> to vector<128x128xf32>
    %32 = arith.addf %29, %31 : vector<128x128xf32>
    %cst_34 = arith.constant 0.000000e+00 : f32
    %33 = vector.broadcast %cst_34 : f32 to vector<128x128xf32>
    %34 = arith.cmpf ogt, %32, %33 : vector<128x128xf32>
    %c0_35 = arith.constant 0 : index
    %c0_36 = arith.constant 0 : index
    %35 = vector.load %arg4[%c0_35, %c0_36] : memref<1x128xf32, #tpu.memory_space<vmem>>, vector<1x128xf32>
    %36 = vector.broadcast %35 : vector<1x128xf32> to vector<128x128xf32>
    %37 = arith.mulf %36, %32 : vector<128x128xf32>
    %38 = arith.select %34, %32, %37 : vector<128x128xi1>, vector<128x128xf32>
    %39 = arith.truncf %38 : vector<128x128xf32> to vector<128x128xbf16>
    %c0_37 = arith.constant 0 : index
    %c0_38 = arith.constant 0 : index
    %c0_39 = arith.constant 0 : index
    %40 = vector.load %arg5[%c0_37, %c0_38, %c0_39] : memref<1x128x128xbf16, #tpu.memory_space<vmem>>, vector<1x128x128xbf16>
    %41 = vector.shape_cast %40 : vector<1x128x128xbf16> to vector<128x128xbf16>
    %42 = vector.shape_cast %39 : vector<128x128xbf16> to vector<1x128x128xbf16>
    tpu.vector_store %arg5[%c0_37, %c0_38, %c0_39], %42 {strides = array<i32>} : memref<1x128x128xbf16, #tpu.memory_space<vmem>>, vector<1x128x128xbf16>,
    return
  }
  func.func @transform_0(%arg0: i32) -> (i32, i32, i32) {
    %c0_i32 = arith.constant 0 : i32
    %c0_i32_0 = arith.constant 0 : i32
    %c0_i32_1 = arith.constant 0 : i32
    return %arg0, %c0_i32, %c0_i32_0 : i32, i32, i32
  }
  func.func @transform_1(%arg0: i32) -> (i32, i32) {
    %c0_i32 = arith.constant 0 : i32
    %c0_i32_0 = arith.constant 0 : i32
    %c0_i32_1 = arith.constant 0 : i32
    return %c0_i32, %c0_i32_0 : i32, i32
  }
  func.func @transform_2(%arg0: i32) -> (i32, i32) {
    %c0_i32 = arith.constant 0 : i32
    %c0_i32_0 = arith.constant 0 : i32
    %c0_i32_1 = arith.constant 0 : i32
    return %c0_i32, %c0_i32_0 : i32, i32
  }
  func.func @transform_3(%arg0: i32) -> (i32, i32) {
    %c0_i32 = arith.constant 0 : i32
    %c0_i32_0 = arith.constant 0 : i32
    %c0_i32_1 = arith.constant 0 : i32
    return %c0_i32, %c0_i32_0 : i32, i32
  }
  func.func @transform_4(%arg0: i32) -> (i32, i32, i32) {
    %c0_i32 = arith.constant 0 : i32
    %c0_i32_0 = arith.constant 0 : i32
    %c0_i32_1 = arith.constant 0 : i32
    return %arg0, %c0_i32, %c0_i32_0 : i32, i32, i32
  }
}

</mosaic_0001>

<llo_original>
// kernel: dense_projection.4
$region0: #{dense_projection.4}
  #allocation0 [shape = 'u32[]', space=smem, size = 0x4, offset = 0x4, fixed_abs, tag = 'smem constant byte address 0x4 - core index']
  #allocation1 [shape = 'u32[144,128]{1,0:T(1,128)}', space=vmem, size = 0x12000, scoped, tag = 'internal scratch']
  %s0 = inlined_call_operand.vmem [shape: bf16[128,8], index: 0, kind: input, shape index: {}]
  %s1 = inlined_call_operand.vmem [shape: bf16[8,128], index: 1, kind: input, shape index: {}]
  %s2 = inlined_call_operand.vmem [shape: f32[1,128], index: 2, kind: input, shape index: {}]
  %s3 = inlined_call_operand.vmem [shape: f32[1,128], index: 3, kind: input, shape index: {}]
  %s4 = inlined_call_operand.vmem [shape: bf16[128,128], index: 4, kind: output, shape index: {}]
  %s5 = sld [smem:[#allocation0]]
  $region26: #{dense_projection.4} parent=0
    _
  %s7 = ssub.s32 1, %s5
  %s8 = scalar_select 0, %s7, %s5
  // Predicated region
  $region2: #{dense_projection.4} parent=0 // pred_check
    _
  $region3: #{dense_projection.4} parent=0 // pred_check_branch
    %10 = sbr.rel (0) target = $region5
  $region4: #{dense_projection.4} parent=0 // pred_region
    _
  $region5: #{dense_projection.4} parent=0 // pred_fallthru
    _
  // Predicated region
  $region6: #{dense_projection.4} parent=0 // pred_check
    _
  $region7: #{dense_projection.4} parent=0 // pred_check_branch
    %12 = sbr.rel (0) target = $region9
  $region8: #{dense_projection.4} parent=0 // pred_region
    _
  $region9: #{dense_projection.4} parent=0 // pred_fallthru
    _
  // Predicated region
  $region10: #{dense_projection.4} parent=0 // pred_check
    _
  $region11: #{dense_projection.4} parent=0 // pred_check_branch
    %14 = sbr.rel (0) target = $region13
  $region12: #{dense_projection.4} parent=0 // pred_region
    _
  $region13: #{dense_projection.4} parent=0 // pred_fallthru
    _
  // Predicated region
  $region14: #{dense_projection.4} parent=0 // pred_check
    _
  $region15: #{dense_projection.4} parent=0 // pred_check_branch
    %16 = sbr.rel (0) target = $region17
  $region16: #{dense_projection.4} parent=0 // pred_region
    _
  $region17: #{dense_projection.4} parent=0 // pred_fallthru
    _
  %v18 = vld [vmem:[%s0] sm:$0xf]
  %v19 = vld [vmem:[%s0 + $0x4] sm:$0xf]
  %v20 = vld [vmem:[%s0 + $0x8] sm:$0xf]
  %v21 = vld [vmem:[%s0 + $0xc] sm:$0xf]
  %v22 = vld [vmem:[%s0 + $0x10] sm:$0xf]
  %v23 = vld [vmem:[%s0 + $0x14] sm:$0xf]
  %v24 = vld [vmem:[%s0 + $0x18] sm:$0xf]
  %v25 = vld [vmem:[%s0 + $0x1c] sm:$0xf]
  %v26 = vld [vmem:[%s0 + $0x20] sm:$0xf]
  %v27 = vld [vmem:[%s0 + $0x24] sm:$0xf]
  %v28 = vld [vmem:[%s0 + $0x28] sm:$0xf]
  %v29 = vld [vmem:[%s0 + $0x2c] sm:$0xf]
  %v30 = vld [vmem:[%s0 + $0x30] sm:$0xf]
  %v31 = vld [vmem:[%s0 + $0x34] sm:$0xf]
  %v32 = vld [vmem:[%s0 + $0x38] sm:$0xf]
  %v33 = vld [vmem:[%s0 + $0x3c] sm:$0xf]
  %v34 = vld [vmem:[%s1] sm:$0xf]
  %v35 = vld [vmem:[%s2] sm:$0x1]
  %v37 = vlaneseq
  %v38 = vshrl.u32 %v37, 7
  %v39 = vsub.s32 0, %v38
  %v40 = vrot.slane %v35, %v39
  %v58 = vunpack.c.l.b16 %v18
  %v59 = vunpack.c.l.b16 %v19
  %v60 = vunpack.c.l.b16 %v20
  %v61 = vunpack.c.l.b16 %v21
  %v62 = vunpack.c.l.b16 %v22
  %v63 = vunpack.c.l.b16 %v23
  %v64 = vunpack.c.l.b16 %v24
  %v65 = vunpack.c.l.b16 %v25
  %v66 = vunpack.c.l.b16 %v26
  %v67 = vunpack.c.l.b16 %v27
  %v68 = vunpack.c.l.b16 %v28
  %v69 = vunpack.c.l.b16 %v29
  %v70 = vunpack.c.l.b16 %v30
  %v71 = vunpack.c.l.b16 %v31
  %v72 = vunpack.c.l.b16 %v32
  %v73 = vunpack.c.l.b16 %v33
  %v74 = vpack.c.b16 %v59, %v58
  %v75 = vpack.c.b16 %v61, %v60
  %v76 = vpack.c.b16 %v63, %v62
  %v77 = vpack.c.b16 %v65, %v64
  %v78 = vpack.c.b16 %v67, %v66
  %v79 = vpack.c.b16 %v69, %v68
  %v80 = vpack.c.b16 %v71, %v70
  %v81 = vpack.c.b16 %v73, %v72
  %vm82 = vcmask 64512
  %v84 = vsel %vm82, %v74, 0
  %v87 = vsel %vm82, %v75, 0
  %v90 = vsel %vm82, %v76, 0
  %v93 = vsel %vm82, %v77, 0
  %v96 = vsel %vm82, %v78, 0
  %v99 = vsel %vm82, %v79, 0
  %v102 = vsel %vm82, %v80, 0
  %v105 = vsel %vm82, %v81, 0
  %vm107 = vcmask 1043456
  %v109 = vsel %vm107, %v34, 0
  %111 = vmatprep.subr.bf16.mxu0 0
  %112 = vmatpush1.bf16.msra.mxu0 0
  %113 = vmatprep.subr.bf16.mxu0 0
  %114 = vmatpush1.bf16.msra.mxu0 0
  %115 = vmatprep.subr.bf16.mxu0 0
  %116 = vmatpush1.bf16.msra.mxu0 0
  %117 = vmatprep.subr.bf16.mxu0 0
  %118 = vmatpush1.bf16.msra.mxu0 0
  %119 = vmatprep.subr.bf16.mxu0 0
  %120 = vmatpush1.bf16.msra.mxu0 0
  %121 = vmatprep.subr.bf16.mxu0 0
  %122 = vmatpush1.bf16.msra.mxu0 0
  %123 = vmatprep.subr.bf16.mxu0 0
  %124 = vmatpush1.bf16.msra.mxu0 0
  %125 = vmatprep.subr.bf16.mxu0 0
  %126 = vmatpush1.bf16.msra.mxu0 %v109
  %127 = vmatprep.subr.bf16.mxu0 0
  %128 = vmatpush2.bf16.msra.mxu0 0
  %129 = vmatprep.subr.bf16.mxu0 0
  %130 = vmatpush2.bf16.msra.mxu0 0
  %131 = vmatprep.subr.bf16.mxu0 0
  %132 = vmatpush2.bf16.msra.mxu0 0
  %133 = vmatprep.subr.bf16.mxu0 0
  %134 = vmatpush2.bf16.msra.mxu0 0
  %135 = vmatprep.subr.bf16.mxu0 0
  %136 = vmatpush2.bf16.msra.mxu0 0
  %137 = vmatprep.subr.bf16.mxu0 0
  %138 = vmatpush2.bf16.msra.mxu0 0
  %139 = vmatprep.subr.bf16.mxu0 0
  %140 = vmatpush2.bf16.msra.mxu0 0
  %141 = vmatprep.subr.bf16.mxu0 0
  %142 = vmatpush2.bf16.msra.mxu0 0
  %143 = vmatprep.mubr.bf16.mxu0 0
  %144 = vmatmul.mubr.bf16.gmra.mxu0 %v84
  %v145 = vpop.f32.mrf.mxu0
  %v146 = vadd.f32 %v40, %v145
  %v147 = vpop.f32.mrf.mxu0
  %v148 = vpop.f32.mrf.mxu0
  %v149 = vadd.f32 %v40, %v148
  %v150 = vpop.f32.mrf.mxu0
  %151 = vmatprep.mubr.bf16.mxu0 0
  %152 = vmatmul.mubr.bf16.gmra.mxu0 %v87
  %v153 = vpop.f32.mrf.mxu0
  %v154 = vadd.f32 %v40, %v153
  %v155 = vpop.f32.mrf.mxu0
  %v156 = vpop.f32.mrf.mxu0
  %v157 = vadd.f32 %v40, %v156
  %v158 = vpop.f32.mrf.mxu0
  %159 = vmatprep.mubr.bf16.mxu0 0
  %160 = vmatmul.mubr.bf16.gmra.mxu0 %v90
  %v161 = vpop.f32.mrf.mxu0
  %v162 = vadd.f32 %v40, %v161
  %v163 = vpop.f32.mrf.mxu0
  %v164 = vpop.f32.mrf.mxu0
  %v165 = vadd.f32 %v40, %v164
  %v166 = vpop.f32.mrf.mxu0
  %167 = vmatprep.mubr.bf16.mxu0 0
  %168 = vmatmul.mubr.bf16.gmra.mxu0 %v93
  %v169 = vpop.f32.mrf.mxu0
  %v170 = vadd.f32 %v40, %v169
  %v171 = vpop.f32.mrf.mxu0
  %v172 = vpop.f32.mrf.mxu0
  %v173 = vadd.f32 %v40, %v172
  %v174 = vpop.f32.mrf.mxu0
  %175 = vmatprep.mubr.bf16.mxu0 0
  %176 = vmatmul.mubr.bf16.gmra.mxu0 %v96
  %v177 = vpop.f32.mrf.mxu0
  %v178 = vadd.f32 %v40, %v177
  %v179 = vpop.f32.mrf.mxu0
  %v180 = vpop.f32.mrf.mxu0
  %v181 = vadd.f32 %v40, %v180
  %v182 = vpop.f32.mrf.mxu0
  %183 = vmatprep.mubr.bf16.mxu0 0
  %184 = vmatmul.mubr.bf16.gmra.mxu0 %v99
  %v185 = vpop.f32.mrf.mxu0
  %v186 = vadd.f32 %v40, %v185
  %v187 = vpop.f32.mrf.mxu0
  %v188 = vpop.f32.mrf.mxu0
  %v189 = vadd.f32 %v40, %v188
  %v190 = vpop.f32.mrf.mxu0
  %191 = vmatprep.mubr.bf16.mxu0 0
  %192 = vmatmul.mubr.bf16.gmra.mxu0 %v102
  %v193 = vpop.f32.mrf.mxu0
  %v194 = vadd.f32 %v40, %v193
  %v195 = vpop.f32.mrf.mxu0
  %v196 = vpop.f32.mrf.mxu0
  %v197 = vadd.f32 %v40, %v196
  %v198 = vpop.f32.mrf.mxu0
  %199 = vmatprep.mubr.bf16.mxu0 0
  %200 = vmatmul.mubr.bf16.gmra.mxu0 %v105
  %v201 = vpop.f32.mrf.mxu0
  %v202 = vadd.f32 %v40, %v201
  %v203 = vpop.f32.mrf.mxu0
  %v204 = vpop.f32.mrf.mxu0
  %v205 = vadd.f32 %v40, %v204
  %v206 = vpop.f32.mrf.mxu0
  %207 = vdwg.mxu0
  %vm208 = vcmp.gt.f32.partialorder %v146, 0.0
  %vm209 = vcmp.gt.f32.partialorder %v149, 0.0
  %vm210 = vcmp.gt.f32.partialorder %v154, 0.0
  %vm211 = vcmp.gt.f32.partialorder %v157, 0.0
  %vm212 = vcmp.gt.f32.partialorder %v162, 0.0
  %vm213 = vcmp.gt.f32.partialorder %v165, 0.0
  %vm214 = vcmp.gt.f32.partialorder %v170, 0.0
  %vm215 = vcmp.gt.f32.partialorder %v173, 0.0
  %vm216 = vcmp.gt.f32.partialorder %v178, 0.0
  %vm217 = vcmp.gt.f32.partialorder %v181, 0.0
  %vm218 = vcmp.gt.f32.partialorder %v186, 0.0
  %vm219 = vcmp.gt.f32.partialorder %v189, 0.0
  %vm220 = vcmp.gt.f32.partialorder %v194, 0.0
  %vm221 = vcmp.gt.f32.partialorder %v197, 0.0
  %vm222 = vcmp.gt.f32.partialorder %v202, 0.0
  %vm223 = vcmp.gt.f32.partialorder %v205, 0.0
  %v224 = vld [vmem:[%s3] sm:$0x1]
  %v226 = vlaneseq
  %v227 = vshrl.u32 %v226, 7
  %v228 = vsub.s32 0, %v227
  %v229 = vrot.slane %v224, %v228
  %v231 = vmul.f32 %v229, %v146
  %v232 = vmul.f32 %v229, %v149
  %v233 = vmul.f32 %v229, %v154
  %v234 = vmul.f32 %v229, %v157
  %v235 = vmul.f32 %v229, %v162
  %v236 = vmul.f32 %v229, %v165
  %v237 = vmul.f32 %v229, %v170
  %v238 = vmul.f32 %v229, %v173
  %v239 = vmul.f32 %v229, %v178
  %v240 = vmul.f32 %v229, %v181
  %v241 = vmul.f32 %v229, %v186
  %v242 = vmul.f32 %v229, %v189
  %v243 = vmul.f32 %v229, %v194
  %v244 = vmul.f32 %v229, %v197
  %v245 = vmul.f32 %v229, %v202
  %v246 = vmul.f32 %v229, %v205
  %v247 = vsel %vm208, %v146, %v231
  %v248 = vsel %vm209, %v149, %v232
  %v249 = vsel %vm210, %v154, %v233
  %v250 = vsel %vm211, %v157, %v234
  %v251 = vsel %vm212, %v162, %v235
  %v252 = vsel %vm213, %v165, %v236
  %v253 = vsel %vm214, %v170, %v237
  %v254 = vsel %vm215, %v173, %v238
  %v255 = vsel %vm216, %v178, %v239
  %v256 = vsel %vm217, %v181, %v240
  %v257 = vsel %vm218, %v186, %v241
  %v258 = vsel %vm219, %v189, %v242
  %v259 = vsel %vm220, %v194, %v243
  %v260 = vsel %vm221, %v197, %v244
  %v261 = vsel %vm222, %v202, %v245
  %v262 = vsel %vm223, %v205, %v246
  %v263 = vpack.c.bf16 %v248, %v247
  %v264 = vpack.c.bf16 %v250, %v249
  %v265 = vpack.c.bf16 %v252, %v251
  %v266 = vpack.c.bf16 %v254, %v253
  %v267 = vpack.c.bf16 %v256, %v255
  %v268 = vpack.c.bf16 %v258, %v257
  %v269 = vpack.c.bf16 %v260, %v259
  %v270 = vpack.c.bf16 %v262, %v261
  %v279 = vunpack.c.l.b16 %v263
  %v280 = vunpack.c.h.b16 %v263
  %v281 = vunpack.c.l.b16 %v264
  %v282 = vunpack.c.h.b16 %v264
  %v283 = vunpack.c.l.b16 %v265
  %v284 = vunpack.c.h.b16 %v265
  %v285 = vunpack.c.l.b16 %v266
  %v286 = vunpack.c.h.b16 %v266
  %v287 = vunpack.c.l.b16 %v267
  %v288 = vunpack.c.h.b16 %v267
  %v289 = vunpack.c.l.b16 %v268
  %v290 = vunpack.c.h.b16 %v268
  %v291 = vunpack.c.l.b16 %v269
  %v292 = vunpack.c.h.b16 %v269
  %v293 = vunpack.c.l.b16 %v270
  %v294 = vunpack.c.h.b16 %v270
  %v295 = vpack.c.b16 %v279, %v279
  %v296 = vpack.c.b16 %v280, %v280
  %v297 = vpack.c.b16 %v281, %v281
  %v298 = vpack.c.b16 %v282, %v282
  %v299 = vpack.c.b16 %v283, %v283
  %v300 = vpack.c.b16 %v284, %v284
  %v301 = vpack.c.b16 %v285, %v285
  %v302 = vpack.c.b16 %v286, %v286
  %v303 = vpack.c.b16 %v287, %v287
  %v304 = vpack.c.b16 %v288, %v288
  %v305 = vpack.c.b16 %v289, %v289
  %v306 = vpack.c.b16 %v290, %v290
  %v307 = vpack.c.b16 %v291, %v291
  %v308 = vpack.c.b16 %v292, %v292
  %v309 = vpack.c.b16 %v293, %v293
  %v310 = vpack.c.b16 %v294, %v294
  %327 = vst [vmem:[%s4] sm:$0xf] %v295
  %328 = vst [vmem:[%s4 + $0x4] sm:$0xf] %v296
  %329 = vst [vmem:[%s4 + $0x8] sm:$0xf] %v297
  %330 = vst [vmem:[%s4 + $0xc] sm:$0xf] %v298
  %331 = vst [vmem:[%s4 + $0x10] sm:$0xf] %v299
  %332 = vst [vmem:[%s4 + $0x14] sm:$0xf] %v300
  %333 = vst [vmem:[%s4 + $0x18] sm:$0xf] %v301
  %334 = vst [vmem:[%s4 + $0x1c] sm:$0xf] %v302
  %335 = vst [vmem:[%s4 + $0x20] sm:$0xf] %v303
  %336 = vst [vmem:[%s4 + $0x24] sm:$0xf] %v304
  %337 = vst [vmem:[%s4 + $0x28] sm:$0xf] %v305
  %338 = vst [vmem:[%s4 + $0x2c] sm:$0xf] %v306
  %339 = vst [vmem:[%s4 + $0x30] sm:$0xf] %v307
  %340 = vst [vmem:[%s4 + $0x34] sm:$0xf] %v308
  %341 = vst [vmem:[%s4 + $0x38] sm:$0xf] %v309
  %342 = vst [vmem:[%s4 + $0x3c] sm:$0xf] %v310
  // Predicated region
  $region18: #{dense_projection.4} parent=0 // pred_check
    _
  $region19: #{dense_projection.4} parent=0 // pred_check_branch
    %344 = sbr.rel (0) target = $region21
  $region20: #{dense_projection.4} parent=0 // pred_region
    _
  $region21: #{dense_projection.4} parent=0 // pred_fallthru
    _
  // Predicated region
  $region22: #{dense_projection.4} parent=0 // pred_check
    _
  $region23: #{dense_projection.4} parent=0 // pred_check_branch
    %346 = sbr.rel (0) target = $region25
  $region24: #{dense_projection.4} parent=0 // pred_region
    _
  $region25: #{dense_projection.4} parent=0 // pred_fallthru
    _

// kernel: dense_projection.5
$region0: #{dense_projection.5}
  #allocation0 [shape = 'u32[]', space=smem, size = 0x4, offset = 0x4, fixed_abs, tag = 'smem constant byte address 0x4 - core index']
  #allocation1 [shape = 'u32[144,128]{1,0:T(1,128)}', space=vmem, size = 0x12000, scoped, tag = 'internal scratch']
  #allocation2 [shape = 'bf16[128,1152]{1,0:T(8,128)(2,1)}', space=vmem, size = 0x48000, scoped, tag = 'scratch operand']
  %s0 = inlined_call_operand.vmem [shape: bf16[2,176,128], index: 0, kind: input, shape index: {}]
  %s1 = inlined_call_operand.vmem [shape: bf16[1152,128], index: 1, kind: input, shape index: {}]
  %s2 = inlined_call_operand.vmem [shape: f32[1,128], index: 2, kind: input, shape index: {}]
  %s3 = inlined_call_operand.vmem [shape: f32[1,128], index: 3, kind: input, shape index: {}]
  %s4 = inlined_call_operand.vmem [shape: bf16[2,128,128], index: 4, kind: output, shape index: {}]
  %s5 = sld [smem:[#allocation0]]
  $region49: #{dense_projection.5} parent=0
    _
  %s7 = ssub.s32 1, %s5
  %s8 = scalar_select 0, %s7, %s5
  loop: start=0, step=1, limit=4
  $region2: #{dense_projection.5} parent=0 // loop_pre_header
    _
  $region3: #{dense_projection.5} parent=0 // loop_header
    %s10 = sphi 0, %s14
    %p11 = scmp.ge.s32.totalorder %s10, 4
    %s20 = sphi 0, %s22
    %s23 = sphi 0, %s20
    %s24 = sphi 0, %s23
    %s40 = sphi 0, %s24
    %s44 = sphi 0, %s44
    %s46 = sphi 0, %s44
    %s47 = sphi 0, %s46
    %s61 = sphi 0, %s47
    %s65 = sphi 0, %s65
    %s67 = sphi 0, %s65
    %s68 = sphi 0, %s67
    %s82 = sphi 0, %s68
    %s86 = sphi 0, %s86
    %s88 = sphi 0, %s86
    %s89 = sphi 0, %s88
    %s103 = sphi 0, %s89
    %s109 = sphi 0, %s111
    %s112 = sphi 0, %s109
    %s113 = sphi 0, %s112
    %s129 = sphi 0, %s113
  $region4: #{dense_projection.5} parent=0 // loop_header_branch
    %13 = sbr.rel (%p11) target = $region8
  $region5: #{dense_projection.5} parent=0 // loop_body
    %s15 = ssub.s32 %s10, 1
    %s16 = ssub.s32 %s10, 2
    %s17 = sadd.s32 %s10, 1
    %s18 = ssub.s32 %s10, %s17
    %p19 = scmp.eq.s32.totalorder %s18, 0
    %s21 = sadd.s32 %s20, 1
    %s22 = scalar_select %p19, %s20, %s21
    %p25 = pneg %p19
    %p26 = scmp.eq.s32.totalorder %s10, 1
    %p27 = por %p25, %p26
    %p28 = scmp.ne.s32.totalorder %s20, %s23
    %p29 = scmp.eq.s32.totalorder %s10, 0
    %p30 = por %p28, %p29
    %p31 = scmp.ne.s32.totalorder %s20, %s23
    %p32 = scmp.eq.s32.totalorder %s15, 1
    %p33 = por %p31, %p32
    %p34 = scmp.ne.s32.totalorder %s23, %s24
    %p35 = scmp.eq.s32.totalorder %s15, 0
    %p36 = por %p34, %p35
    %p37 = scmp.ne.s32.totalorder %s23, %s24
    %p38 = scmp.eq.s32.totalorder %s16, 1
    %p39 = por %p37, %p38
    %p41 = scmp.ne.s32.totalorder %s24, %s40
    %p42 = scmp.eq.s32.totalorder %s16, 0
    %p43 = por %p41, %p42
    %s45 = sadd.s32 %s44, 1
    %p48 = scmp.eq.s32.totalorder %s10, 1
    %p49 = scmp.ne.s32.totalorder %s44, %s46
    %p50 = scmp.eq.s32.totalorder %s10, 0
    %p51 = por %p49, %p50
    %p52 = scmp.ne.s32.totalorder %s44, %s46
    %p53 = scmp.eq.s32.totalorder %s15, 1
    %p54 = por %p52, %p53
    %p55 = scmp.ne.s32.totalorder %s46, %s47
    %p56 = scmp.eq.s32.totalorder %s15, 0
    %p57 = por %p55, %p56
    %p58 = scmp.ne.s32.totalorder %s46, %s47
    %p59 = scmp.eq.s32.totalorder %s16, 1
    %p60 = por %p58, %p59
    %p62 = scmp.ne.s32.totalorder %s47, %s61
    %p63 = scmp.eq.s32.totalorder %s16, 0
    %p64 = por %p62, %p63
    %s66 = sadd.s32 %s65, 1
    %p69 = scmp.eq.s32.totalorder %s10, 1
    %p70 = scmp.ne.s32.totalorder %s65, %s67
    %p71 = scmp.eq.s32.totalorder %s10, 0
    %p72 = por %p70, %p71
    %p73 = scmp.ne.s32.totalorder %s65, %s67
    %p74 = scmp.eq.s32.totalorder %s15, 1
    %p75 = por %p73, %p74
    %p76 = scmp.ne.s32.totalorder %s67, %s68
    %p77 = scmp.eq.s32.totalorder %s15, 0
    %p78 = por %p76, %p77
    %p79 = scmp.ne.s32.totalorder %s67, %s68
    %p80 = scmp.eq.s32.totalorder %s16, 1
    %p81 = por %p79, %p80
    %p83 = scmp.ne.s32.totalorder %s68, %s82
    %p84 = scmp.eq.s32.totalorder %s16, 0
    %p85 = por %p83, %p84
    %s87 = sadd.s32 %s86, 1
    %p90 = scmp.eq.s32.totalorder %s10, 1
    %p91 = scmp.ne.s32.totalorder %s86, %s88
    %p92 = scmp.eq.s32.totalorder %s10, 0
    %p93 = por %p91, %p92
    %p94 = scmp.ne.s32.totalorder %s86, %s88
    %p95 = scmp.eq.s32.totalorder %s15, 1
    %p96 = por %p94, %p95
    %p97 = scmp.ne.s32.totalorder %s88, %s89
    %p98 = scmp.eq.s32.totalorder %s15, 0
    %p99 = por %p97, %p98
    %p100 = scmp.ne.s32.totalorder %s88, %s89
    %p101 = scmp.eq.s32.totalorder %s16, 1
    %p102 = por %p100, %p101
    %p104 = scmp.ne.s32.totalorder %s89, %s103
    %p105 = scmp.eq.s32.totalorder %s16, 0
    %p106 = por %p104, %p105
    %s107 = ssub.s32 %s10, %s17
    %p108 = scmp.eq.s32.totalorder %s107, 0
    %s110 = sadd.s32 %s109, 1
    %s111 = scalar_select %p108, %s109, %s110
    %p114 = pneg %p108
    %p115 = scmp.eq.s32.totalorder %s10, 1
    %p116 = por %p114, %p115
    %p117 = scmp.ne.s32.totalorder %s109, %s112
    %p118 = scmp.eq.s32.totalorder %s10, 0
    %p119 = por %p117, %p118
    %p120 = scmp.ne.s32.totalorder %s109, %s112
    %p121 = scmp.eq.s32.totalorder %s15, 1
    %p122 = por %p120, %p121
    %p123 = scmp.ne.s32.totalorder %s112, %s113
    %p124 = scmp.eq.s32.totalorder %s15, 0
    %p125 = por %p123, %p124
    %p126 = scmp.ne.s32.totalorder %s112, %s113
    %p127 = scmp.eq.s32.totalorder %s16, 1
    %p128 = por %p126, %p127
    %p130 = scmp.ne.s32.totalorder %s113, %s129
    %p131 = scmp.eq.s32.totalorder %s16, 0
    %p132 = por %p130, %p131
    %p133 = scmp.le.s32.totalorder 1, %s10
    %p134 = scmp.lt.s32.totalorder %s10, 3
    %p135 = pnand %p133, %p134
    %p136 = pneg %p135
    // Predicated region
    $region9: #{dense_projection.5} parent=5 // pred_check
      _
    $region10: #{dense_projection.5} parent=5 // pred_check_branch
      %138 = sbr.rel (%p135) target = $region12
    $region11: #{dense_projection.5} parent=5 // pred_region
      %s139 = ssub.s32 %s10, 1
      // Predicated region
      $region13: #{dense_projection.5} parent=11 // pred_check
        %p140 = pneg %p57
      $region14: #{dense_projection.5} parent=11 // pred_check_branch
        %142 = sbr.rel (%p140) target = $region16
      $region15: #{dense_projection.5} parent=11 // pred_region
        _
      $region16: #{dense_projection.5} parent=11 // pred_fallthru
        _
      // Predicated region
      $region17: #{dense_projection.5} parent=11 // pred_check
        %p143 = pneg %p78
      $region18: #{dense_projection.5} parent=11 // pred_check_branch
        %145 = sbr.rel (%p143) target = $region20
      $region19: #{dense_projection.5} parent=11 // pred_region
        _
      $region20: #{dense_projection.5} parent=11 // pred_fallthru
        _
      // Predicated region
      $region21: #{dense_projection.5} parent=11 // pred_check
        %p146 = pneg %p99
      $region22: #{dense_projection.5} parent=11 // pred_check_branch
        %148 = sbr.rel (%p146) target = $region24
      $region23: #{dense_projection.5} parent=11 // pred_region
        _
      $region24: #{dense_projection.5} parent=11 // pred_fallthru
        _
    $region12: #{dense_projection.5} parent=5 // pred_fallthru
      _
    %p149 = scmp.lt.s32.totalorder %s10, 2
    // Predicated region
    $region25: #{dense_projection.5} parent=5 // pred_check
      %p150 = pneg %p149
    $region26: #{dense_projection.5} parent=5 // pred_check_branch
      %152 = sbr.rel (%p150) target = $region28
    $region27: #{dense_projection.5} parent=5 // pred_region
      // Predicated region
      $region29: #{dense_projection.5} parent=27 // pred_check
        %p153 = pneg %p30
      $region30: #{dense_projection.5} parent=27 // pred_check_branch
        %155 = sbr.rel (%p153) target = $region32
      $region31: #{dense_projection.5} parent=27 // pred_region
        %p156 = scmp.lt.s32.totalorder %s10, 1
        %s157 = scalar_select %p156, %s10, 1
        %s158 = smul.addr %s157, 22
        %s159 = smul.addr %s158, 4
        %s160 = scalar_lea.vmem %s0, %s159
      $region32: #{dense_projection.5} parent=27 // pred_fallthru
        _
    $region28: #{dense_projection.5} parent=5 // pred_fallthru
      _
    %p161 = scmp.le.s32.totalorder 1, %s10
    %p162 = scmp.lt.s32.totalorder %s10, 3
    %p163 = pnand %p161, %p162
    %p164 = pneg %p163
    // Predicated region
    $region33: #{dense_projection.5} parent=5 // pred_check
      _
    $region34: #{dense_projection.5} parent=5 // pred_check_branch
      %166 = sbr.rel (%p163) target = $region36
    $region35: #{dense_projection.5} parent=5 // pred_region
      %s167 = ssub.s32 %s10, 1
      %p168 = scmp.lt.s32.totalorder %s15, 1
      %s169 = scalar_select %p168, %s15, 1
      %s170 = smul.addr %s169, 22
      %s171 = smul.addr %s170, 4
      %s172 = scalar_lea.vmem %s0, %s171
      %p173 = pneg %p36
      %p174 = pneg %p33
      %p175 = pneg %p57
      %p176 = pneg %p54
      %p177 = pneg %p78
      %p178 = pneg %p75
      %p179 = pneg %p99
      %p180 = pneg %p96
      %p181 = pneg %p125
      %p182 = pneg %p122
      %p183 = scmp.lt.s32.totalorder %s15, 1
      %s184 = scalar_select %p183, %s15, 1
      %s185 = smul.addr %s184, 16
      %s186 = smul.addr %s185, 4
      %s187 = scalar_lea.vmem %s4, %s186
      %p188 = scmp.lt.s32.totalorder %s15, 1
      %s189 = scalar_select %p188, %s15, 1
      %s190 = smul.addr %s189, 22
      %s191 = smul.addr %s190, 4
      %s192 = scalar_lea.vmem %s0, %s191
      %p193 = scmp.lt.s32.totalorder %s15, 1
      %s194 = scalar_select %p193, %s15, 1
      %s195 = smul.addr %s194, 16
      %s196 = smul.addr %s195, 4
      %s197 = scalar_lea.vmem %s4, %s196
      %v199 = vld [vmem:[%s192] sm:$0xf]
      %v200 = vld [vmem:[%s192 + $0x4] sm:$0xf]
      %v201 = vld [vmem:[%s192 + $0x8] sm:$0xf]
      %v202 = vld [vmem:[%s192 + $0xc] sm:$0xf]
      %v203 = vld [vmem:[%s192 + $0x10] sm:$0xf]
      %v204 = vld [vmem:[%s192 + $0x14] sm:$0xf]
      %v205 = vld [vmem:[%s192 + $0x18] sm:$0xf]
      %v206 = vld [vmem:[%s192 + $0x1c] sm:$0xf]
      %v207 = vld [vmem:[%s192 + $0x20] sm:$0xf]
      %v208 = vld [vmem:[%s192 + $0x24] sm:$0xf]
      %v209 = vld [vmem:[%s192 + $0x28] sm:$0xf]
      %v210 = vld [vmem:[%s192 + $0x2c] sm:$0xf]
      %v211 = vld [vmem:[%s192 + $0x30] sm:$0xf]
      %v212 = vld [vmem:[%s192 + $0x34] sm:$0xf]
      %v213 = vld [vmem:[%s192 + $0x38] sm:$0xf]
      %v214 = vld [vmem:[%s192 + $0x3c] sm:$0xf]
      %215 = vst [vmem:[#allocation2] sm:$0xf] %v199
      %216 = vst [vmem:[#allocation2 + $0x24] sm:$0xf] %v200
      %217 = vst [vmem:[#allocation2 + $0x48] sm:$0xf] %v201
      %218 = vst [vmem:[#allocation2 + $0x6c] sm:$0xf] %v202
      %219 = vst [vmem:[#allocation2 + $0x90] sm:$0xf] %v203
      %220 = vst [vmem:[#allocation2 + $0xb4] sm:$0xf] %v204
      %221 = vst [vmem:[#allocation2 + $0xd8] sm:$0xf] %v205
      %222 = vst [vmem:[#allocation2 + $0xfc] sm:$0xf] %v206
      %223 = vst [vmem:[#allocation2 + $0x120] sm:$0xf] %v207
      %224 = vst [vmem:[#allocation2 + $0x144] sm:$0xf] %v208
      %225 = vst [vmem:[#allocation2 + $0x168] sm:$0xf] %v209
      %226 = vst [vmem:[#allocation2 + $0x18c] sm:$0xf] %v210
      %227 = vst [vmem:[#allocation2 + $0x1b0] sm:$0xf] %v211
      %228 = vst [vmem:[#allocation2 + $0x1d4] sm:$0xf] %v212
      %229 = vst [vmem:[#allocation2 + $0x1f8] sm:$0xf] %v213
      %230 = vst [vmem:[#allocation2 + $0x21c] sm:$0xf] %v214
      %v231 = vld [vmem:[%s192] sm:$0xf]
      %v232 = vld [vmem:[%s192 + $0x4] sm:$0xf]
      %v233 = vld [vmem:[%s192 + $0x8] sm:$0xf]
      %v234 = vld [vmem:[%s192 + $0xc] sm:$0xf]
      %v235 = vld [vmem:[%s192 + $0x10] sm:$0xf]
      %v236 = vld [vmem:[%s192 + $0x14] sm:$0xf]
      %v237 = vld [vmem:[%s192 + $0x18] sm:$0xf]
      %v238 = vld [vmem:[%s192 + $0x1c] sm:$0xf]
      %v239 = vld [vmem:[%s192 + $0x20] sm:$0xf]
      %v240 = vld [vmem:[%s192 + $0x24] sm:$0xf]
      %v241 = vld [vmem:[%s192 + $0x28] sm:$0xf]
      %v242 = vld [vmem:[%s192 + $0x2c] sm:$0xf]
      %v243 = vld [vmem:[%s192 + $0x30] sm:$0xf]
      %v244 = vld [vmem:[%s192 + $0x34] sm:$0xf]
      %v245 = vld [vmem:[%s192 + $0x38] sm:$0xf]
      %v246 = vld [vmem:[%s192 + $0x3c] sm:$0xf]
      %v247 = vld [vmem:[%s192 + $0x40] sm:$0x1]
      %vm248 = vsmask.f32 3328
      %vm249 = vsmask.f32 7440
      %vm250 = vmor %vm248, %vm249
      %v252 = vshrl.u32 %v231, 16
      %v254 = vrot.slane %v252, 4
      %v255 = vshll.u32 %v231, 16
      %v257 = vrot.slane %v255, 5
      %v258 = vor.u32 %v254, %v257
      %v259 = vrot.slane %v258, 4
      %v261 = vshll.u32 %v232, 16
      %v263 = vrot.slane %v261, 5
      %v264 = vsel %vm250, %v259, %v263
      %v265 = vshrl.u32 %v232, 16
      %v267 = vrot.slane %v265, 4
      %v268 = vor.u32 %v267, %v263
      %v269 = vrot.slane %v268, 4
      %v271 = vshll.u32 %v233, 16
      %v273 = vrot.slane %v271, 5
      %v274 = vsel %vm250, %v269, %v273
      %v275 = vshrl.u32 %v233, 16
      %v277 = vrot.slane %v275, 4
      %v278 = vor.u32 %v277, %v273
      %v279 = vrot.slane %v278, 4
      %v281 = vshll.u32 %v234, 16
      %v283 = vrot.slane %v281, 5
      %v284 = vsel %vm250, %v279, %v283
      %v285 = vshrl.u32 %v234, 16
      %v287 = vrot.slane %v285, 4
      %v288 = vor.u32 %v287, %v283
      %v289 = vrot.slane %v288, 4
      %v291 = vshll.u32 %v235, 16
      %v293 = vrot.slane %v291, 5
      %v294 = vsel %vm250, %v289, %v293
      %v295 = vshrl.u32 %v235, 16
      %v297 = vrot.slane %v295, 4
      %v298 = vor.u32 %v297, %v293
      %v299 = vrot.slane %v298, 4
      %v301 = vshll.u32 %v236, 16
      %v303 = vrot.slane %v301, 5
      %v304 = vsel %vm250, %v299, %v303
      %v305 = vshrl.u32 %v236, 16
      %v307 = vrot.slane %v305, 4
      %v308 = vor.u32 %v307, %v303
      %v309 = vrot.slane %v308, 4
      %v311 = vshll.u32 %v237, 16
      %v313 = vrot.slane %v311, 5
      %v314 = vsel %vm250, %v309, %v313
      %v315 = vshrl.u32 %v237, 16
      %v317 = vrot.slane %v315, 4
      %v318 = vor.u32 %v317, %v313
      %v319 = vrot.slane %v318, 4
      %v321 = vshll.u32 %v238, 16
      %v323 = vrot.slane %v321, 5
      %v324 = vsel %vm250, %v319, %v323
      %v325 = vshrl.u32 %v238, 16
      %v327 = vrot.slane %v325, 4
      %v328 = vor.u32 %v327, %v323
      %v329 = vrot.slane %v328, 4
      %v331 = vshll.u32 %v239, 16
      %v333 = vrot.slane %v331, 5
      %v334 = vsel %vm250, %v329, %v333
      %v335 = vshrl.u32 %v239, 16
      %v337 = vrot.slane %v335, 4
      %v338 = vor.u32 %v337, %v333
      %v339 = vrot.slane %v338, 4
      %v341 = vshll.u32 %v240, 16
      %v343 = vrot.slane %v341, 5
      %v344 = vsel %vm250, %v339, %v343
      %v345 = vshrl.u32 %v240, 16
      %v347 = vrot.slane %v345, 4
      %v348 = vor.u32 %v347, %v343
      %v349 = vrot.slane %v348, 4
      %v351 = vshll.u32 %v241, 16
      %v353 = vrot.slane %v351, 5
      %v354 = vsel %vm250, %v349, %v353
      %v355 = vshrl.u32 %v241, 16
      %v357 = vrot.slane %v355, 4
      %v358 = vor.u32 %v357, %v353
      %v359 = vrot.slane %v358, 4
      %v361 = vshll.u32 %v242, 16
      %v363 = vrot.slane %v361, 5
      %v364 = vsel %vm250, %v359, %v363
      %v365 = vshrl.u32 %v242, 16
      %v367 = vrot.slane %v365, 4
      %v368 = vor.u32 %v367, %v363
      %v369 = vrot.slane %v368, 4
      %v371 = vshll.u32 %v243, 16
      %v373 = vrot.slane %v371, 5
      %v374 = vsel %vm250, %v369, %v373
      %v375 = vshrl.u32 %v243, 16
      %v377 = vrot.slane %v375, 4
      %v378 = vor.u32 %v377, %v373
      %v379 = vrot.slane %v378, 4
      %v381 = vshll.u32 %v244, 16
      %v383 = vrot.slane %v381, 5
      %v384 = vsel %vm250, %v379, %v383
      %v385 = vshrl.u32 %v244, 16
      %v387 = vrot.slane %v385, 4
      %v388 = vor.u32 %v387, %v383
      %v389 = vrot.slane %v388, 4
      %v391 = vshll.u32 %v245, 16
      %v393 = vrot.slane %v391, 5
      %v394 = vsel %vm250, %v389, %v393
      %v395 = vshrl.u32 %v245, 16
      %v397 = vrot.slane %v395, 4
      %v398 = vor.u32 %v397, %v393
      %v399 = vrot.slane %v398, 4
      %v401 = vshll.u32 %v246, 16
      %v403 = vrot.slane %v401, 5
      %v404 = vsel %vm250, %v399, %v403
      %v405 = vshrl.u32 %v246, 16
      %v407 = vrot.slane %v405, 4
      %v408 = vor.u32 %v407, %v403
      %v409 = vrot.slane %v408, 4
      %v411 = vshll.u32 %v247, 16
      %v413 = vrot.slane %v411, 5
      %v414 = vsel %vm250, %v409, %v413
      %431 = vst [vmem:[#allocation2 + $0x4] sm:$0xf] %v264
      %432 = vst [vmem:[#allocation2 + $0x28] sm:$0xf] %v274
      %433 = vst [vmem:[#allocation2 + $0x4c] sm:$0xf] %v284
      %434 = vst [vmem:[#allocation2 + $0x70] sm:$0xf] %v294
      %435 = vst [vmem:[#allocation2 + $0x94] sm:$0xf] %v304
      %436 = vst [vmem:[#allocation2 + $0xb8] sm:$0xf] %v314
      %437 = vst [vmem:[#allocation2 + $0xdc] sm:$0xf] %v324
      %438 = vst [vmem:[#allocation2 + $0x100] sm:$0xf] %v334
      %439 = vst [vmem:[#allocation2 + $0x124] sm:$0xf] %v344
      %440 = vst [vmem:[#allocation2 + $0x148] sm:$0xf] %v354
      %441 = vst [vmem:[#allocation2 + $0x16c] sm:$0xf] %v364
      %442 = vst [vmem:[#allocation2 + $0x190] sm:$0xf] %v374
      %443 = vst [vmem:[#allocation2 + $0x1b4] sm:$0xf] %v384
      %444 = vst [vmem:[#allocation2 + $0x1d8] sm:$0xf] %v394
      %445 = vst [vmem:[#allocation2 + $0x1fc] sm:$0xf] %v404
      %446 = vst [vmem:[#allocation2 + $0x220] sm:$0xf] %v414
      %v447 = vld [vmem:[%s192] sm:$0xe]
      %v448 = vld [vmem:[%s192 + $0x4] sm:$0xf]
      %v449 = vld [vmem:[%s192 + $0x8] sm:$0xf]
      %v450 = vld [vmem:[%s192 + $0xc] sm:$0xf]
      %v451 = vld [vmem:[%s192 + $0x10] sm:$0xf]
      %v452 = vld [vmem:[%s192 + $0x14] sm:$0xf]
      %v453 = vld [vmem:[%s192 + $0x18] sm:$0xf]
      %v454 = vld [vmem:[%s192 + $0x1c] sm:$0xf]
      %v455 = vld [vmem:[%s192 + $0x20] sm:$0xf]
      %v456 = vld [vmem:[%s192 + $0x24] sm:$0xf]
      %v457 = vld [vmem:[%s192 + $0x28] sm:$0xf]
      %v458 = vld [vmem:[%s192 + $0x2c] sm:$0xf]
      %v459 = vld [vmem:[%s192 + $0x30] sm:$0xf]
      %v460 = vld [vmem:[%s192 + $0x34] sm:$0xf]
      %v461 = vld [vmem:[%s192 + $0x38] sm:$0xf]
      %v462 = vld [vmem:[%s192 + $0x3c] sm:$0xf]
      %v463 = vld [vmem:[%s192 + $0x40] sm:$0x1]
      %vm481 = vcmask 1042432
      %vm482 = vcmask 1046532
      %vm483 = vmor %vm481, %vm482
      %v484 = vrot.slane %v447, 5
      %v485 = vrot.slane %v484, 4
      %v486 = vrot.slane %v448, 5
      %v487 = vsel %vm483, %v485, %v486
      %v488 = vrot.slane %v486, 4
      %v489 = vrot.slane %v449, 5
      %v490 = vsel %vm483, %v488, %v489
      %v491 = vrot.slane %v489, 4
      %v492 = vrot.slane %v450, 5
      %v493 = vsel %vm483, %v491, %v492
      %v494 = vrot.slane %v492, 4
      %v495 = vrot.slane %v451, 5
      %v496 = vsel %vm483, %v494, %v495
      %v497 = vrot.slane %v495, 4
      %v498 = vrot.slane %v452, 5
      %v499 = vsel %vm483, %v497, %v498
      %v500 = vrot.slane %v498, 4
      %v501 = vrot.slane %v453, 5
      %v502 = vsel %vm483, %v500, %v501
      %v503 = vrot.slane %v501, 4
      %v504 = vrot.slane %v454, 5
      %v505 = vsel %vm483, %v503, %v504
      %v506 = vrot.slane %v504, 4
      %v507 = vrot.slane %v455, 5
      %v508 = vsel %vm483, %v506, %v507
      %v509 = vrot.slane %v507, 4
      %v510 = vrot.slane %v456, 5
      %v511 = vsel %vm483, %v509, %v510
      %v512 = vrot.slane %v510, 4
      %v513 = vrot.slane %v457, 5
      %v514 = vsel %vm483, %v512, %v513
      %v515 = vrot.slane %v513, 4
      %v516 = vrot.slane %v458, 5
      %v517 = vsel %vm483, %v515, %v516
      %v518 = vrot.slane %v516, 4
      %v519 = vrot.slane %v459, 5
      %v520 = vsel %vm483, %v518, %v519
      %v521 = vrot.slane %v519, 4
      %v522 = vrot.slane %v460, 5
      %v523 = vsel %vm483, %v521, %v522
      %v524 = vrot.slane %v522, 4
      %v525 = vrot.slane %v461, 5
      %v526 = vsel %vm483, %v524, %v525
      %v527 = vrot.slane %v525, 4
      %v528 = vrot.slane %v462, 5
      %v529 = vsel %vm483, %v527, %v528
      %v530 = vrot.slane %v528, 4
      %v531 = vrot.slane %v463, 5
      %v532 = vsel %vm483, %v530, %v531
      %549 = vst [vmem:[#allocation2 + $0x8] sm:$0xf] %v487
      %550 = vst [vmem:[#allocation2 + $0x2c] sm:$0xf] %v490
      %551 = vst [vmem:[#allocation2 + $0x50] sm:$0xf] %v493
      %552 = vst [vmem:[#allocation2 + $0x74] sm:$0xf] %v496
      %553 = vst [vmem:[#allocation2 + $0x98] sm:$0xf] %v499
      %554 = vst [vmem:[#allocation2 + $0xbc] sm:$0xf] %v502
      %555 = vst [vmem:[#allocation2 + $0xe0] sm:$0xf] %v505
      %556 = vst [vmem:[#allocation2 + $0x104] sm:$0xf] %v508
      %557 = vst [vmem:[#allocation2 + $0x128] sm:$0xf] %v511
      %558 = vst [vmem:[#allocation2 + $0x14c] sm:$0xf] %v514
      %559 = vst [vmem:[#allocation2 + $0x170] sm:$0xf] %v517
      %560 = vst [vmem:[#allocation2 + $0x194] sm:$0xf] %v520
      %561 = vst [vmem:[#allocation2 + $0x1b8] sm:$0xf] %v523
      %562 = vst [vmem:[#allocation2 + $0x1dc] sm:$0xf] %v526
      %563 = vst [vmem:[#allocation2 + $0x200] sm:$0xf] %v529
      %564 = vst [vmem:[#allocation2 + $0x224] sm:$0xf] %v532
      %v565 = vld [vmem:[%s192 + $0x8] sm:$0xf]
      %v566 = vld [vmem:[%s192 + $0xc] sm:$0xf]
      %v567 = vld [vmem:[%s192 + $0x10] sm:$0xf]
      %v568 = vld [vmem:[%s192 + $0x14] sm:$0xf]
      %v569 = vld [vmem:[%s192 + $0x18] sm:$0xf]
      %v570 = vld [vmem:[%s192 + $0x1c] sm:$0xf]
      %v571 = vld [vmem:[%s192 + $0x20] sm:$0xf]
      %v572 = vld [vmem:[%s192 + $0x24] sm:$0xf]
      %v573 = vld [vmem:[%s192 + $0x28] sm:$0xf]
      %v574 = vld [vmem:[%s192 + $0x2c] sm:$0xf]
      %v575 = vld [vmem:[%s192 + $0x30] sm:$0xf]
      %v576 = vld [vmem:[%s192 + $0x34] sm:$0xf]
      %v577 = vld [vmem:[%s192 + $0x38] sm:$0xf]
      %v578 = vld [vmem:[%s192 + $0x3c] sm:$0xf]
      %v579 = vld [vmem:[%s192 + $0x40] sm:$0xf]
      %v580 = vld [vmem:[%s192 + $0x44] sm:$0xf]
      %581 = vst [vmem:[#allocation2 + $0xc] sm:$0xf] %v565
      %582 = vst [vmem:[#allocation2 + $0x30] sm:$0xf] %v566
      %583 = vst [vmem:[#allocation2 + $0x54] sm:$0xf] %v567
      %584 = vst [vmem:[#allocation2 + $0x78] sm:$0xf] %v568
      %585 = vst [vmem:[#allocation2 + $0x9c] sm:$0xf] %v569
      %586 = vst [vmem:[#allocation2 + $0xc0] sm:$0xf] %v570
      %587 = vst [vmem:[#allocation2 + $0xe4] sm:$0xf] %v571
      %588 = vst [vmem:[#allocation2 + $0x108] sm:$0xf] %v572
      %589 = vst [vmem:[#allocation2 + $0x12c] sm:$0xf] %v573
      %590 = vst [vmem:[#allocation2 + $0x150] sm:$0xf] %v574
      %591 = vst [vmem:[#allocation2 + $0x174] sm:$0xf] %v575
      %592 = vst [vmem:[#allocation2 + $0x198] sm:$0xf] %v576
      %593 = vst [vmem:[#allocation2 + $0x1bc] sm:$0xf] %v577
      %594 = vst [vmem:[#allocation2 + $0x1e0] sm:$0xf] %v578
      %595 = vst [vmem:[#allocation2 + $0x204] sm:$0xf] %v579
      %596 = vst [vmem:[#allocation2 + $0x228] sm:$0xf] %v580
      %v597 = vld [vmem:[%s192 + $0x8] sm:$0xf]
      %v598 = vld [vmem:[%s192 + $0xc] sm:$0xf]
      %v599 = vld [vmem:[%s192 + $0x10] sm:$0xf]
      %v600 = vld [vmem:[%s192 + $0x14] sm:$0xf]
      %v601 = vld [vmem:[%s192 + $0x18] sm:$0xf]
      %v602 = vld [vmem:[%s192 + $0x1c] sm:$0xf]
      %v603 = vld [vmem:[%s192 + $0x20] sm:$0xf]
      %v604 = vld [vmem:[%s192 + $0x24] sm:$0xf]
      %v605 = vld [vmem:[%s192 + $0x28] sm:$0xf]
      %v606 = vld [vmem:[%s192 + $0x2c] sm:$0xf]
      %v607 = vld [vmem:[%s192 + $0x30] sm:$0xf]
      %v608 = vld [vmem:[%s192 + $0x34] sm:$0xf]
      %v609 = vld [vmem:[%s192 + $0x38] sm:$0xf]
      %v610 = vld [vmem:[%s192 + $0x3c] sm:$0xf]
      %v611 = vld [vmem:[%s192 + $0x40] sm:$0xf]
      %v612 = vld [vmem:[%s192 + $0x44] sm:$0xf]
      %v613 = vld [vmem:[%s192 + $0x48] sm:$0x1]
      %v615 = vshrl.u32 %v597, 16
      %v617 = vrot.slane %v615, 4
      %v618 = vshll.u32 %v597, 16
      %v620 = vrot.slane %v618, 5
      %v621 = vor.u32 %v617, %v620
      %v622 = vrot.slane %v621, 4
      %v624 = vshll.u32 %v598, 16
      %v626 = vrot.slane %v624, 5
      %v627 = vsel %vm250, %v622, %v626
      %v628 = vshrl.u32 %v598, 16
      %v630 = vrot.slane %v628, 4
      %v631 = vor.u32 %v630, %v626
      %v632 = vrot.slane %v631, 4
      %v634 = vshll.u32 %v599, 16
      %v636 = vrot.slane %v634, 5
      %v637 = vsel %vm250, %v632, %v636
      %v638 = vshrl.u32 %v599, 16
      %v640 = vrot.slane %v638, 4
      %v641 = vor.u32 %v640, %v636
      %v642 = vrot.slane %v641, 4
      %v644 = vshll.u32 %v600, 16
      %v646 = vrot.slane %v644, 5
      %v647 = vsel %vm250, %v642, %v646
      %v648 = vshrl.u32 %v600, 16
      %v650 = vrot.slane %v648, 4
      %v651 = vor.u32 %v650, %v646
      %v652 = vrot.slane %v651, 4
      %v654 = vshll.u32 %v601, 16
      %v656 = vrot.slane %v654, 5
      %v657 = vsel %vm250, %v652, %v656
      %v658 = vshrl.u32 %v601, 16
      %v660 = vrot.slane %v658, 4
      %v661 = vor.u32 %v660, %v656
      %v662 = vrot.slane %v661, 4
      %v664 = vshll.u32 %v602, 16
      %v666 = vrot.slane %v664, 5
      %v667 = vsel %vm250, %v662, %v666
      %v668 = vshrl.u32 %v602, 16
      %v670 = vrot.slane %v668, 4
      %v671 = vor.u32 %v670, %v666
      %v672 = vrot.slane %v671, 4
      %v674 = vshll.u32 %v603, 16
      %v676 = vrot.slane %v674, 5
      %v677 = vsel %vm250, %v672, %v676
      %v678 = vshrl.u32 %v603, 16
      %v680 = vrot.slane %v678, 4
      %v681 = vor.u32 %v680, %v676
      %v682 = vrot.slane %v681, 4
      %v684 = vshll.u32 %v604, 16
      %v686 = vrot.slane %v684, 5
      %v687 = vsel %vm250, %v682, %v686
      %v688 = vshrl.u32 %v604, 16
      %v690 = vrot.slane %v688, 4
      %v691 = vor.u32 %v690, %v686
      %v692 = vrot.slane %v691, 4
      %v694 = vshll.u32 %v605, 16
      %v696 = vrot.slane %v694, 5
      %v697 = vsel %vm250, %v692, %v696
      %v698 = vshrl.u32 %v605, 16
      %v700 = vrot.slane %v698, 4
      %v701 = vor.u32 %v700, %v696
      %v702 = vrot.slane %v701, 4
      %v704 = vshll.u32 %v606, 16
      %v706 = vrot.slane %v704, 5
      %v707 = vsel %vm250, %v702, %v706
      %v708 = vshrl.u32 %v606, 16
      %v710 = vrot.slane %v708, 4
      %v711 = vor.u32 %v710, %v706
      %v712 = vrot.slane %v711, 4
      %v714 = vshll.u32 %v607, 16
      %v716 = vrot.slane %v714, 5
      %v717 = vsel %vm250, %v712, %v716
      %v718 = vshrl.u32 %v607, 16
      %v720 = vrot.slane %v718, 4
      %v721 = vor.u32 %v720, %v716
      %v722 = vrot.slane %v721, 4
      %v724 = vshll.u32 %v608, 16
      %v726 = vrot.slane %v724, 5
      %v727 = vsel %vm250, %v722, %v726
      %v728 = vshrl.u32 %v608, 16
      %v730 = vrot.slane %v728, 4
      %v731 = vor.u32 %v730, %v726
      %v732 = vrot.slane %v731, 4
      %v734 = vshll.u32 %v609, 16
      %v736 = vrot.slane %v734, 5
      %v737 = vsel %vm250, %v732, %v736
      %v738 = vshrl.u32 %v609, 16
      %v740 = vrot.slane %v738, 4
      %v741 = vor.u32 %v740, %v736
      %v742 = vrot.slane %v741, 4
      %v744 = vshll.u32 %v610, 16
      %v746 = vrot.slane %v744, 5
      %v747 = vsel %vm250, %v742, %v746
      %v748 = vshrl.u32 %v610, 16
      %v750 = vrot.slane %v748, 4
      %v751 = vor.u32 %v750, %v746
      %v752 = vrot.slane %v751, 4
      %v754 = vshll.u32 %v611, 16
      %v756 = vrot.slane %v754, 5
      %v757 = vsel %vm250, %v752, %v756
      %v758 = vshrl.u32 %v611, 16
      %v760 = vrot.slane %v758, 4
      %v761 = vor.u32 %v760, %v756
      %v762 = vrot.slane %v761, 4
      %v764 = vshll.u32 %v612, 16
      %v766 = vrot.slane %v764, 5
      %v767 = vsel %vm250, %v762, %v766
      %v768 = vshrl.u32 %v612, 16
      %v770 = vrot.slane %v768, 4
      %v771 = vor.u32 %v770, %v766
      %v772 = vrot.slane %v771, 4
      %v774 = vshll.u32 %v613, 16
      %v776 = vrot.slane %v774, 5
      %v777 = vsel %vm250, %v772, %v776
      %794 = vst [vmem:[#allocation2 + $0x10] sm:$0xf] %v627
      %795 = vst [vmem:[#allocation2 + $0x34] sm:$0xf] %v637
      %796 = vst [vmem:[#allocation2 + $0x58] sm:$0xf] %v647
      %797 = vst [vmem:[#allocation2 + $0x7c] sm:$0xf] %v657
      %798 = vst [vmem:[#allocation2 + $0xa0] sm:$0xf] %v667
      %799 = vst [vmem:[#allocation2 + $0xc4] sm:$0xf] %v677
      %800 = vst [vmem:[#allocation2 + $0xe8] sm:$0xf] %v687
      %801 = vst [vmem:[#allocation2 + $0x10c] sm:$0xf] %v697
      %802 = vst [vmem:[#allocation2 + $0x130] sm:$0xf] %v707
      %803 = vst [vmem:[#allocation2 + $0x154] sm:$0xf] %v717
      %804 = vst [vmem:[#allocation2 + $0x178] sm:$0xf] %v727
      %805 = vst [vmem:[#allocation2 + $0x19c] sm:$0xf] %v737
      %806 = vst [vmem:[#allocation2 + $0x1c0] sm:$0xf] %v747
      %807 = vst [vmem:[#allocation2 + $0x1e4] sm:$0xf] %v757
      %808 = vst [vmem:[#allocation2 + $0x208] sm:$0xf] %v767
      %809 = vst [vmem:[#allocation2 + $0x22c] sm:$0xf] %v777
      %v810 = vld [vmem:[%s192 + $0x8] sm:$0xe]
      %v811 = vld [vmem:[%s192 + $0xc] sm:$0xf]
      %v812 = vld [vmem:[%s192 + $0x10] sm:$0xf]
      %v813 = vld [vmem:[%s192 + $0x14] sm:$0xf]
      %v814 = vld [vmem:[%s192 + $0x18] sm:$0xf]
      %v815 = vld [vmem:[%s192 + $0x1c] sm:$0xf]
      %v816 = vld [vmem:[%s192 + $0x20] sm:$0xf]
      %v817 = vld [vmem:[%s192 + $0x24] sm:$0xf]
      %v818 = vld [vmem:[%s192 + $0x28] sm:$0xf]
      %v819 = vld [vmem:[%s192 + $0x2c] sm:$0xf]
      %v820 = vld [vmem:[%s192 + $0x30] sm:$0xf]
      %v821 = vld [vmem:[%s192 + $0x34] sm:$0xf]
      %v822 = vld [vmem:[%s192 + $0x38] sm:$0xf]
      %v823 = vld [vmem:[%s192 + $0x3c] sm:$0xf]
      %v824 = vld [vmem:[%s192 + $0x40] sm:$0xf]
      %v825 = vld [vmem:[%s192 + $0x44] sm:$0xf]
      %v826 = vld [vmem:[%s192 + $0x48] sm:$0x1]
      %v844 = vrot.slane %v810, 5
      %v845 = vrot.slane %v844, 4
      %v846 = vrot.slane %v811, 5
      %v847 = vsel %vm483, %v845, %v846
      %v848 = vrot.slane %v846, 4
      %v849 = vrot.slane %v812, 5
      %v850 = vsel %vm483, %v848, %v849
      %v851 = vrot.slane %v849, 4
      %v852 = vrot.slane %v813, 5
      %v853 = vsel %vm483, %v851, %v852
      %v854 = vrot.slane %v852, 4
      %v855 = vrot.slane %v814, 5
      %v856 = vsel %vm483, %v854, %v855
      %v857 = vrot.slane %v855, 4
      %v858 = vrot.slane %v815, 5
      %v859 = vsel %vm483, %v857, %v858
      %v860 = vrot.slane %v858, 4
      %v861 = vrot.slane %v816, 5
      %v862 = vsel %vm483, %v860, %v861
      %v863 = vrot.slane %v861, 4
      %v864 = vrot.slane %v817, 5
      %v865 = vsel %vm483, %v863, %v864
      %v866 = vrot.slane %v864, 4
      %v867 = vrot.slane %v818, 5
      %v868 = vsel %vm483, %v866, %v867
      %v869 = vrot.slane %v867, 4
      %v870 = vrot.slane %v819, 5
      %v871 = vsel %vm483, %v869, %v870
      %v872 = vrot.slane %v870, 4
      %v873 = vrot.slane %v820, 5
      %v874 = vsel %vm483, %v872, %v873
      %v875 = vrot.slane %v873, 4
      %v876 = vrot.slane %v821, 5
      %v877 = vsel %vm483, %v875, %v876
      %v878 = vrot.slane %v876, 4
      %v879 = vrot.slane %v822, 5
      %v880 = vsel %vm483, %v878, %v879
      %v881 = vrot.slane %v879, 4
      %v882 = vrot.slane %v823, 5
      %v883 = vsel %vm483, %v881, %v882
      %v884 = vrot.slane %v882, 4
      %v885 = vrot.slane %v824, 5
      %v886 = vsel %vm483, %v884, %v885
      %v887 = vrot.slane %v885, 4
      %v888 = vrot.slane %v825, 5
      %v889 = vsel %vm483, %v887, %v888
      %v890 = vrot.slane %v888, 4
      %v891 = vrot.slane %v826, 5
      %v892 = vsel %vm483, %v890, %v891
      %909 = vst [vmem:[#allocation2 + $0x14] sm:$0xf] %v847
      %910 = vst [vmem:[#allocation2 + $0x38] sm:$0xf] %v850
      %911 = vst [vmem:[#allocation2 + $0x5c] sm:$0xf] %v853
      %912 = vst [vmem:[#allocation2 + $0x80] sm:$0xf] %v856
      %913 = vst [vmem:[#allocation2 + $0xa4] sm:$0xf] %v859
      %914 = vst [vmem:[#allocation2 + $0xc8] sm:$0xf] %v862
      %915 = vst [vmem:[#allocation2 + $0xec] sm:$0xf] %v865
      %916 = vst [vmem:[#allocation2 + $0x110] sm:$0xf] %v868
      %917 = vst [vmem:[#allocation2 + $0x134] sm:$0xf] %v871
      %918 = vst [vmem:[#allocation2 + $0x158] sm:$0xf] %v874
      %919 = vst [vmem:[#allocation2 + $0x17c] sm:$0xf] %v877
      %920 = vst [vmem:[#allocation2 + $0x1a0] sm:$0xf] %v880
      %921 = vst [vmem:[#allocation2 + $0x1c4] sm:$0xf] %v883
      %922 = vst [vmem:[#allocation2 + $0x1e8] sm:$0xf] %v886
      %923 = vst [vmem:[#allocation2 + $0x20c] sm:$0xf] %v889
      %924 = vst [vmem:[#allocation2 + $0x230] sm:$0xf] %v892
      %v925 = vld [vmem:[%s192 + $0x10] sm:$0xf]
      %v926 = vld [vmem:[%s192 + $0x14] sm:$0xf]
      %v927 = vld [vmem:[%s192 + $0x18] sm:$0xf]
      %v928 = vld [vmem:[%s192 + $0x1c] sm:$0xf]
      %v929 = vld [vmem:[%s192 + $0x20] sm:$0xf]
      %v930 = vld [vmem:[%s192 + $0x24] sm:$0xf]
      %v931 = vld [vmem:[%s192 + $0x28] sm:$0xf]
      %v932 = vld [vmem:[%s192 + $0x2c] sm:$0xf]
      %v933 = vld [vmem:[%s192 + $0x30] sm:$0xf]
      %v934 = vld [vmem:[%s192 + $0x34] sm:$0xf]
      %v935 = vld [vmem:[%s192 + $0x38] sm:$0xf]
      %v936 = vld [vmem:[%s192 + $0x3c] sm:$0xf]
      %v937 = vld [vmem:[%s192 + $0x40] sm:$0xf]
      %v938 = vld [vmem:[%s192 + $0x44] sm:$0xf]
      %v939 = vld [vmem:[%s192 + $0x48] sm:$0xf]
      %v940 = vld [vmem:[%s192 + $0x4c] sm:$0xf]
      %941 = vst [vmem:[#allocation2 + $0x18] sm:$0xf] %v925
      %942 = vst [vmem:[#allocation2 + $0x3c] sm:$0xf] %v926
      %943 = vst [vmem:[#allocation2 + $0x60] sm:$0xf] %v927
      %944 = vst [vmem:[#allocation2 + $0x84] sm:$0xf] %v928
      %945 = vst [vmem:[#allocation2 + $0xa8] sm:$0xf] %v929
      %946 = vst [vmem:[#allocation2 + $0xcc] sm:$0xf] %v930
      %947 = vst [vmem:[#allocation2 + $0xf0] sm:$0xf] %v931
      %948 = vst [vmem:[#allocation2 + $0x114] sm:$0xf] %v932
      %949 = vst [vmem:[#allocation2 + $0x138] sm:$0xf] %v933
      %950 = vst [vmem:[#allocation2 + $0x15c] sm:$0xf] %v934
      %951 = vst [vmem:[#allocation2 + $0x180] sm:$0xf] %v935
      %952 = vst [vmem:[#allocation2 + $0x1a4] sm:$0xf] %v936
      %953 = vst [vmem:[#allocation2 + $0x1c8] sm:$0xf] %v937
      %954 = vst [vmem:[#allocation2 + $0x1ec] sm:$0xf] %v938
      %955 = vst [vmem:[#allocation2 + $0x210] sm:$0xf] %v939
      %956 = vst [vmem:[#allocation2 + $0x234] sm:$0xf] %v940
      %v957 = vld [vmem:[%s192 + $0x10] sm:$0xf]
      %v958 = vld [vmem:[%s192 + $0x14] sm:$0xf]
      %v959 = vld [vmem:[%s192 + $0x18] sm:$0xf]
      %v960 = vld [vmem:[%s192 + $0x1c] sm:$0xf]
      %v961 = vld [vmem:[%s192 + $0x20] sm:$0xf]
      %v962 = vld [vmem:[%s192 + $0x24] sm:$0xf]
      %v963 = vld [vmem:[%s192 + $0x28] sm:$0xf]
      %v964 = vld [vmem:[%s192 + $0x2c] sm:$0xf]
      %v965 = vld [vmem:[%s192 + $0x30] sm:$0xf]
      %v966 = vld [vmem:[%s192 + $0x34] sm:$0xf]
      %v967 = vld [vmem:[%s192 + $0x38] sm:$0xf]
      %v968 = vld [vmem:[%s192 + $0x3c] sm:$0xf]
      %v969 = vld [vmem:[%s192 + $0x40] sm:$0xf]
      %v970 = vld [vmem:[%s192 + $0x44] sm:$0xf]
      %v971 = vld [vmem:[%s192 + $0x48] sm:$0xf]
      %v972 = vld [vmem:[%s192 + $0x4c] sm:$0xf]
      %v973 = vld [vmem:[%s192 + $0x50] sm:$0x1]
      %v975 = vshrl.u32 %v957, 16
      %v977 = vrot.slane %v975, 4
      %v978 = vshll.u32 %v957, 16
      %v980 = vrot.slane %v978, 5
      %v981 = vor.u32 %v977, %v980
      %v982 = vrot.slane %v981, 4
      %v984 = vshll.u32 %v958, 16
      %v986 = vrot.slane %v984, 5
      %v987 = vsel %vm250, %v982, %v986
      %v988 = vshrl.u32 %v958, 16
      %v990 = vrot.slane %v988, 4
      %v991 = vor.u32 %v990, %v986
      %v992 = vrot.slane %v991, 4
      %v994 = vshll.u32 %v959, 16
      %v996 = vrot.slane %v994, 5
      %v997 = vsel %vm250, %v992, %v996
      %v998 = vshrl.u32 %v959, 16
      %v1000 = vrot.slane %v998, 4
      %v1001 = vor.u32 %v1000, %v996
      %v1002 = vrot.slane %v1001, 4
      %v1004 = vshll.u32 %v960, 16
      %v1006 = vrot.slane %v1004, 5
      %v1007 = vsel %vm250, %v1002, %v1006
      %v1008 = vshrl.u32 %v960, 16
      %v1010 = vrot.slane %v1008, 4
      %v1011 = vor.u32 %v1010, %v1006
      %v1012 = vrot.slane %v1011, 4
      %v1014 = vshll.u32 %v961, 16
      %v1016 = vrot.slane %v1014, 5
      %v1017 = vsel %vm250, %v1012, %v1016
      %v1018 = vshrl.u32 %v961, 16
      %v1020 = vrot.slane %v1018, 4
      %v1021 = vor.u32 %v1020, %v1016
      %v1022 = vrot.slane %v1021, 4
      %v1024 = vshll.u32 %v962, 16
      %v1026 = vrot.slane %v1024, 5
      %v1027 = vsel %vm250, %v1022, %v1026
      %v1028 = vshrl.u32 %v962, 16
      %v1030 = vrot.slane %v1028, 4
      %v1031 = vor.u32 %v1030, %v1026
      %v1032 = vrot.slane %v1031, 4
      %v1034 = vshll.u32 %v963, 16
      %v1036 = vrot.slane %v1034, 5
      %v1037 = vsel %vm250, %v1032, %v1036
      %v1038 = vshrl.u32 %v963, 16
      %v1040 = vrot.slane %v1038, 4
      %v1041 = vor.u32 %v1040, %v1036
      %v1042 = vrot.slane %v1041, 4
      %v1044 = vshll.u32 %v964, 16
      %v1046 = vrot.slane %v1044, 5
      %v1047 = vsel %vm250, %v1042, %v1046
      %v1048 = vshrl.u32 %v964, 16
      %v1050 = vrot.slane %v1048, 4
      %v1051 = vor.u32 %v1050, %v1046
      %v1052 = vrot.slane %v1051, 4
      %v1054 = vshll.u32 %v965, 16
      %v1056 = vrot.slane %v1054, 5
      %v1057 = vsel %vm250, %v1052, %v1056
      %v1058 = vshrl.u32 %v965, 16
      %v1060 = vrot.slane %v1058, 4
      %v1061 = vor.u32 %v1060, %v1056
      %v1062 = vrot.slane %v1061, 4
      %v1064 = vshll.u32 %v966, 16
      %v1066 = vrot.slane %v1064, 5
      %v1067 = vsel %vm250, %v1062, %v1066
      %v1068 = vshrl.u32 %v966, 16
      %v1070 = vrot.slane %v1068, 4
      %v1071 = vor.u32 %v1070, %v1066
      %v1072 = vrot.slane %v1071, 4
      %v1074 = vshll.u32 %v967, 16
      %v1076 = vrot.slane %v1074, 5
      %v1077 = vsel %vm250, %v1072, %v1076
      %v1078 = vshrl.u32 %v967, 16
      %v1080 = vrot.slane %v1078, 4
      %v1081 = vor.u32 %v1080, %v1076
      %v1082 = vrot.slane %v1081, 4
      %v1084 = vshll.u32 %v968, 16
      %v1086 = vrot.slane %v1084, 5
      %v1087 = vsel %vm250, %v1082, %v1086
      %v1088 = vshrl.u32 %v968, 16
      %v1090 = vrot.slane %v1088, 4
      %v1091 = vor.u32 %v1090, %v1086
      %v1092 = vrot.slane %v1091, 4
      %v1094 = vshll.u32 %v969, 16
      %v1096 = vrot.slane %v1094, 5
      %v1097 = vsel %vm250, %v1092, %v1096
      %v1098 = vshrl.u32 %v969, 16
      %v1100 = vrot.slane %v1098, 4
      %v1101 = vor.u32 %v1100, %v1096
      %v1102 = vrot.slane %v1101, 4
      %v1104 = vshll.u32 %v970, 16
      %v1106 = vrot.slane %v1104, 5
      %v1107 = vsel %vm250, %v1102, %v1106
      %v1108 = vshrl.u32 %v970, 16
      %v1110 = vrot.slane %v1108, 4
      %v1111 = vor.u32 %v1110, %v1106
      %v1112 = vrot.slane %v1111, 4
      %v1114 = vshll.u32 %v971, 16
      %v1116 = vrot.slane %v1114, 5
      %v1117 = vsel %vm250, %v1112, %v1116
      %v1118 = vshrl.u32 %v971, 16
      %v1120 = vrot.slane %v1118, 4
      %v1121 = vor.u32 %v1120, %v1116
      %v1122 = vrot.slane %v1121, 4
      %v1124 = vshll.u32 %v972, 16
      %v1126 = vrot.slane %v1124, 5
      %v1127 = vsel %vm250, %v1122, %v1126
      %v1128 = vshrl.u32 %v972, 16
      %v1130 = vrot.slane %v1128, 4
      %v1131 = vor.u32 %v1130, %v1126
      %v1132 = vrot.slane %v1131, 4
      %v1134 = vshll.u32 %v973, 16
      %v1136 = vrot.slane %v1134, 5
      %v1137 = vsel %vm250, %v1132, %v1136
      %1154 = vst [vmem:[#allocation2 + $0x1c] sm:$0xf] %v987
      %1155 = vst [vmem:[#allocation2 + $0x40] sm:$0xf] %v997
      %1156 = vst [vmem:[#allocation2 + $0x64] sm:$0xf] %v1007
      %1157 = vst [vmem:[#allocation2 + $0x88] sm:$0xf] %v1017
      %1158 = vst [vmem:[#allocation2 + $0xac] sm:$0xf] %v1027
      %1159 = vst [vmem:[#allocation2 + $0xd0] sm:$0xf] %v1037
      %1160 = vst [vmem:[#allocation2 + $0xf4] sm:$0xf] %v1047
      %1161 = vst [vmem:[#allocation2 + $0x118] sm:$0xf] %v1057
      %1162 = vst [vmem:[#allocation2 + $0x13c] sm:$0xf] %v1067
      %1163 = vst [vmem:[#allocation2 + $0x160] sm:$0xf] %v1077
      %1164 = vst [vmem:[#allocation2 + $0x184] sm:$0xf] %v1087
      %1165 = vst [vmem:[#allocation2 + $0x1a8] sm:$0xf] %v1097
      %1166 = vst [vmem:[#allocation2 + $0x1cc] sm:$0xf] %v1107
      %1167 = vst [vmem:[#allocation2 + $0x1f0] sm:$0xf] %v1117
      %1168 = vst [vmem:[#allocation2 + $0x214] sm:$0xf] %v1127
      %1169 = vst [vmem:[#allocation2 + $0x238] sm:$0xf] %v1137
      %v1170 = vld [vmem:[%s192 + $0x10] sm:$0xe]
      %v1171 = vld [vmem:[%s192 + $0x14] sm:$0xf]
      %v1172 = vld [vmem:[%s192 + $0x18] sm:$0xf]
      %v1173 = vld [vmem:[%s192 + $0x1c] sm:$0xf]
      %v1174 = vld [vmem:[%s192 + $0x20] sm:$0xf]
      %v1175 = vld [vmem:[%s192 + $0x24] sm:$0xf]
      %v1176 = vld [vmem:[%s192 + $0x28] sm:$0xf]
      %v1177 = vld [vmem:[%s192 + $0x2c] sm:$0xf]
      %v1178 = vld [vmem:[%s192 + $0x30] sm:$0xf]
      %v1179 = vld [vmem:[%s192 + $0x34] sm:$0xf]
      %v1180 = vld [vmem:[%s192 + $0x38] sm:$0xf]
      %v1181 = vld [vmem:[%s192 + $0x3c] sm:$0xf]
      %v1182 = vld [vmem:[%s192 + $0x40] sm:$0xf]
      %v1183 = vld [vmem:[%s192 + $0x44] sm:$0xf]
      %v1184 = vld [vmem:[%s192 + $0x48] sm:$0xf]
      %v1185 = vld [vmem:[%s192 + $0x4c] sm:$0xf]
      %v1186 = vld [vmem:[%s192 + $0x50] sm:$0x1]
      %v1204 = vrot.slane %v1170, 5
      %v1205 = vrot.slane %v1204, 4
      %v1206 = vrot.slane %v1171, 5
      %v1207 = vsel %vm483, %v1205, %v1206
      %v1208 = vrot.slane %v1206, 4
      %v1209 = vrot.slane %v1172, 5
      %v1210 = vsel %vm483, %v1208, %v1209
      %v1211 = vrot.slane %v1209, 4
      %v1212 = vrot.slane %v1173, 5
      %v1213 = vsel %vm483, %v1211, %v1212
      %v1214 = vrot.slane %v1212, 4
      %v1215 = vrot.slane %v1174, 5
      %v1216 = vsel %vm483, %v1214, %v1215
      %v1217 = vrot.slane %v1215, 4
      %v1218 = vrot.slane %v1175, 5
      %v1219 = vsel %vm483, %v1217, %v1218
      %v1220 = vrot.slane %v1218, 4
      %v1221 = vrot.slane %v1176, 5
      %v1222 = vsel %vm483, %v1220, %v1221
      %v1223 = vrot.slane %v1221, 4
      %v1224 = vrot.slane %v1177, 5
      %v1225 = vsel %vm483, %v1223, %v1224
      %v1226 = vrot.slane %v1224, 4
      %v1227 = vrot.slane %v1178, 5
      %v1228 = vsel %vm483, %v1226, %v1227
      %v1229 = vrot.slane %v1227, 4
      %v1230 = vrot.slane %v1179, 5
      %v1231 = vsel %vm483, %v1229, %v1230
      %v1232 = vrot.slane %v1230, 4
      %v1233 = vrot.slane %v1180, 5
      %v1234 = vsel %vm483, %v1232, %v1233
      %v1235 = vrot.slane %v1233, 4
      %v1236 = vrot.slane %v1181, 5
      %v1237 = vsel %vm483, %v1235, %v1236
      %v1238 = vrot.slane %v1236, 4
      %v1239 = vrot.slane %v1182, 5
      %v1240 = vsel %vm483, %v1238, %v1239
      %v1241 = vrot.slane %v1239, 4
      %v1242 = vrot.slane %v1183, 5
      %v1243 = vsel %vm483, %v1241, %v1242
      %v1244 = vrot.slane %v1242, 4
      %v1245 = vrot.slane %v1184, 5
      %v1246 = vsel %vm483, %v1244, %v1245
      %v1247 = vrot.slane %v1245, 4
      %v1248 = vrot.slane %v1185, 5
      %v1249 = vsel %vm483, %v1247, %v1248
      %v1250 = vrot.slane %v1248, 4
      %v1251 = vrot.slane %v1186, 5
      %v1252 = vsel %vm483, %v1250, %v1251
      %1269 = vst [vmem:[#allocation2 + $0x20] sm:$0xf] %v1207
      %1270 = vst [vmem:[#allocation2 + $0x44] sm:$0xf] %v1210
      %1271 = vst [vmem:[#allocation2 + $0x68] sm:$0xf] %v1213
      %1272 = vst [vmem:[#allocation2 + $0x8c] sm:$0xf] %v1216
      %1273 = vst [vmem:[#allocation2 + $0xb0] sm:$0xf] %v1219
      %1274 = vst [vmem:[#allocation2 + $0xd4] sm:$0xf] %v1222
      %1275 = vst [vmem:[#allocation2 + $0xf8] sm:$0xf] %v1225
      %1276 = vst [vmem:[#allocation2 + $0x11c] sm:$0xf] %v1228
      %1277 = vst [vmem:[#allocation2 + $0x140] sm:$0xf] %v1231
      %1278 = vst [vmem:[#allocation2 + $0x164] sm:$0xf] %v1234
      %1279 = vst [vmem:[#allocation2 + $0x188] sm:$0xf] %v1237
      %1280 = vst [vmem:[#allocation2 + $0x1ac] sm:$0xf] %v1240
      %1281 = vst [vmem:[#allocation2 + $0x1d0] sm:$0xf] %v1243
      %1282 = vst [vmem:[#allocation2 + $0x1f4] sm:$0xf] %v1246
      %1283 = vst [vmem:[#allocation2 + $0x218] sm:$0xf] %v1249
      %1284 = vst [vmem:[#allocation2 + $0x23c] sm:$0xf] %v1252
      %v1285 = vld [vmem:[#allocation2] sm:$0xff]
      %v1286 = vld [vmem:[#allocation2 + $0x8] sm:$0xff]
      %v1287 = vld [vmem:[#allocation2 + $0x10] sm:$0xff]
      %v1288 = vld [vmem:[#allocation2 + $0x18] sm:$0xff]
      %v1289 = vld [vmem:[#allocation2 + $0x20] sm:$0xf]
      %v1290 = vld [vmem:[#allocation2 + $0x24] sm:$0xff]
      %v1291 = vld [vmem:[#allocation2 + $0x2c] sm:$0xff]
      %v1292 = vld [vmem:[#allocation2 + $0x34] sm:$0xff]
      %v1293 = vld [vmem:[#allocation2 + $0x3c] sm:$0xff]
      %v1294 = vld [vmem:[#allocation2 + $0x44] sm:$0xf]
      %v1295 = vld [vmem:[#allocation2 + $0x48] sm:$0xff]
      %v1296 = vld [vmem:[#allocation2 + $0x50] sm:$0xff]
      %v1297 = vld [vmem:[#allocation2 + $0x58] sm:$0xff]
      %v1298 = vld [vmem:[#allocation2 + $0x60] sm:$0xff]
      %v1299 = vld [vmem:[#allocation2 + $0x68] sm:$0xf]
      %v1300 = vld [vmem:[#allocation2 + $0x6c] sm:$0xff]
      %v1301 = vld [vmem:[#allocation2 + $0x74] sm:$0xff]
      %v1302 = vld [vmem:[#allocation2 + $0x7c] sm:$0xff]
      %v1303 = vld [vmem:[#allocation2 + $0x84] sm:$0xff]
      %v1304 = vld [vmem:[#allocation2 + $0x8c] sm:$0xf]
      %v1305 = vld [vmem:[#allocation2 + $0x90] sm:$0xff]
      %v1306 = vld [vmem:[#allocation2 + $0x98] sm:$0xff]
      %v1307 = vld [vmem:[#allocation2 + $0xa0] sm:$0xff]
      %v1308 = vld [vmem:[#allocation2 + $0xa8] sm:$0xff]
      %v1309 = vld [vmem:[#allocation2 + $0xb0] sm:$0xf]
      %v1310 = vld [vmem:[#allocation2 + $0xb4] sm:$0xff]
      %v1311 = vld [vmem:[#allocation2 + $0xbc] sm:$0xff]
      %v1312 = vld [vmem:[#allocation2 + $0xc4] sm:$0xff]
      %v1313 = vld [vmem:[#allocation2 + $0xcc] sm:$0xff]
      %v1314 = vld [vmem:[#allocation2 + $0xd4] sm:$0xf]
      %v1315 = vld [vmem:[#allocation2 + $0xd8] sm:$0xff]
      %v1316 = vld [vmem:[#allocation2 + $0xe0] sm:$0xff]
      %v1317 = vld [vmem:[#allocation2 + $0xe8] sm:$0xff]
      %v1318 = vld [vmem:[#allocation2 + $0xf0] sm:$0xff]
      %v1319 = vld [vmem:[#allocation2 + $0xf8] sm:$0xf]
      %v1320 = vld [vmem:[#allocation2 + $0xfc] sm:$0xff]
      %v1321 = vld [vmem:[#allocation2 + $0x104] sm:$0xff]
      %v1322 = vld [vmem:[#allocation2 + $0x10c] sm:$0xff]
      %v1323 = vld [vmem:[#allocation2 + $0x114] sm:$0xff]
      %v1324 = vld [vmem:[#allocation2 + $0x11c] sm:$0xf]
      %v1325 = vld [vmem:[#allocation2 + $0x120] sm:$0xff]
      %v1326 = vld [vmem:[#allocation2 + $0x128] sm:$0xff]
      %v1327 = vld [vmem:[#allocation2 + $0x130] sm:$0xff]
      %v1328 = vld [vmem:[#allocation2 + $0x138] sm:$0xff]
      %v1329 = vld [vmem:[#allocation2 + $0x140] sm:$0xf]
      %v1330 = vld [vmem:[#allocation2 + $0x144] sm:$0xff]
      %v1331 = vld [vmem:[#allocation2 + $0x14c] sm:$0xff]
      %v1332 = vld [vmem:[#allocation2 + $0x154] sm:$0xff]
      %v1333 = vld [vmem:[#allocation2 + $0x15c] sm:$0xff]
      %v1334 = vld [vmem:[#allocation2 + $0x164] sm:$0xf]
      %v1335 = vld [vmem:[#allocation2 + $0x168] sm:$0xff]
      %v1336 = vld [vmem:[#allocation2 + $0x170] sm:$0xff]
      %v1337 = vld [vmem:[#allocation2 + $0x178] sm:$0xff]
      %v1338 = vld [vmem:[#allocation2 + $0x180] sm:$0xff]
      %v1339 = vld [vmem:[#allocation2 + $0x188] sm:$0xf]
      %v1340 = vld [vmem:[#allocation2 + $0x18c] sm:$0xff]
      %v1341 = vld [vmem:[#allocation2 + $0x194] sm:$0xff]
      %v1342 = vld [vmem:[#allocation2 + $0x19c] sm:$0xff]
      %v1343 = vld [vmem:[#allocation2 + $0x1a4] sm:$0xff]
      %v1344 = vld [vmem:[#allocation2 + $0x1ac] sm:$0xf]
      %v1345 = vld [vmem:[#allocation2 + $0x1b0] sm:$0xff]
      %v1346 = vld [vmem:[#allocation2 + $0x1b8] sm:$0xff]
      %v1347 = vld [vmem:[#allocation2 + $0x1c0] sm:$0xff]
      %v1348 = vld [vmem:[#allocation2 + $0x1c8] sm:$0xff]
      %v1349 = vld [vmem:[#allocation2 + $0x1d0] sm:$0xf]
      %v1350 = vld [vmem:[#allocation2 + $0x1d4] sm:$0xff]
      %v1351 = vld [vmem:[#allocation2 + $0x1dc] sm:$0xff]
      %v1352 = vld [vmem:[#allocation2 + $0x1e4] sm:$0xff]
      %v1353 = vld [vmem:[#allocation2 + $0x1ec] sm:$0xff]
      %v1354 = vld [vmem:[#allocation2 + $0x1f4] sm:$0xf]
      %v1355 = vld [vmem:[#allocation2 + $0x1f8] sm:$0xff]
      %v1356 = vld [vmem:[#allocation2 + $0x200] sm:$0xff]
      %v1357 = vld [vmem:[#allocation2 + $0x208] sm:$0xff]
      %v1358 = vld [vmem:[#allocation2 + $0x210] sm:$0xff]
      %v1359 = vld [vmem:[#allocation2 + $0x218] sm:$0xf]
      %v1360 = vld [vmem:[#allocation2 + $0x21c] sm:$0xff]
      %v1361 = vld [vmem:[#allocation2 + $0x224] sm:$0xff]
      %v1362 = vld [vmem:[#allocation2 + $0x22c] sm:$0xff]
      %v1363 = vld [vmem:[#allocation2 + $0x234] sm:$0xff]
      %v1364 = vld [vmem:[#allocation2 + $0x23c] sm:$0xf]
      %v1365 = vld [vmem:[%s1] sm:$0xf]
      %v1366 = vld [vmem:[%s1 + $0x4] sm:$0xf]
      %v1367 = vld [vmem:[%s1 + $0x8] sm:$0xf]
      %v1368 = vld [vmem:[%s1 + $0xc] sm:$0xf]
      %v1369 = vld [vmem:[%s1 + $0x10] sm:$0xf]
      %v1370 = vld [vmem:[%s1 + $0x14] sm:$0xf]
      %v1371 = vld [vmem:[%s1 + $0x18] sm:$0xf]
      %v1372 = vld [vmem:[%s1 + $0x1c] sm:$0xf]
      %v1373 = vld [vmem:[%s1 + $0x20] sm:$0xf]
      %v1374 = vld [vmem:[%s1 + $0x24] sm:$0xf]
      %v1375 = vld [vmem:[%s1 + $0x28] sm:$0xf]
      %v1376 = vld [vmem:[%s1 + $0x2c] sm:$0xf]
      %v1377 = vld [vmem:[%s1 + $0x30] sm:$0xf]
      %v1378 = vld [vmem:[%s1 + $0x34] sm:$0xf]
      %v1379 = vld [vmem:[%s1 + $0x38] sm:$0xf]
      %v1380 = vld [vmem:[%s1 + $0x3c] sm:$0xf]
      %v1381 = vld [vmem:[%s1 + $0x40] sm:$0xf]
      %v1382 = vld [vmem:[%s1 + $0x44] sm:$0xf]
      %v1383 = vld [vmem:[%s1 + $0x48] sm:$0xf]
      %v1384 = vld [vmem:[%s1 + $0x4c] sm:$0xf]
      %v1385 = vld [vmem:[%s1 + $0x50] sm:$0xf]
      %v1386 = vld [vmem:[%s1 + $0x54] sm:$0xf]
      %v1387 = vld [vmem:[%s1 + $0x58] sm:$0xf]
      %v1388 = vld [vmem:[%s1 + $0x5c] sm:$0xf]
      %v1389 = vld [vmem:[%s1 + $0x60] sm:$0xf]
      %v1390 = vld [vmem:[%s1 + $0x64] sm:$0xf]
      %v1391 = vld [vmem:[%s1 + $0x68] sm:$0xf]
      %v1392 = vld [vmem:[%s1 + $0x6c] sm:$0xf]
      %v1393 = vld [vmem:[%s1 + $0x70] sm:$0xf]
      %v1394 = vld [vmem:[%s1 + $0x74] sm:$0xf]
      %v1395 = vld [vmem:[%s1 + $0x78] sm:$0xf]
      %v1396 = vld [vmem:[%s1 + $0x7c] sm:$0xf]
      %v1397 = vld [vmem:[%s1 + $0x80] sm:$0xf]
      %v1398 = vld [vmem:[%s1 + $0x84] sm:$0xf]
      %v1399 = vld [vmem:[%s1 + $0x88] sm:$0xf]
      %v1400 = vld [vmem:[%s1 + $0x8c] sm:$0xf]
      %v1401 = vld [vmem:[%s1 + $0x90] sm:$0xf]
      %v1402 = vld [vmem:[%s1 + $0x94] sm:$0xf]
      %v1403 = vld [vmem:[%s1 + $0x98] sm:$0xf]
      %v1404 = vld [vmem:[%s1 + $0x9c] sm:$0xf]
      %v1405 = vld [vmem:[%s1 + $0xa0] sm:$0xf]
      %v1406 = vld [vmem:[%s1 + $0xa4] sm:$0xf]
      %v1407 = vld [vmem:[%s1 + $0xa8] sm:$0xf]
      %v1408 = vld [vmem:[%s1 + $0xac] sm:$0xf]
      %v1409 = vld [vmem:[%s1 + $0xb0] sm:$0xf]
      %v1410 = vld [vmem:[%s1 + $0xb4] sm:$0xf]
      %v1411 = vld [vmem:[%s1 + $0xb8] sm:$0xf]
      %v1412 = vld [vmem:[%s1 + $0xbc] sm:$0xf]
      %v1413 = vld [vmem:[%s1 + $0xc0] sm:$0xf]
      %v1414 = vld [vmem:[%s1 + $0xc4] sm:$0xf]
      %v1415 = vld [vmem:[%s1 + $0xc8] sm:$0xf]
      %v1416 = vld [vmem:[%s1 + $0xcc] sm:$0xf]
      %v1417 = vld [vmem:[%s1 + $0xd0] sm:$0xf]
      %v1418 = vld [vmem:[%s1 + $0xd4] sm:$0xf]
      %v1419 = vld [vmem:[%s1 + $0xd8] sm:$0xf]
      %v1420 = vld [vmem:[%s1 + $0xdc] sm:$0xf]
      %v1421 = vld [vmem:[%s1 + $0xe0] sm:$0xf]
      %v1422 = vld [vmem:[%s1 + $0xe4] sm:$0xf]
      %v1423 = vld [vmem:[%s1 + $0xe8] sm:$0xf]
      %v1424 = vld [vmem:[%s1 + $0xec] sm:$0xf]
      %v1425 = vld [vmem:[%s1 + $0xf0] sm:$0xf]
      %v1426 = vld [vmem:[%s1 + $0xf4] sm:$0xf]
      %v1427 = vld [vmem:[%s1 + $0xf8] sm:$0xf]
      %v1428 = vld [vmem:[%s1 + $0xfc] sm:$0xf]
      %v1429 = vld [vmem:[%s1 + $0x100] sm:$0xf]
      %v1430 = vld [vmem:[%s1 + $0x104] sm:$0xf]
      %v1431 = vld [vmem:[%s1 + $0x108] sm:$0xf]
      %v1432 = vld [vmem:[%s1 + $0x10c] sm:$0xf]
      %v1433 = vld [vmem:[%s1 + $0x110] sm:$0xf]
      %v1434 = vld [vmem:[%s1 + $0x114] sm:$0xf]
      %v1435 = vld [vmem:[%s1 + $0x118] sm:$0xf]
      %v1436 = vld [vmem:[%s1 + $0x11c] sm:$0xf]
      %v1437 = vld [vmem:[%s1 + $0x120] sm:$0xf]
      %v1438 = vld [vmem:[%s1 + $0x124] sm:$0xf]
      %v1439 = vld [vmem:[%s1 + $0x128] sm:$0xf]
      %v1440 = vld [vmem:[%s1 + $0x12c] sm:$0xf]
      %v1441 = vld [vmem:[%s1 + $0x130] sm:$0xf]
      %v1442 = vld [vmem:[%s1 + $0x134] sm:$0xf]
      %v1443 = vld [vmem:[%s1 + $0x138] sm:$0xf]
      %v1444 = vld [vmem:[%s1 + $0x13c] sm:$0xf]
      %v1445 = vld [vmem:[%s1 + $0x140] sm:$0xf]
      %v1446 = vld [vmem:[%s1 + $0x144] sm:$0xf]
      %v1447 = vld [vmem:[%s1 + $0x148] sm:$0xf]
      %v1448 = vld [vmem:[%s1 + $0x14c] sm:$0xf]
      %v1449 = vld [vmem:[%s1 + $0x150] sm:$0xf]
      %v1450 = vld [vmem:[%s1 + $0x154] sm:$0xf]
      %v1451 = vld [vmem:[%s1 + $0x158] sm:$0xf]
      %v1452 = vld [vmem:[%s1 + $0x15c] sm:$0xf]
      %v1453 = vld [vmem:[%s1 + $0x160] sm:$0xf]
      %v1454 = vld [vmem:[%s1 + $0x164] sm:$0xf]
      %v1455 = vld [vmem:[%s1 + $0x168] sm:$0xf]
      %v1456 = vld [vmem:[%s1 + $0x16c] sm:$0xf]
      %v1457 = vld [vmem:[%s1 + $0x170] sm:$0xf]
      %v1458 = vld [vmem:[%s1 + $0x174] sm:$0xf]
      %v1459 = vld [vmem:[%s1 + $0x178] sm:$0xf]
      %v1460 = vld [vmem:[%s1 + $0x17c] sm:$0xf]
      %v1461 = vld [vmem:[%s1 + $0x180] sm:$0xf]
      %v1462 = vld [vmem:[%s1 + $0x184] sm:$0xf]
      %v1463 = vld [vmem:[%s1 + $0x188] sm:$0xf]
      %v1464 = vld [vmem:[%s1 + $0x18c] sm:$0xf]
      %v1465 = vld [vmem:[%s1 + $0x190] sm:$0xf]
      %v1466 = vld [vmem:[%s1 + $0x194] sm:$0xf]
      %v1467 = vld [vmem:[%s1 + $0x198] sm:$0xf]
      %v1468 = vld [vmem:[%s1 + $0x19c] sm:$0xf]
      %v1469 = vld [vmem:[%s1 + $0x1a0] sm:$0xf]
      %v1470 = vld [vmem:[%s1 + $0x1a4] sm:$0xf]
      %v1471 = vld [vmem:[%s1 + $0x1a8] sm:$0xf]
      %v1472 = vld [vmem:[%s1 + $0x1ac] sm:$0xf]
      %v1473 = vld [vmem:[%s1 + $0x1b0] sm:$0xf]
      %v1474 = vld [vmem:[%s1 + $0x1b4] sm:$0xf]
      %v1475 = vld [vmem:[%s1 + $0x1b8] sm:$0xf]
      %v1476 = vld [vmem:[%s1 + $0x1bc] sm:$0xf]
      %v1477 = vld [vmem:[%s1 + $0x1c0] sm:$0xf]
      %v1478 = vld [vmem:[%s1 + $0x1c4] sm:$0xf]
      %v1479 = vld [vmem:[%s1 + $0x1c8] sm:$0xf]
      %v1480 = vld [vmem:[%s1 + $0x1cc] sm:$0xf]
      %v1481 = vld [vmem:[%s1 + $0x1d0] sm:$0xf]
      %v1482 = vld [vmem:[%s1 + $0x1d4] sm:$0xf]
      %v1483 = vld [vmem:[%s1 + $0x1d8] sm:$0xf]
      %v1484 = vld [vmem:[%s1 + $0x1dc] sm:$0xf]
      %v1485 = vld [vmem:[%s1 + $0x1e0] sm:$0xf]
      %v1486 = vld [vmem:[%s1 + $0x1e4] sm:$0xf]
      %v1487 = vld [vmem:[%s1 + $0x1e8] sm:$0xf]
      %v1488 = vld [vmem:[%s1 + $0x1ec] sm:$0xf]
      %v1489 = vld [vmem:[%s1 + $0x1f0] sm:$0xf]
      %v1490 = vld [vmem:[%s1 + $0x1f4] sm:$0xf]
      %v1491 = vld [vmem:[%s1 + $0x1f8] sm:$0xf]
      %v1492 = vld [vmem:[%s1 + $0x1fc] sm:$0xf]
      %v1493 = vld [vmem:[%s1 + $0x200] sm:$0xf]
      %v1494 = vld [vmem:[%s1 + $0x204] sm:$0xf]
      %v1495 = vld [vmem:[%s1 + $0x208] sm:$0xf]
      %v1496 = vld [vmem:[%s1 + $0x20c] sm:$0xf]
      %v1497 = vld [vmem:[%s1 + $0x210] sm:$0xf]
      %v1498 = vld [vmem:[%s1 + $0x214] sm:$0xf]
      %v1499 = vld [vmem:[%s1 + $0x218] sm:$0xf]
      %v1500 = vld [vmem:[%s1 + $0x21c] sm:$0xf]
      %v1501 = vld [vmem:[%s1 + $0x220] sm:$0xf]
      %v1502 = vld [vmem:[%s1 + $0x224] sm:$0xf]
      %v1503 = vld [vmem:[%s1 + $0x228] sm:$0xf]
      %v1504 = vld [vmem:[%s1 + $0x22c] sm:$0xf]
      %v1505 = vld [vmem:[%s1 + $0x230] sm:$0xf]
      %v1506 = vld [vmem:[%s1 + $0x234] sm:$0xf]
      %v1507 = vld [vmem:[%s1 + $0x238] sm:$0xf]
      %v1508 = vld [vmem:[%s1 + $0x23c] sm:$0xf]
      %v1509 = vld [vmem:[%s2] sm:$0x1]
      %v1511 = vlaneseq
      %v1512 = vshrl.u32 %v1511, 7
      %v1513 = vsub.s32 0, %v1512
      %v1514 = vrot.slane %v1509, %v1513
      %v1596 = vunpack.c.l.b16 %v1285
      %v1597 = vunpack.c.h.b16 %v1285
      %v1598 = vunpack.c.l.b16 %v1286
      %v1599 = vunpack.c.h.b16 %v1286
      %v1600 = vunpack.c.l.b16 %v1287
      %v1601 = vunpack.c.h.b16 %v1287
      %v1602 = vunpack.c.l.b16 %v1288
      %v1603 = vunpack.c.h.b16 %v1288
      %v1604 = vunpack.c.l.b16 %v1289
      %v1605 = vunpack.c.l.b16 %v1290
      %v1606 = vunpack.c.h.b16 %v1290
      %v1607 = vunpack.c.l.b16 %v1291
      %v1608 = vunpack.c.h.b16 %v1291
      %v1609 = vunpack.c.l.b16 %v1292
      %v1610 = vunpack.c.h.b16 %v1292
      %v1611 = vunpack.c.l.b16 %v1293
      %v1612 = vunpack.c.h.b16 %v1293
      %v1613 = vunpack.c.l.b16 %v1294
      %v1614 = vunpack.c.l.b16 %v1295
      %v1615 = vunpack.c.h.b16 %v1295
      %v1616 = vunpack.c.l.b16 %v1296
      %v1617 = vunpack.c.h.b16 %v1296
      %v1618 = vunpack.c.l.b16 %v1297
      %v1619 = vunpack.c.h.b16 %v1297
      %v1620 = vunpack.c.l.b16 %v1298
      %v1621 = vunpack.c.h.b16 %v1298
      %v1622 = vunpack.c.l.b16 %v1299
      %v1623 = vunpack.c.l.b16 %v1300
      %v1624 = vunpack.c.h.b16 %v1300
      %v1625 = vunpack.c.l.b16 %v1301
      %v1626 = vunpack.c.h.b16 %v1301
      %v1627 = vunpack.c.l.b16 %v1302
      %v1628 = vunpack.c.h.b16 %v1302
      %v1629 = vunpack.c.l.b16 %v1303
      %v1630 = vunpack.c.h.b16 %v1303
      %v1631 = vunpack.c.l.b16 %v1304
      %v1632 = vunpack.c.l.b16 %v1305
      %v1633 = vunpack.c.h.b16 %v1305
      %v1634 = vunpack.c.l.b16 %v1306
      %v1635 = vunpack.c.h.b16 %v1306
      %v1636 = vunpack.c.l.b16 %v1307
      %v1637 = vunpack.c.h.b16 %v1307
      %v1638 = vunpack.c.l.b16 %v1308
      %v1639 = vunpack.c.h.b16 %v1308
      %v1640 = vunpack.c.l.b16 %v1309
      %v1641 = vunpack.c.l.b16 %v1310
      %v1642 = vunpack.c.h.b16 %v1310
      %v1643 = vunpack.c.l.b16 %v1311
      %v1644 = vunpack.c.h.b16 %v1311
      %v1645 = vunpack.c.l.b16 %v1312
      %v1646 = vunpack.c.h.b16 %v1312
      %v1647 = vunpack.c.l.b16 %v1313
      %v1648 = vunpack.c.h.b16 %v1313
      %v1649 = vunpack.c.l.b16 %v1314
      %v1650 = vunpack.c.l.b16 %v1315
      %v1651 = vunpack.c.h.b16 %v1315
      %v1652 = vunpack.c.l.b16 %v1316
      %v1653 = vunpack.c.h.b16 %v1316
      %v1654 = vunpack.c.l.b16 %v1317
      %v1655 = vunpack.c.h.b16 %v1317
      %v1656 = vunpack.c.l.b16 %v1318
      %v1657 = vunpack.c.h.b16 %v1318
      %v1658 = vunpack.c.l.b16 %v1319
      %v1659 = vunpack.c.l.b16 %v1320
      %v1660 = vunpack.c.h.b16 %v1320
      %v1661 = vunpack.c.l.b16 %v1321
      %v1662 = vunpack.c.h.b16 %v1321
      %v1663 = vunpack.c.l.b16 %v1322
      %v1664 = vunpack.c.h.b16 %v1322
      %v1665 = vunpack.c.l.b16 %v1323
      %v1666 = vunpack.c.h.b16 %v1323
      %v1667 = vunpack.c.l.b16 %v1324
      %v1668 = vunpack.c.l.b16 %v1325
      %v1669 = vunpack.c.h.b16 %v1325
      %v1670 = vunpack.c.l.b16 %v1326
      %v1671 = vunpack.c.h.b16 %v1326
      %v1672 = vunpack.c.l.b16 %v1327
      %v1673 = vunpack.c.h.b16 %v1327
      %v1674 = vunpack.c.l.b16 %v1328
      %v1675 = vunpack.c.h.b16 %v1328
      %v1676 = vunpack.c.l.b16 %v1329
      %v1677 = vunpack.c.l.b16 %v1330
      %v1678 = vunpack.c.h.b16 %v1330
      %v1679 = vunpack.c.l.b16 %v1331
      %v1680 = vunpack.c.h.b16 %v1331
      %v1681 = vunpack.c.l.b16 %v1332
      %v1682 = vunpack.c.h.b16 %v1332
      %v1683 = vunpack.c.l.b16 %v1333
      %v1684 = vunpack.c.h.b16 %v1333
      %v1685 = vunpack.c.l.b16 %v1334
      %v1686 = vunpack.c.l.b16 %v1335
      %v1687 = vunpack.c.h.b16 %v1335
      %v1688 = vunpack.c.l.b16 %v1336
      %v1689 = vunpack.c.h.b16 %v1336
      %v1690 = vunpack.c.l.b16 %v1337
      %v1691 = vunpack.c.h.b16 %v1337
      %v1692 = vunpack.c.l.b16 %v1338
      %v1693 = vunpack.c.h.b16 %v1338
      %v1694 = vunpack.c.l.b16 %v1339
      %v1695 = vunpack.c.l.b16 %v1340
      %v1696 = vunpack.c.h.b16 %v1340
      %v1697 = vunpack.c.l.b16 %v1341
      %v1698 = vunpack.c.h.b16 %v1341
      %v1699 = vunpack.c.l.b16 %v1342
      %v1700 = vunpack.c.h.b16 %v1342
      %v1701 = vunpack.c.l.b16 %v1343
      %v1702 = vunpack.c.h.b16 %v1343
      %v1703 = vunpack.c.l.b16 %v1344
      %v1704 = vunpack.c.l.b16 %v1345
      %v1705 = vunpack.c.h.b16 %v1345
      %v1706 = vunpack.c.l.b16 %v1346
      %v1707 = vunpack.c.h.b16 %v1346
      %v1708 = vunpack.c.l.b16 %v1347
      %v1709 = vunpack.c.h.b16 %v1347
      %v1710 = vunpack.c.l.b16 %v1348
      %v1711 = vunpack.c.h.b16 %v1348
      %v1712 = vunpack.c.l.b16 %v1349
      %v1713 = vunpack.c.l.b16 %v1350
      %v1714 = vunpack.c.h.b16 %v1350
      %v1715 = vunpack.c.l.b16 %v1351
      %v1716 = vunpack.c.h.b16 %v1351
      %v1717 = vunpack.c.l.b16 %v1352
      %v1718 = vunpack.c.h.b16 %v1352
      %v1719 = vunpack.c.l.b16 %v1353
      %v1720 = vunpack.c.h.b16 %v1353
      %v1721 = vunpack.c.l.b16 %v1354
      %v1722 = vunpack.c.l.b16 %v1355
      %v1723 = vunpack.c.h.b16 %v1355
      %v1724 = vunpack.c.l.b16 %v1356
      %v1725 = vunpack.c.h.b16 %v1356
      %v1726 = vunpack.c.l.b16 %v1357
      %v1727 = vunpack.c.h.b16 %v1357
      %v1728 = vunpack.c.l.b16 %v1358
      %v1729 = vunpack.c.h.b16 %v1358
      %v1730 = vunpack.c.l.b16 %v1359
      %v1731 = vunpack.c.l.b16 %v1360
      %v1732 = vunpack.c.h.b16 %v1360
      %v1733 = vunpack.c.l.b16 %v1361
      %v1734 = vunpack.c.h.b16 %v1361
      %v1735 = vunpack.c.l.b16 %v1362
      %v1736 = vunpack.c.h.b16 %v1362
      %v1737 = vunpack.c.l.b16 %v1363
      %v1738 = vunpack.c.h.b16 %v1363
      %v1739 = vunpack.c.l.b16 %v1364
      %v1740 = vpack.c.b16 %v1605, %v1596
      %v1741 = vpack.c.b16 %v1606, %v1597
      %v1742 = vpack.c.b16 %v1607, %v1598
      %v1743 = vpack.c.b16 %v1608, %v1599
      %v1744 = vpack.c.b16 %v1609, %v1600
      %v1745 = vpack.c.b16 %v1610, %v1601
      %v1746 = vpack.c.b16 %v1611, %v1602
      %v1747 = vpack.c.b16 %v1612, %v1603
      %v1748 = vpack.c.b16 %v1613, %v1604
      %v1749 = vpack.c.b16 %v1623, %v1614
      %v1750 = vpack.c.b16 %v1624, %v1615
      %v1751 = vpack.c.b16 %v1625, %v1616
      %v1752 = vpack.c.b16 %v1626, %v1617
      %v1753 = vpack.c.b16 %v1627, %v1618
      %v1754 = vpack.c.b16 %v1628, %v1619
      %v1755 = vpack.c.b16 %v1629, %v1620
      %v1756 = vpack.c.b16 %v1630, %v1621
      %v1757 = vpack.c.b16 %v1631, %v1622
      %v1758 = vpack.c.b16 %v1641, %v1632
      %v1759 = vpack.c.b16 %v1642, %v1633
      %v1760 = vpack.c.b16 %v1643, %v1634
      %v1761 = vpack.c.b16 %v1644, %v1635
      %v1762 = vpack.c.b16 %v1645, %v1636
      %v1763 = vpack.c.b16 %v1646, %v1637
      %v1764 = vpack.c.b16 %v1647, %v1638
      %v1765 = vpack.c.b16 %v1648, %v1639
      %v1766 = vpack.c.b16 %v1649, %v1640
      %v1767 = vpack.c.b16 %v1659, %v1650
      %v1768 = vpack.c.b16 %v1660, %v1651
      %v1769 = vpack.c.b16 %v1661, %v1652
      %v1770 = vpack.c.b16 %v1662, %v1653
      %v1771 = vpack.c.b16 %v1663, %v1654
      %v1772 = vpack.c.b16 %v1664, %v1655
      %v1773 = vpack.c.b16 %v1665, %v1656
      %v1774 = vpack.c.b16 %v1666, %v1657
      %v1775 = vpack.c.b16 %v1667, %v1658
      %v1776 = vpack.c.b16 %v1677, %v1668
      %v1777 = vpack.c.b16 %v1678, %v1669
      %v1778 = vpack.c.b16 %v1679, %v1670
      %v1779 = vpack.c.b16 %v1680, %v1671
      %v1780 = vpack.c.b16 %v1681, %v1672
      %v1781 = vpack.c.b16 %v1682, %v1673
      %v1782 = vpack.c.b16 %v1683, %v1674
      %v1783 = vpack.c.b16 %v1684, %v1675
      %v1784 = vpack.c.b16 %v1685, %v1676
      %v1785 = vpack.c.b16 %v1695, %v1686
      %v1786 = vpack.c.b16 %v1696, %v1687
      %v1787 = vpack.c.b16 %v1697, %v1688
      %v1788 = vpack.c.b16 %v1698, %v1689
      %v1789 = vpack.c.b16 %v1699, %v1690
      %v1790 = vpack.c.b16 %v1700, %v1691
      %v1791 = vpack.c.b16 %v1701, %v1692
      %v1792 = vpack.c.b16 %v1702, %v1693
      %v1793 = vpack.c.b16 %v1703, %v1694
      %v1794 = vpack.c.b16 %v1713, %v1704
      %v1795 = vpack.c.b16 %v1714, %v1705
      %v1796 = vpack.c.b16 %v1715, %v1706
      %v1797 = vpack.c.b16 %v1716, %v1707
      %v1798 = vpack.c.b16 %v1717, %v1708
      %v1799 = vpack.c.b16 %v1718, %v1709
      %v1800 = vpack.c.b16 %v1719, %v1710
      %v1801 = vpack.c.b16 %v1720, %v1711
      %v1802 = vpack.c.b16 %v1721, %v1712
      %v1803 = vpack.c.b16 %v1731, %v1722
      %v1804 = vpack.c.b16 %v1732, %v1723
      %v1805 = vpack.c.b16 %v1733, %v1724
      %v1806 = vpack.c.b16 %v1734, %v1725
      %v1807 = vpack.c.b16 %v1735, %v1726
      %v1808 = vpack.c.b16 %v1736, %v1727
      %v1809 = vpack.c.b16 %v1737, %v1728
      %v1810 = vpack.c.b16 %v1738, %v1729
      %v1811 = vpack.c.b16 %v1739, %v1730
      %v2028 = vunpack.c.l.b16 %v1365
      %v2029 = vunpack.c.l.b16 %v1366
      %v2030 = vunpack.c.l.b16 %v1367
      %v2031 = vunpack.c.l.b16 %v1368
      %v2032 = vunpack.c.l.b16 %v1369
      %v2033 = vunpack.c.l.b16 %v1370
      %v2034 = vunpack.c.l.b16 %v1371
      %v2035 = vunpack.c.l.b16 %v1372
      %v2036 = vunpack.c.l.b16 %v1373
      %v2037 = vunpack.c.l.b16 %v1374
      %v2038 = vunpack.c.l.b16 %v1375
      %v2039 = vunpack.c.l.b16 %v1376
      %v2040 = vunpack.c.l.b16 %v1377
      %v2041 = vunpack.c.l.b16 %v1378
      %v2042 = vunpack.c.l.b16 %v1379
      %v2043 = vunpack.c.l.b16 %v1380
      %v2044 = vunpack.c.l.b16 %v1381
      %v2045 = vunpack.c.l.b16 %v1382
      %v2046 = vunpack.c.l.b16 %v1383
      %v2047 = vunpack.c.l.b16 %v1384
      %v2048 = vunpack.c.l.b16 %v1385
      %v2049 = vunpack.c.l.b16 %v1386
      %v2050 = vunpack.c.l.b16 %v1387
      %v2051 = vunpack.c.l.b16 %v1388
      %v2052 = vunpack.c.l.b16 %v1389
      %v2053 = vunpack.c.l.b16 %v1390
      %v2054 = vunpack.c.l.b16 %v1391
      %v2055 = vunpack.c.l.b16 %v1392
      %v2056 = vunpack.c.l.b16 %v1393
      %v2057 = vunpack.c.l.b16 %v1394
      %v2058 = vunpack.c.l.b16 %v1395
      %v2059 = vunpack.c.l.b16 %v1396
      %v2060 = vunpack.c.l.b16 %v1397
      %v2061 = vunpack.c.l.b16 %v1398
      %v2062 = vunpack.c.l.b16 %v1399
      %v2063 = vunpack.c.l.b16 %v1400
      %v2064 = vunpack.c.l.b16 %v1401
      %v2065 = vunpack.c.l.b16 %v1402
      %v2066 = vunpack.c.l.b16 %v1403
      %v2067 = vunpack.c.l.b16 %v1404
      %v2068 = vunpack.c.l.b16 %v1405
      %v2069 = vunpack.c.l.b16 %v1406
      %v2070 = vunpack.c.l.b16 %v1407
      %v2071 = vunpack.c.l.b16 %v1408
      %v2072 = vunpack.c.l.b16 %v1409
      %v2073 = vunpack.c.l.b16 %v1410
      %v2074 = vunpack.c.l.b16 %v1411
      %v2075 = vunpack.c.l.b16 %v1412
      %v2076 = vunpack.c.l.b16 %v1413
      %v2077 = vunpack.c.l.b16 %v1414
      %v2078 = vunpack.c.l.b16 %v1415
      %v2079 = vunpack.c.l.b16 %v1416
      %v2080 = vunpack.c.l.b16 %v1417
      %v2081 = vunpack.c.l.b16 %v1418
      %v2082 = vunpack.c.l.b16 %v1419
      %v2083 = vunpack.c.l.b16 %v1420
      %v2084 = vunpack.c.l.b16 %v1421
      %v2085 = vunpack.c.l.b16 %v1422
      %v2086 = vunpack.c.l.b16 %v1423
      %v2087 = vunpack.c.l.b16 %v1424
      %v2088 = vunpack.c.l.b16 %v1425
      %v2089 = vunpack.c.l.b16 %v1426
      %v2090 = vunpack.c.l.b16 %v1427
      %v2091 = vunpack.c.l.b16 %v1428
      %v2092 = vunpack.c.l.b16 %v1429
      %v2093 = vunpack.c.l.b16 %v1430
      %v2094 = vunpack.c.l.b16 %v1431
      %v2095 = vunpack.c.l.b16 %v1432
      %v2096 = vunpack.c.l.b16 %v1433
      %v2097 = vunpack.c.l.b16 %v1434
      %v2098 = vunpack.c.l.b16 %v1435
      %v2099 = vunpack.c.l.b16 %v1436
      %v2100 = vunpack.c.l.b16 %v1437
      %v2101 = vunpack.c.l.b16 %v1438
      %v2102 = vunpack.c.l.b16 %v1439
      %v2103 = vunpack.c.l.b16 %v1440
      %v2104 = vunpack.c.l.b16 %v1441
      %v2105 = vunpack.c.l.b16 %v1442
      %v2106 = vunpack.c.l.b16 %v1443
      %v2107 = vunpack.c.l.b16 %v1444
      %v2108 = vunpack.c.l.b16 %v1445
      %v2109 = vunpack.c.l.b16 %v1446
      %v2110 = vunpack.c.l.b16 %v1447
      %v2111 = vunpack.c.l.b16 %v1448
      %v2112 = vunpack.c.l.b16 %v1449
      %v2113 = vunpack.c.l.b16 %v1450
      %v2114 = vunpack.c.l.b16 %v1451
      %v2115 = vunpack.c.l.b16 %v1452
      %v2116 = vunpack.c.l.b16 %v1453
      %v2117 = vunpack.c.l.b16 %v1454
      %v2118 = vunpack.c.l.b16 %v1455
      %v2119 = vunpack.c.l.b16 %v1456
      %v2120 = vunpack.c.l.b16 %v1457
      %v2121 = vunpack.c.l.b16 %v1458
      %v2122 = vunpack.c.l.b16 %v1459
      %v2123 = vunpack.c.l.b16 %v1460
      %v2124 = vunpack.c.l.b16 %v1461
      %v2125 = vunpack.c.l.b16 %v1462
      %v2126 = vunpack.c.l.b16 %v1463
      %v2127 = vunpack.c.l.b16 %v1464
      %v2128 = vunpack.c.l.b16 %v1465
      %v2129 = vunpack.c.l.b16 %v1466
      %v2130 = vunpack.c.l.b16 %v1467
      %v2131 = vunpack.c.l.b16 %v1468
      %v2132 = vunpack.c.l.b16 %v1469
      %v2133 = vunpack.c.l.b16 %v1470
      %v2134 = vunpack.c.l.b16 %v1471
      %v2135 = vunpack.c.l.b16 %v1472
      %v2136 = vunpack.c.l.b16 %v1473
      %v2137 = vunpack.c.l.b16 %v1474
      %v2138 = vunpack.c.l.b16 %v1475
      %v2139 = vunpack.c.l.b16 %v1476
      %v2140 = vunpack.c.l.b16 %v1477
      %v2141 = vunpack.c.l.b16 %v1478
      %v2142 = vunpack.c.l.b16 %v1479
      %v2143 = vunpack.c.l.b16 %v1480
      %v2144 = vunpack.c.l.b16 %v1481
      %v2145 = vunpack.c.l.b16 %v1482
      %v2146 = vunpack.c.l.b16 %v1483
      %v2147 = vunpack.c.l.b16 %v1484
      %v2148 = vunpack.c.l.b16 %v1485
      %v2149 = vunpack.c.l.b16 %v1486
      %v2150 = vunpack.c.l.b16 %v1487
      %v2151 = vunpack.c.l.b16 %v1488
      %v2152 = vunpack.c.l.b16 %v1489
      %v2153 = vunpack.c.l.b16 %v1490
      %v2154 = vunpack.c.l.b16 %v1491
      %v2155 = vunpack.c.l.b16 %v1492
      %v2156 = vunpack.c.l.b16 %v1493
      %v2157 = vunpack.c.l.b16 %v1494
      %v2158 = vunpack.c.l.b16 %v1495
      %v2159 = vunpack.c.l.b16 %v1496
      %v2160 = vunpack.c.l.b16 %v1497
      %v2161 = vunpack.c.l.b16 %v1498
      %v2162 = vunpack.c.l.b16 %v1499
      %v2163 = vunpack.c.l.b16 %v1500
      %v2164 = vunpack.c.l.b16 %v1501
      %v2165 = vunpack.c.l.b16 %v1502
      %v2166 = vunpack.c.l.b16 %v1503
      %v2167 = vunpack.c.l.b16 %v1504
      %v2168 = vunpack.c.l.b16 %v1505
      %v2169 = vunpack.c.l.b16 %v1506
      %v2170 = vunpack.c.l.b16 %v1507
      %v2171 = vunpack.c.l.b16 %v1508
      %v2172 = vpack.c.b16 %v2029, %v2028
      %v2173 = vpack.c.b16 %v2031, %v2030
      %v2174 = vpack.c.b16 %v2033, %v2032
      %v2175 = vpack.c.b16 %v2035, %v2034
      %v2176 = vpack.c.b16 %v2037, %v2036
      %v2177 = vpack.c.b16 %v2039, %v2038
      %v2178 = vpack.c.b16 %v2041, %v2040
      %v2179 = vpack.c.b16 %v2043, %v2042
      %v2180 = vpack.c.b16 %v2045, %v2044
      %v2181 = vpack.c.b16 %v2047, %v2046
      %v2182 = vpack.c.b16 %v2049, %v2048
      %v2183 = vpack.c.b16 %v2051, %v2050
      %v2184 = vpack.c.b16 %v2053, %v2052
      %v2185 = vpack.c.b16 %v2055, %v2054
      %v2186 = vpack.c.b16 %v2057, %v2056
      %v2187 = vpack.c.b16 %v2059, %v2058
      %v2188 = vpack.c.b16 %v2061, %v2060
      %v2189 = vpack.c.b16 %v2063, %v2062
      %v2190 = vpack.c.b16 %v2065, %v2064
      %v2191 = vpack.c.b16 %v2067, %v2066
      %v2192 = vpack.c.b16 %v2069, %v2068
      %v2193 = vpack.c.b16 %v2071, %v2070
      %v2194 = vpack.c.b16 %v2073, %v2072
      %v2195 = vpack.c.b16 %v2075, %v2074
      %v2196 = vpack.c.b16 %v2077, %v2076
      %v2197 = vpack.c.b16 %v2079, %v2078
      %v2198 = vpack.c.b16 %v2081, %v2080
      %v2199 = vpack.c.b16 %v2083, %v2082
      %v2200 = vpack.c.b16 %v2085, %v2084
      %v2201 = vpack.c.b16 %v2087, %v2086
      %v2202 = vpack.c.b16 %v2089, %v2088
      %v2203 = vpack.c.b16 %v2091, %v2090
      %v2204 = vpack.c.b16 %v2093, %v2092
      %v2205 = vpack.c.b16 %v2095, %v2094
      %v2206 = vpack.c.b16 %v2097, %v2096
      %v2207 = vpack.c.b16 %v2099, %v2098
      %v2208 = vpack.c.b16 %v2101, %v2100
      %v2209 = vpack.c.b16 %v2103, %v2102
      %v2210 = vpack.c.b16 %v2105, %v2104
      %v2211 = vpack.c.b16 %v2107, %v2106
      %v2212 = vpack.c.b16 %v2109, %v2108
      %v2213 = vpack.c.b16 %v2111, %v2110
      %v2214 = vpack.c.b16 %v2113, %v2112
      %v2215 = vpack.c.b16 %v2115, %v2114
      %v2216 = vpack.c.b16 %v2117, %v2116
      %v2217 = vpack.c.b16 %v2119, %v2118
      %v2218 = vpack.c.b16 %v2121, %v2120
      %v2219 = vpack.c.b16 %v2123, %v2122
      %v2220 = vpack.c.b16 %v2125, %v2124
      %v2221 = vpack.c.b16 %v2127, %v2126
      %v2222 = vpack.c.b16 %v2129, %v2128
      %v2223 = vpack.c.b16 %v2131, %v2130
      %v2224 = vpack.c.b16 %v2133, %v2132
      %v2225 = vpack.c.b16 %v2135, %v2134
      %v2226 = vpack.c.b16 %v2137, %v2136
      %v2227 = vpack.c.b16 %v2139, %v2138
      %v2228 = vpack.c.b16 %v2141, %v2140
      %v2229 = vpack.c.b16 %v2143, %v2142
      %v2230 = vpack.c.b16 %v2145, %v2144
      %v2231 = vpack.c.b16 %v2147, %v2146
      %v2232 = vpack.c.b16 %v2149, %v2148
      %v2233 = vpack.c.b16 %v2151, %v2150
      %v2234 = vpack.c.b16 %v2153, %v2152
      %v2235 = vpack.c.b16 %v2155, %v2154
      %v2236 = vpack.c.b16 %v2157, %v2156
      %v2237 = vpack.c.b16 %v2159, %v2158
      %v2238 = vpack.c.b16 %v2161, %v2160
      %v2239 = vpack.c.b16 %v2163, %v2162
      %v2240 = vpack.c.b16 %v2165, %v2164
      %v2241 = vpack.c.b16 %v2167, %v2166
      %v2242 = vpack.c.b16 %v2169, %v2168
      %v2243 = vpack.c.b16 %v2171, %v2170
      %2316 = vmatprep.subr.bf16.mxu0 0
      %2317 = vmatpush1.bf16.msra.mxu0 %v2179
      %2318 = vmatprep.subr.bf16.mxu0 0
      %2319 = vmatpush1.bf16.msra.mxu0 %v2178
      %2320 = vmatprep.subr.bf16.mxu0 0
      %2321 = vmatpush1.bf16.msra.mxu0 %v2177
      %2322 = vmatprep.subr.bf16.mxu0 0
      %2323 = vmatpush1.bf16.msra.mxu0 %v2176
      %2324 = vmatprep.subr.bf16.mxu0 0
      %2325 = vmatpush1.bf16.msra.mxu0 %v2175
      %2326 = vmatprep.subr.bf16.mxu0 0
      %2327 = vmatpush1.bf16.msra.mxu0 %v2174
      %2328 = vmatprep.subr.bf16.mxu0 0
      %2329 = vmatpush1.bf16.msra.mxu0 %v2173
      %2330 = vmatprep.subr.bf16.mxu0 0
      %2331 = vmatpush1.bf16.msra.mxu0 %v2172
      %2332 = vmatprep.subr.bf16.mxu0 0
      %2333 = vmatpush2.bf16.msra.mxu0 %v2187
      %2334 = vmatprep.subr.bf16.mxu0 0
      %2335 = vmatpush2.bf16.msra.mxu0 %v2186
      %2336 = vmatprep.subr.bf16.mxu0 0
      %2337 = vmatpush2.bf16.msra.mxu0 %v2185
      %2338 = vmatprep.subr.bf16.mxu0 0
      %2339 = vmatpush2.bf16.msra.mxu0 %v2184
      %2340 = vmatprep.subr.bf16.mxu0 0
      %2341 = vmatpush2.bf16.msra.mxu0 %v2183
      %2342 = vmatprep.subr.bf16.mxu0 0
      %2343 = vmatpush2.bf16.msra.mxu0 %v2182
      %2344 = vmatprep.subr.bf16.mxu0 0
      %2345 = vmatpush2.bf16.msra.mxu0 %v2181
      %2346 = vmatprep.subr.bf16.mxu0 0
      %2347 = vmatpush2.bf16.msra.mxu0 %v2180
      %2348 = vmatprep.mubr.bf16.mxu0 %v1741
      %2349 = vmatmul.mubr.bf16.gmra.mxu0 %v1740
      %v2350 = vpop.f32.mrf.mxu0
      %v2351 = vadd.f32 %v1514, %v2350
      %v2352 = vpop.f32.mrf.mxu0
      %v2353 = vpop.f32.mrf.mxu0
      %v2354 = vadd.f32 %v1514, %v2353
      %v2355 = vpop.f32.mrf.mxu0
      %2356 = vmatprep.mubr.bf16.mxu0 %v1750
      %2357 = vmatmul.mubr.bf16.gmra.mxu0 %v1749
      %v2358 = vpop.f32.mrf.mxu0
      %v2359 = vadd.f32 %v1514, %v2358
      %v2360 = vpop.f32.mrf.mxu0
      %v2361 = vpop.f32.mrf.mxu0
      %v2362 = vadd.f32 %v1514, %v2361
      %v2363 = vpop.f32.mrf.mxu0
      %2364 = vmatprep.mubr.bf16.mxu0 %v1759
      %2365 = vmatmul.mubr.bf16.gmra.mxu0 %v1758
      %v2366 = vpop.f32.mrf.mxu0
      %v2367 = vadd.f32 %v1514, %v2366
      %v2368 = vpop.f32.mrf.mxu0
      %v2369 = vpop.f32.mrf.mxu0
      %v2370 = vadd.f32 %v1514, %v2369
      %v2371 = vpop.f32.mrf.mxu0
      %2372 = vmatprep.mubr.bf16.mxu0 %v1768
      %2373 = vmatmul.mubr.bf16.gmra.mxu0 %v1767
      %v2374 = vpop.f32.mrf.mxu0
      %v2375 = vadd.f32 %v1514, %v2374
      %v2376 = vpop.f32.mrf.mxu0
      %v2377 = vpop.f32.mrf.mxu0
      %v2378 = vadd.f32 %v1514, %v2377
      %v2379 = vpop.f32.mrf.mxu0
      %2380 = vmatprep.mubr.bf16.mxu0 %v1777
      %2381 = vmatmul.mubr.bf16.gmra.mxu0 %v1776
      %v2382 = vpop.f32.mrf.mxu0
      %v2383 = vadd.f32 %v1514, %v2382
      %v2384 = vpop.f32.mrf.mxu0
      %v2385 = vpop.f32.mrf.mxu0
      %v2386 = vadd.f32 %v1514, %v2385
      %v2387 = vpop.f32.mrf.mxu0
      %2388 = vmatprep.mubr.bf16.mxu0 %v1786
      %2389 = vmatmul.mubr.bf16.gmra.mxu0 %v1785
      %v2390 = vpop.f32.mrf.mxu0
      %v2391 = vadd.f32 %v1514, %v2390
      %v2392 = vpop.f32.mrf.mxu0
      %v2393 = vpop.f32.mrf.mxu0
      %v2394 = vadd.f32 %v1514, %v2393
      %v2395 = vpop.f32.mrf.mxu0
      %2396 = vmatprep.mubr.bf16.mxu0 %v1795
      %2397 = vmatmul.mubr.bf16.gmra.mxu0 %v1794
      %v2398 = vpop.f32.mrf.mxu0
      %v2399 = vadd.f32 %v1514, %v2398
      %v2400 = vpop.f32.mrf.mxu0
      %v2401 = vpop.f32.mrf.mxu0
      %v2402 = vadd.f32 %v1514, %v2401
      %v2403 = vpop.f32.mrf.mxu0
      %2404 = vmatprep.mubr.bf16.mxu0 %v1804
      %2405 = vmatmul.mubr.bf16.gmra.mxu0 %v1803
      %v2406 = vpop.f32.mrf.mxu0
      %v2407 = vadd.f32 %v1514, %v2406
      %v2408 = vpop.f32.mrf.mxu0
      %v2409 = vpop.f32.mrf.mxu0
      %v2410 = vadd.f32 %v1514, %v2409
      %v2411 = vpop.f32.mrf.mxu0
      %2412 = vdwg.mxu0
      %2413 = vmatprep.subr.bf16.mxu0 0
      %2414 = vmatpush1.bf16.msra.mxu0 %v2195
      %2415 = vmatprep.subr.bf16.mxu0 0
      %2416 = vmatpush1.bf16.msra.mxu0 %v2194
      %2417 = vmatprep.subr.bf16.mxu0 0
      %2418 = vmatpush1.bf16.msra.mxu0 %v2193
      %2419 = vmatprep.subr.bf16.mxu0 0
      %2420 = vmatpush1.bf16.msra.mxu0 %v2192
      %2421 = vmatprep.subr.bf16.mxu0 0
      %2422 = vmatpush1.bf16.msra.mxu0 %v2191
      %2423 = vmatprep.subr.bf16.mxu0 0
      %2424 = vmatpush1.bf16.msra.mxu0 %v2190
      %2425 = vmatprep.subr.bf16.mxu0 0
      %2426 = vmatpush1.bf16.msra.mxu0 %v2189
      %2427 = vmatprep.subr.bf16.mxu0 0
      %2428 = vmatpush1.bf16.msra.mxu0 %v2188
      %2429 = vmatprep.subr.bf16.mxu0 0
      %2430 = vmatpush2.bf16.msra.mxu0 %v2203
      %2431 = vmatprep.subr.bf16.mxu0 0
      %2432 = vmatpush2.bf16.msra.mxu0 %v2202
      %2433 = vmatprep.subr.bf16.mxu0 0
      %2434 = vmatpush2.bf16.msra.mxu0 %v2201
      %2435 = vmatprep.subr.bf16.mxu0 0
      %2436 = vmatpush2.bf16.msra.mxu0 %v2200
      %2437 = vmatprep.subr.bf16.mxu0 0
      %2438 = vmatpush2.bf16.msra.mxu0 %v2199
      %2439 = vmatprep.subr.bf16.mxu0 0
      %2440 = vmatpush2.bf16.msra.mxu0 %v2198
      %2441 = vmatprep.subr.bf16.mxu0 0
      %2442 = vmatpush2.bf16.msra.mxu0 %v2197
      %2443 = vmatprep.subr.bf16.mxu0 0
      %2444 = vmatpush2.bf16.msra.mxu0 %v2196
      %2445 = vmatprep.mubr.bf16.mxu0 %v1743
      %2446 = vmatmul.mubr.bf16.gmra.mxu0 %v1742
      %v2447 = vpop.f32.mrf.mxu0
      %v2448 = vadd.f32 %v2351, %v2447
      %v2449 = vpop.f32.mrf.mxu0
      %v2450 = vpop.f32.mrf.mxu0
      %v2451 = vadd.f32 %v2354, %v2450
      %v2452 = vpop.f32.mrf.mxu0
      %2453 = vmatprep.mubr.bf16.mxu0 %v1752
      %2454 = vmatmul.mubr.bf16.gmra.mxu0 %v1751
      %v2455 = vpop.f32.mrf.mxu0
      %v2456 = vadd.f32 %v2359, %v2455
      %v2457 = vpop.f32.mrf.mxu0
      %v2458 = vpop.f32.mrf.mxu0
      %v2459 = vadd.f32 %v2362, %v2458
      %v2460 = vpop.f32.mrf.mxu0
      %2461 = vmatprep.mubr.bf16.mxu0 %v1761
      %2462 = vmatmul.mubr.bf16.gmra.mxu0 %v1760
      %v2463 = vpop.f32.mrf.mxu0
      %v2464 = vadd.f32 %v2367, %v2463
      %v2465 = vpop.f32.mrf.mxu0
      %v2466 = vpop.f32.mrf.mxu0
      %v2467 = vadd.f32 %v2370, %v2466
      %v2468 = vpop.f32.mrf.mxu0
      %2469 = vmatprep.mubr.bf16.mxu0 %v1770
      %2470 = vmatmul.mubr.bf16.gmra.mxu0 %v1769
      %v2471 = vpop.f32.mrf.mxu0
      %v2472 = vadd.f32 %v2375, %v2471
      %v2473 = vpop.f32.mrf.mxu0
      %v2474 = vpop.f32.mrf.mxu0
      %v2475 = vadd.f32 %v2378, %v2474
      %v2476 = vpop.f32.mrf.mxu0
      %2477 = vmatprep.mubr.bf16.mxu0 %v1779
      %2478 = vmatmul.mubr.bf16.gmra.mxu0 %v1778
      %v2479 = vpop.f32.mrf.mxu0
      %v2480 = vadd.f32 %v2383, %v2479
      %v2481 = vpop.f32.mrf.mxu0
      %v2482 = vpop.f32.mrf.mxu0
      %v2483 = vadd.f32 %v2386, %v2482
      %v2484 = vpop.f32.mrf.mxu0
      %2485 = vmatprep.mubr.bf16.mxu0 %v1788
      %2486 = vmatmul.mubr.bf16.gmra.mxu0 %v1787
      %v2487 = vpop.f32.mrf.mxu0
      %v2488 = vadd.f32 %v2391, %v2487
      %v2489 = vpop.f32.mrf.mxu0
      %v2490 = vpop.f32.mrf.mxu0
      %v2491 = vadd.f32 %v2394, %v2490
      %v2492 = vpop.f32.mrf.mxu0
      %2493 = vmatprep.mubr.bf16.mxu0 %v1797
      %2494 = vmatmul.mubr.bf16.gmra.mxu0 %v1796
      %v2495 = vpop.f32.mrf.mxu0
      %v2496 = vadd.f32 %v2399, %v2495
      %v2497 = vpop.f32.mrf.mxu0
      %v2498 = vpop.f32.mrf.mxu0
      %v2499 = vadd.f32 %v2402, %v2498
      %v2500 = vpop.f32.mrf.mxu0
      %2501 = vmatprep.mubr.bf16.mxu0 %v1806
      %2502 = vmatmul.mubr.bf16.gmra.mxu0 %v1805
      %v2503 = vpop.f32.mrf.mxu0
      %v2504 = vadd.f32 %v2407, %v2503
      %v2505 = vpop.f32.mrf.mxu0
      %v2506 = vpop.f32.mrf.mxu0
      %v2507 = vadd.f32 %v2410, %v2506
      %v2508 = vpop.f32.mrf.mxu0
      %2509 = vdwg.mxu0
      %2510 = vmatprep.subr.bf16.mxu0 0
      %2511 = vmatpush1.bf16.msra.mxu0 %v2211
      %2512 = vmatprep.subr.bf16.mxu0 0
      %2513 = vmatpush1.bf16.msra.mxu0 %v2210
      %2514 = vmatprep.subr.bf16.mxu0 0
      %2515 = vmatpush1.bf16.msra.mxu0 %v2209
      %2516 = vmatprep.subr.bf16.mxu0 0
      %2517 = vmatpush1.bf16.msra.mxu0 %v2208
      %2518 = vmatprep.subr.bf16.mxu0 0
      %2519 = vmatpush1.bf16.msra.mxu0 %v2207
      %2520 = vmatprep.subr.bf16.mxu0 0
      %2521 = vmatpush1.bf16.msra.mxu0 %v2206
      %2522 = vmatprep.subr.bf16.mxu0 0
      %2523 = vmatpush1.bf16.msra.mxu0 %v2205
      %2524 = vmatprep.subr.bf16.mxu0 0
      %2525 = vmatpush1.bf16.msra.mxu0 %v2204
      %2526 = vmatprep.subr.bf16.mxu0 0
      %2527 = vmatpush2.bf16.msra.mxu0 %v2219
      %2528 = vmatprep.subr.bf16.mxu0 0
      %2529 = vmatpush2.bf16.msra.mxu0 %v2218
      %2530 = vmatprep.subr.bf16.mxu0 0
      %2531 = vmatpush2.bf16.msra.mxu0 %v2217
      %2532 = vmatprep.subr.bf16.mxu0 0
      %2533 = vmatpush2.bf16.msra.mxu0 %v2216
      %2534 = vmatprep.subr.bf16.mxu0 0
      %2535 = vmatpush2.bf16.msra.mxu0 %v2215
      %2536 = vmatprep.subr.bf16.mxu0 0
      %2537 = vmatpush2.bf16.msra.mxu0 %v2214
      %2538 = vmatprep.subr.bf16.mxu0 0
      %2539 = vmatpush2.bf16.msra.mxu0 %v2213
      %2540 = vmatprep.subr.bf16.mxu0 0
      %2541 = vmatpush2.bf16.msra.mxu0 %v2212
      %2542 = vmatprep.mubr.bf16.mxu0 %v1745
      %2543 = vmatmul.mubr.bf16.gmra.mxu0 %v1744
      %v2544 = vpop.f32.mrf.mxu0
      %v2545 = vadd.f32 %v2448, %v2544
      %v2546 = vpop.f32.mrf.mxu0
      %v2547 = vpop.f32.mrf.mxu0
      %v2548 = vadd.f32 %v2451, %v2547
      %v2549 = vpop.f32.mrf.mxu0
      %2550 = vmatprep.mubr.bf16.mxu0 %v1754
      %2551 = vmatmul.mubr.bf16.gmra.mxu0 %v1753
      %v2552 = vpop.f32.mrf.mxu0
      %v2553 = vadd.f32 %v2456, %v2552
      %v2554 = vpop.f32.mrf.mxu0
      %v2555 = vpop.f32.mrf.mxu0
      %v2556 = vadd.f32 %v2459, %v2555
      %v2557 = vpop.f32.mrf.mxu0
      %2558 = vmatprep.mubr.bf16.mxu0 %v1763
      %2559 = vmatmul.mubr.bf16.gmra.mxu0 %v1762
      %v2560 = vpop.f32.mrf.mxu0
      %v2561 = vadd.f32 %v2464, %v2560
      %v2562 = vpop.f32.mrf.mxu0
      %v2563 = vpop.f32.mrf.mxu0
      %v2564 = vadd.f32 %v2467, %v2563
      %v2565 = vpop.f32.mrf.mxu0
      %2566 = vmatprep.mubr.bf16.mxu0 %v1772
      %2567 = vmatmul.mubr.bf16.gmra.mxu0 %v1771
      %v2568 = vpop.f32.mrf.mxu0
      %v2569 = vadd.f32 %v2472, %v2568
      %v2570 = vpop.f32.mrf.mxu0
      %v2571 = vpop.f32.mrf.mxu0
      %v2572 = vadd.f32 %v2475, %v2571
      %v2573 = vpop.f32.mrf.mxu0
      %2574 = vmatprep.mubr.bf16.mxu0 %v1781
      %2575 = vmatmul.mubr.bf16.gmra.mxu0 %v1780
      %v2576 = vpop.f32.mrf.mxu0
      %v2577 = vadd.f32 %v2480, %v2576
      %v2578 = vpop.f32.mrf.mxu0
      %v2579 = vpop.f32.mrf.mxu0
      %v2580 = vadd.f32 %v2483, %v2579
      %v2581 = vpop.f32.mrf.mxu0
      %2582 = vmatprep.mubr.bf16.mxu0 %v1790
      %2583 = vmatmul.mubr.bf16.gmra.mxu0 %v1789
      %v2584 = vpop.f32.mrf.mxu0
      %v2585 = vadd.f32 %v2488, %v2584
      %v2586 = vpop.f32.mrf.mxu0
      %v2587 = vpop.f32.mrf.mxu0
      %v2588 = vadd.f32 %v2491, %v2587
      %v2589 = vpop.f32.mrf.mxu0
      %2590 = vmatprep.mubr.bf16.mxu0 %v1799
      %2591 = vmatmul.mubr.bf16.gmra.mxu0 %v1798
      %v2592 = vpop.f32.mrf.mxu0
      %v2593 = vadd.f32 %v2496, %v2592
      %v2594 = vpop.f32.mrf.mxu0
      %v2595 = vpop.f32.mrf.mxu0
      %v2596 = vadd.f32 %v2499, %v2595
      %v2597 = vpop.f32.mrf.mxu0
      %2598 = vmatprep.mubr.bf16.mxu0 %v1808
      %2599 = vmatmul.mubr.bf16.gmra.mxu0 %v1807
      %v2600 = vpop.f32.mrf.mxu0
      %v2601 = vadd.f32 %v2504, %v2600
      %v2602 = vpop.f32.mrf.mxu0
      %v2603 = vpop.f32.mrf.mxu0
      %v2604 = vadd.f32 %v2507, %v2603
      %v2605 = vpop.f32.mrf.mxu0
      %2606 = vdwg.mxu0
      %2607 = vmatprep.subr.bf16.mxu0 0
      %2608 = vmatpush1.bf16.msra.mxu0 %v2227
      %2609 = vmatprep.subr.bf16.mxu0 0
      %2610 = vmatpush1.bf16.msra.mxu0 %v2226
      %2611 = vmatprep.subr.bf16.mxu0 0
      %2612 = vmatpush1.bf16.msra.mxu0 %v2225
      %2613 = vmatprep.subr.bf16.mxu0 0
      %2614 = vmatpush1.bf16.msra.mxu0 %v2224
      %2615 = vmatprep.subr.bf16.mxu0 0
      %2616 = vmatpush1.bf16.msra.mxu0 %v2223
      %2617 = vmatprep.subr.bf16.mxu0 0
      %2618 = vmatpush1.bf16.msra.mxu0 %v2222
      %2619 = vmatprep.subr.bf16.mxu0 0
      %2620 = vmatpush1.bf16.msra.mxu0 %v2221
      %2621 = vmatprep.subr.bf16.mxu0 0
      %2622 = vmatpush1.bf16.msra.mxu0 %v2220
      %2623 = vmatprep.subr.bf16.mxu0 0
      %2624 = vmatpush2.bf16.msra.mxu0 %v2235
      %2625 = vmatprep.subr.bf16.mxu0 0
      %2626 = vmatpush2.bf16.msra.mxu0 %v2234
      %2627 = vmatprep.subr.bf16.mxu0 0
      %2628 = vmatpush2.bf16.msra.mxu0 %v2233
      %2629 = vmatprep.subr.bf16.mxu0 0
      %2630 = vmatpush2.bf16.msra.mxu0 %v2232
      %2631 = vmatprep.subr.bf16.mxu0 0
      %2632 = vmatpush2.bf16.msra.mxu0 %v2231
      %2633 = vmatprep.subr.bf16.mxu0 0
      %2634 = vmatpush2.bf16.msra.mxu0 %v2230
      %2635 = vmatprep.subr.bf16.mxu0 0
      %2636 = vmatpush2.bf16.msra.mxu0 %v2229
      %2637 = vmatprep.subr.bf16.mxu0 0
      %2638 = vmatpush2.bf16.msra.mxu0 %v2228
      %2639 = vmatprep.mubr.bf16.mxu0 %v1747
      %2640 = vmatmul.mubr.bf16.gmra.mxu0 %v1746
      %v2641 = vpop.f32.mrf.mxu0
      %v2642 = vadd.f32 %v2545, %v2641
      %v2643 = vpop.f32.mrf.mxu0
      %v2644 = vpop.f32.mrf.mxu0
      %v2645 = vadd.f32 %v2548, %v2644
      %v2646 = vpop.f32.mrf.mxu0
      %2647 = vmatprep.mubr.bf16.mxu0 %v1756
      %2648 = vmatmul.mubr.bf16.gmra.mxu0 %v1755
      %v2649 = vpop.f32.mrf.mxu0
      %v2650 = vadd.f32 %v2553, %v2649
      %v2651 = vpop.f32.mrf.mxu0
      %v2652 = vpop.f32.mrf.mxu0
      %v2653 = vadd.f32 %v2556, %v2652
      %v2654 = vpop.f32.mrf.mxu0
      %2655 = vmatprep.mubr.bf16.mxu0 %v1765
      %2656 = vmatmul.mubr.bf16.gmra.mxu0 %v1764
      %v2657 = vpop.f32.mrf.mxu0
      %v2658 = vadd.f32 %v2561, %v2657
      %v2659 = vpop.f32.mrf.mxu0
      %v2660 = vpop.f32.mrf.mxu0
      %v2661 = vadd.f32 %v2564, %v2660
      %v2662 = vpop.f32.mrf.mxu0
      %2663 = vmatprep.mubr.bf16.mxu0 %v1774
      %2664 = vmatmul.mubr.bf16.gmra.mxu0 %v1773
      %v2665 = vpop.f32.mrf.mxu0
      %v2666 = vadd.f32 %v2569, %v2665
      %v2667 = vpop.f32.mrf.mxu0
      %v2668 = vpop.f32.mrf.mxu0
      %v2669 = vadd.f32 %v2572, %v2668
      %v2670 = vpop.f32.mrf.mxu0
      %2671 = vmatprep.mubr.bf16.mxu0 %v1783
      %2672 = vmatmul.mubr.bf16.gmra.mxu0 %v1782
      %v2673 = vpop.f32.mrf.mxu0
      %v2674 = vadd.f32 %v2577, %v2673
      %v2675 = vpop.f32.mrf.mxu0
      %v2676 = vpop.f32.mrf.mxu0
      %v2677 = vadd.f32 %v2580, %v2676
      %v2678 = vpop.f32.mrf.mxu0
      %2679 = vmatprep.mubr.bf16.mxu0 %v1792
      %2680 = vmatmul.mubr.bf16.gmra.mxu0 %v1791
      %v2681 = vpop.f32.mrf.mxu0
      %v2682 = vadd.f32 %v2585, %v2681
      %v2683 = vpop.f32.mrf.mxu0
      %v2684 = vpop.f32.mrf.mxu0
      %v2685 = vadd.f32 %v2588, %v2684
      %v2686 = vpop.f32.mrf.mxu0
      %2687 = vmatprep.mubr.bf16.mxu0 %v1801
      %2688 = vmatmul.mubr.bf16.gmra.mxu0 %v1800
      %v2689 = vpop.f32.mrf.mxu0
      %v2690 = vadd.f32 %v2593, %v2689
      %v2691 = vpop.f32.mrf.mxu0
      %v2692 = vpop.f32.mrf.mxu0
      %v2693 = vadd.f32 %v2596, %v2692
      %v2694 = vpop.f32.mrf.mxu0
      %2695 = vmatprep.mubr.bf16.mxu0 %v1810
      %2696 = vmatmul.mubr.bf16.gmra.mxu0 %v1809
      %v2697 = vpop.f32.mrf.mxu0
      %v2698 = vadd.f32 %v2601, %v2697
      %v2699 = vpop.f32.mrf.mxu0
      %v2700 = vpop.f32.mrf.mxu0
      %v2701 = vadd.f32 %v2604, %v2700
      %v2702 = vpop.f32.mrf.mxu0
      %2703 = vdwg.mxu0
      %2704 = vmatprep.subr.bf16.mxu0 0
      %2705 = vmatpush1.bf16.msra.mxu0 %v2243
      %2706 = vmatprep.subr.bf16.mxu0 0
      %2707 = vmatpush1.bf16.msra.mxu0 %v2242
      %2708 = vmatprep.subr.bf16.mxu0 0
      %2709 = vmatpush1.bf16.msra.mxu0 %v2241
      %2710 = vmatprep.subr.bf16.mxu0 0
      %2711 = vmatpush1.bf16.msra.mxu0 %v2240
      %2712 = vmatprep.subr.bf16.mxu0 0
      %2713 = vmatpush1.bf16.msra.mxu0 %v2239
      %2714 = vmatprep.subr.bf16.mxu0 0
      %2715 = vmatpush1.bf16.msra.mxu0 %v2238
      %2716 = vmatprep.subr.bf16.mxu0 0
      %2717 = vmatpush1.bf16.msra.mxu0 %v2237
      %2718 = vmatprep.subr.bf16.mxu0 0
      %2719 = vmatpush1.bf16.msra.mxu0 %v2236
      %2720 = vmatprep.subr.bf16.mxu0 0
      %2721 = vmatpush2.bf16.msra.mxu0 0
      %2722 = vmatprep.subr.bf16.mxu0 0
      %2723 = vmatpush2.bf16.msra.mxu0 0
      %2724 = vmatprep.subr.bf16.mxu0 0
      %2725 = vmatpush2.bf16.msra.mxu0 0
      %2726 = vmatprep.subr.bf16.mxu0 0
      %2727 = vmatpush2.bf16.msra.mxu0 0
      %2728 = vmatprep.subr.bf16.mxu0 0
      %2729 = vmatpush2.bf16.msra.mxu0 0
      %2730 = vmatprep.subr.bf16.mxu0 0
      %2731 = vmatpush2.bf16.msra.mxu0 0
      %2732 = vmatprep.subr.bf16.mxu0 0
      %2733 = vmatpush2.bf16.msra.mxu0 0
      %2734 = vmatprep.subr.bf16.mxu0 0
      %2735 = vmatpush2.bf16.msra.mxu0 0
      %2736 = vmatprep.mubr.bf16.mxu0 0
      %2737 = vmatmul.mubr.bf16.gmra.mxu0 %v1748
      %v2738 = vpop.f32.mrf.mxu0
      %v2739 = vadd.f32 %v2642, %v2738
      %v2740 = vpop.f32.mrf.mxu0
      %v2741 = vpop.f32.mrf.mxu0
      %v2742 = vadd.f32 %v2645, %v2741
      %v2743 = vpop.f32.mrf.mxu0
      %2744 = vmatprep.mubr.bf16.mxu0 0
      %2745 = vmatmul.mubr.bf16.gmra.mxu0 %v1757
      %v2746 = vpop.f32.mrf.mxu0
      %v2747 = vadd.f32 %v2650, %v2746
      %v2748 = vpop.f32.mrf.mxu0
      %v2749 = vpop.f32.mrf.mxu0
      %v2750 = vadd.f32 %v2653, %v2749
      %v2751 = vpop.f32.mrf.mxu0
      %2752 = vmatprep.mubr.bf16.mxu0 0
      %2753 = vmatmul.mubr.bf16.gmra.mxu0 %v1766
      %v2754 = vpop.f32.mrf.mxu0
      %v2755 = vadd.f32 %v2658, %v2754
      %v2756 = vpop.f32.mrf.mxu0
      %v2757 = vpop.f32.mrf.mxu0
      %v2758 = vadd.f32 %v2661, %v2757
      %v2759 = vpop.f32.mrf.mxu0
      %2760 = vmatprep.mubr.bf16.mxu0 0
      %2761 = vmatmul.mubr.bf16.gmra.mxu0 %v1775
      %v2762 = vpop.f32.mrf.mxu0
      %v2763 = vadd.f32 %v2666, %v2762
      %v2764 = vpop.f32.mrf.mxu0
      %v2765 = vpop.f32.mrf.mxu0
      %v2766 = vadd.f32 %v2669, %v2765
      %v2767 = vpop.f32.mrf.mxu0
      %2768 = vmatprep.mubr.bf16.mxu0 0
      %2769 = vmatmul.mubr.bf16.gmra.mxu0 %v1784
      %v2770 = vpop.f32.mrf.mxu0
      %v2771 = vadd.f32 %v2674, %v2770
      %v2772 = vpop.f32.mrf.mxu0
      %v2773 = vpop.f32.mrf.mxu0
      %v2774 = vadd.f32 %v2677, %v2773
      %v2775 = vpop.f32.mrf.mxu0
      %2776 = vmatprep.mubr.bf16.mxu0 0
      %2777 = vmatmul.mubr.bf16.gmra.mxu0 %v1793
      %v2778 = vpop.f32.mrf.mxu0
      %v2779 = vadd.f32 %v2682, %v2778
      %v2780 = vpop.f32.mrf.mxu0
      %v2781 = vpop.f32.mrf.mxu0
      %v2782 = vadd.f32 %v2685, %v2781
      %v2783 = vpop.f32.mrf.mxu0
      %2784 = vmatprep.mubr.bf16.mxu0 0
      %2785 = vmatmul.mubr.bf16.gmra.mxu0 %v1802
      %v2786 = vpop.f32.mrf.mxu0
      %v2787 = vadd.f32 %v2690, %v2786
      %v2788 = vpop.f32.mrf.mxu0
      %v2789 = vpop.f32.mrf.mxu0
      %v2790 = vadd.f32 %v2693, %v2789
      %v2791 = vpop.f32.mrf.mxu0
      %2792 = vmatprep.mubr.bf16.mxu0 0
      %2793 = vmatmul.mubr.bf16.gmra.mxu0 %v1811
      %v2794 = vpop.f32.mrf.mxu0
      %v2795 = vadd.f32 %v2698, %v2794
      %v2796 = vpop.f32.mrf.mxu0
      %v2797 = vpop.f32.mrf.mxu0
      %v2798 = vadd.f32 %v2701, %v2797
      %v2799 = vpop.f32.mrf.mxu0
      %2800 = vdwg.mxu0
      %vm2801 = vcmp.gt.f32.partialorder %v2739, 0.0
      %vm2802 = vcmp.gt.f32.partialorder %v2742, 0.0
      %vm2803 = vcmp.gt.f32.partialorder %v2747, 0.0
      %vm2804 = vcmp.gt.f32.partialorder %v2750, 0.0
      %vm2805 = vcmp.gt.f32.partialorder %v2755, 0.0
      %vm2806 = vcmp.gt.f32.partialorder %v2758, 0.0
      %vm2807 = vcmp.gt.f32.partialorder %v2763, 0.0
      %vm2808 = vcmp.gt.f32.partialorder %v2766, 0.0
      %vm2809 = vcmp.gt.f32.partialorder %v2771, 0.0
      %vm2810 = vcmp.gt.f32.partialorder %v2774, 0.0
      %vm2811 = vcmp.gt.f32.partialorder %v2779, 0.0
      %vm2812 = vcmp.gt.f32.partialorder %v2782, 0.0
      %vm2813 = vcmp.gt.f32.partialorder %v2787, 0.0
      %vm2814 = vcmp.gt.f32.partialorder %v2790, 0.0
      %vm2815 = vcmp.gt.f32.partialorder %v2795, 0.0
      %vm2816 = vcmp.gt.f32.partialorder %v2798, 0.0
      %v2817 = vld [vmem:[%s3] sm:$0x1]
      %v2819 = vlaneseq
      %v2820 = vshrl.u32 %v2819, 7
      %v2821 = vsub.s32 0, %v2820
      %v2822 = vrot.slane %v2817, %v2821
      %v2824 = vmul.f32 %v2822, %v2739
      %v2825 = vmul.f32 %v2822, %v2742
      %v2826 = vmul.f32 %v2822, %v2747
      %v2827 = vmul.f32 %v2822, %v2750
      %v2828 = vmul.f32 %v2822, %v2755
      %v2829 = vmul.f32 %v2822, %v2758
      %v2830 = vmul.f32 %v2822, %v2763
      %v2831 = vmul.f32 %v2822, %v2766
      %v2832 = vmul.f32 %v2822, %v2771
      %v2833 = vmul.f32 %v2822, %v2774
      %v2834 = vmul.f32 %v2822, %v2779
      %v2835 = vmul.f32 %v2822, %v2782
      %v2836 = vmul.f32 %v2822, %v2787
      %v2837 = vmul.f32 %v2822, %v2790
      %v2838 = vmul.f32 %v2822, %v2795
      %v2839 = vmul.f32 %v2822, %v2798
      %v2840 = vsel %vm2801, %v2739, %v2824
      %v2841 = vsel %vm2802, %v2742, %v2825
      %v2842 = vsel %vm2803, %v2747, %v2826
      %v2843 = vsel %vm2804, %v2750, %v2827
      %v2844 = vsel %vm2805, %v2755, %v2828
      %v2845 = vsel %vm2806, %v2758, %v2829
      %v2846 = vsel %vm2807, %v2763, %v2830
      %v2847 = vsel %vm2808, %v2766, %v2831
      %v2848 = vsel %vm2809, %v2771, %v2832
      %v2849 = vsel %vm2810, %v2774, %v2833
      %v2850 = vsel %vm2811, %v2779, %v2834
      %v2851 = vsel %vm2812, %v2782, %v2835
      %v2852 = vsel %vm2813, %v2787, %v2836
      %v2853 = vsel %vm2814, %v2790, %v2837
      %v2854 = vsel %vm2815, %v2795, %v2838
      %v2855 = vsel %vm2816, %v2798, %v2839
      %v2856 = vpack.c.bf16 %v2841, %v2840
      %v2857 = vpack.c.bf16 %v2843, %v2842
      %v2858 = vpack.c.bf16 %v2845, %v2844
      %v2859 = vpack.c.bf16 %v2847, %v2846
      %v2860 = vpack.c.bf16 %v2849, %v2848
      %v2861 = vpack.c.bf16 %v2851, %v2850
      %v2862 = vpack.c.bf16 %v2853, %v2852
      %v2863 = vpack.c.bf16 %v2855, %v2854
      %v2872 = vunpack.c.l.b16 %v2856
      %v2873 = vunpack.c.h.b16 %v2856
      %v2874 = vunpack.c.l.b16 %v2857
      %v2875 = vunpack.c.h.b16 %v2857
      %v2876 = vunpack.c.l.b16 %v2858
      %v2877 = vunpack.c.h.b16 %v2858
      %v2878 = vunpack.c.l.b16 %v2859
      %v2879 = vunpack.c.h.b16 %v2859
      %v2880 = vunpack.c.l.b16 %v2860
      %v2881 = vunpack.c.h.b16 %v2860
      %v2882 = vunpack.c.l.b16 %v2861
      %v2883 = vunpack.c.h.b16 %v2861
      %v2884 = vunpack.c.l.b16 %v2862
      %v2885 = vunpack.c.h.b16 %v2862
      %v2886 = vunpack.c.l.b16 %v2863
      %v2887 = vunpack.c.h.b16 %v2863
      %v2888 = vpack.c.b16 %v2872, %v2872
      %v2889 = vpack.c.b16 %v2873, %v2873
      %v2890 = vpack.c.b16 %v2874, %v2874
      %v2891 = vpack.c.b16 %v2875, %v2875
      %v2892 = vpack.c.b16 %v2876, %v2876
      %v2893 = vpack.c.b16 %v2877, %v2877
      %v2894 = vpack.c.b16 %v2878, %v2878
      %v2895 = vpack.c.b16 %v2879, %v2879
      %v2896 = vpack.c.b16 %v2880, %v2880
      %v2897 = vpack.c.b16 %v2881, %v2881
      %v2898 = vpack.c.b16 %v2882, %v2882
      %v2899 = vpack.c.b16 %v2883, %v2883
      %v2900 = vpack.c.b16 %v2884, %v2884
      %v2901 = vpack.c.b16 %v2885, %v2885
      %v2902 = vpack.c.b16 %v2886, %v2886
      %v2903 = vpack.c.b16 %v2887, %v2887
      %2920 = vst [vmem:[%s197] sm:$0xf] %v2888
      %2921 = vst [vmem:[%s197 + $0x4] sm:$0xf] %v2889
      %2922 = vst [vmem:[%s197 + $0x8] sm:$0xf] %v2890
      %2923 = vst [vmem:[%s197 + $0xc] sm:$0xf] %v2891
      %2924 = vst [vmem:[%s197 + $0x10] sm:$0xf] %v2892
      %2925 = vst [vmem:[%s197 + $0x14] sm:$0xf] %v2893
      %2926 = vst [vmem:[%s197 + $0x18] sm:$0xf] %v2894
      %2927 = vst [vmem:[%s197 + $0x1c] sm:$0xf] %v2895
      %2928 = vst [vmem:[%s197 + $0x20] sm:$0xf] %v2896
      %2929 = vst [vmem:[%s197 + $0x24] sm:$0xf] %v2897
      %2930 = vst [vmem:[%s197 + $0x28] sm:$0xf] %v2898
      %2931 = vst [vmem:[%s197 + $0x2c] sm:$0xf] %v2899
      %2932 = vst [vmem:[%s197 + $0x30] sm:$0xf] %v2900
      %2933 = vst [vmem:[%s197 + $0x34] sm:$0xf] %v2901
      %2934 = vst [vmem:[%s197 + $0x38] sm:$0xf] %v2902
      %2935 = vst [vmem:[%s197 + $0x3c] sm:$0xf] %v2903
      %p2936 = scmp.lt.s32.totalorder %s15, 1
      %s2937 = scalar_select %p2936, %s15, 1
      %s2938 = smul.addr %s2937, 16
      %s2939 = smul.addr %s2938, 4
      %s2940 = scalar_lea.vmem %s4, %s2939
      // Predicated region
      $region37: #{dense_projection.5} parent=35 // pred_check
        %p2941 = pneg %p122
      $region38: #{dense_projection.5} parent=35 // pred_check_branch
        %2943 = sbr.rel (%p2941) target = $region40
      $region39: #{dense_projection.5} parent=35 // pred_region
        _
      $region40: #{dense_projection.5} parent=35 // pred_fallthru
        _
    $region36: #{dense_projection.5} parent=5 // pred_fallthru
      _
    %p2944 = scmp.le.s32.totalorder 2, %s10
    // Predicated region
    $region41: #{dense_projection.5} parent=5 // pred_check
      %p2945 = pneg %p2944
    $region42: #{dense_projection.5} parent=5 // pred_check_branch
      %2947 = sbr.rel (%p2945) target = $region44
    $region43: #{dense_projection.5} parent=5 // pred_region
      %s2948 = ssub.s32 %s10, 2
      // Predicated region
      $region45: #{dense_projection.5} parent=43 // pred_check
        %p2949 = pneg %p128
      $region46: #{dense_projection.5} parent=43 // pred_check_branch
        %2951 = sbr.rel (%p2949) target = $region48
      $region47: #{dense_projection.5} parent=43 // pred_region
        %p2952 = scmp.lt.s32.totalorder %s16, 1
        %s2953 = scalar_select %p2952, %s16, 1
        %s2954 = smul.addr %s2953, 16
        %s2955 = smul.addr %s2954, 4
        %s2956 = scalar_lea.vmem %s4, %s2955
      $region48: #{dense_projection.5} parent=43 // pred_fallthru
        _
    $region44: #{dense_projection.5} parent=5 // pred_fallthru
      _
  $region6: #{dense_projection.5} parent=0 // loop_footer
    %s14 = sadd.s32 1, %s10
  $region7: #{dense_projection.5} parent=0 // loop_footer_branch
    %9 = sbr.rel target = $region3
  $region8: #{dense_projection.5} parent=0 // loop_exit
    _

</llo_original>
